<compile_context>
chip_gen: v6e
topology: v6e:2x2x1
jax: 0.10.0
libtpu: 0.0.40
codegen_flags: <defaults>
</compile_context>

<pallas_src>
import jax
import jax.numpy as jnp
from jax import lax
from jax.experimental import pallas as pl
from jax.experimental.pallas import tpu as pltpu


# Transposed-LHS matmul: contract LHS dim 0 with RHS dim 0 (the MXU handles the
# transposed operand natively; no extra HBM pass for a layout change).
TN_DIM_NUMBERS = (((0,), (0,)), ((), ()))


def scene_encoder_kernel(feat_ref, w_ref, pos_ref, out_ref):
    """One HW-tile of tokens per grid step, all batch elements at once.

    feat_ref: (B, C_in, hw_tile)  backbone features, native NCHW-flattened layout (bf16)
    w_ref:    (C_in, D)           1x1 conv weight as a matmul matrix (bf16)
    pos_ref:  (hw_tile, D)        learned positional embedding WITH conv bias folded in (f32)
    out_ref:  (B, hw_tile, D)
    """
    w = w_ref[...]
    pos = pos_ref[...]
    # B is small and static -> unrolled; each iteration is one MXU matmul
    # (K = C_in on the contraction axis), f32 accumulation, f32 epilogue add.
    for b in range(out_ref.shape[0]):
        y = lax.dot_general(
            feat_ref[b], w, TN_DIM_NUMBERS,
            preferred_element_type=jnp.float32,
        )  # (hw_tile, D)
        out_ref[b] = (y + pos).astype(out_ref.dtype)


def scene_encoder_forward(features_nchw, conv_w, conv_b, row_embed, col_embed,
                          *, hw_tile=None, out_dtype=jnp.float32):
    """features_nchw: [B, C_in, Hf, Wf] (backbone output, NCHW like PyTorch)."""
    B, C_in, Hf, Wf = features_nchw.shape
    D = conv_w.shape[0]
    assert D % 2 == 0, "d_model must be even for the row/col positional split"
    HW = Hf * Wf

    # ---- glue (plain JAX): parameter prep only, no pass over the feature map ----
    # NCHW -> [B, C_in, HW] is a free, contiguous reshape (no transpose!).
    # bf16 cast of the matmul operands: in production this would be fused into the
    # backbone output; here it is a one-time prep cost.
    feat = features_nchw.reshape(B, C_in, HW).astype(jnp.bfloat16)
    # Conv2d(C_in, D, 1) weight [D, C_in, 1, 1] -> matmul matrix [C_in, D] (tiny, one-time).
    w_mat = jnp.transpose(conv_w.reshape(D, C_in), (1, 0)).astype(jnp.bfloat16)
    # LearnablePosition: cat(col over rows, row over cols) -> [H, W, D] -> [HW, D],
    # with the conv bias folded in once (saves a kernel input + per-step add).
    col = jnp.broadcast_to(col_embed[:Wf][None, :, :], (Hf, Wf, D // 2))
    row = jnp.broadcast_to(row_embed[:Hf][:, None, :], (Hf, Wf, D // 2))
    pos = (jnp.concatenate([col, row], axis=-1).reshape(HW, D)
           + conv_b[None, :]).astype(jnp.float32)

    # Token tiling: one tile at toy sizes; cap the (B, C_in, hw_tile) block at
    # realistic DETR sizes so double-buffered inputs stay well under v7x's VMEM,
    # and so the grid has >=2 "parallel" steps to feed both v7x TensorCores.
    if hw_tile is None:
        hw_tile = HW if HW <= 512 else 512
    assert HW % hw_tile == 0, "hw_tile must divide H*W"
    n_tiles = HW // hw_tile

    # ---- Pallas kernel: 1x1-conv matmul + (bias-folded) positional add ----
    out = pl.pallas_call(
        scene_encoder_kernel,
        out_shape=jax.ShapeDtypeStruct((B, HW, D), out_dtype),
        grid_spec=pltpu.PrefetchScalarGridSpec(
            num_scalar_prefetch=0,
            grid=(n_tiles,),
            in_specs=[
                pl.BlockSpec((B, C_in, hw_tile), lambda m: (0, 0, m)),
                pl.BlockSpec((C_in, D), lambda m: (0, 0)),   # grid-invariant
                pl.BlockSpec((hw_tile, D), lambda m: (m, 0)),
            ],
            out_specs=pl.BlockSpec((B, hw_tile, D), lambda m: (0, m, 0)),
        ),
        compiler_params=pltpu.CompilerParams(
            dimension_semantics=("parallel",),
        ),
    )(feat, w_mat, pos)
    return out


def _reference(features_nchw, conv_w, conv_b, row_embed, col_embed):
    """Pure-JAX f32 reference mirroring the PyTorch forward (post-backbone)."""
    B, C_in, Hf, Wf = features_nchw.shape
    D = conv_w.shape[0]
    feats = jnp.einsum("bchw,dc->bdhw", features_nchw, conv_w.reshape(D, C_in))
    feats = feats + conv_b[None, :, None, None]
    flat = jnp.transpose(feats.reshape(B, D, Hf * Wf), (0, 2, 1))  # [B, HW, D]
    col = jnp.broadcast_to(col_embed[:Wf][None, :, :], (Hf, Wf, D // 2))
    row = jnp.broadcast_to(row_embed[:Hf][:, None, :], (Hf, Wf, D // 2))
    pos = jnp.concatenate([col, row], axis=-1).reshape(1, Hf * Wf, D)
    return flat + pos


if __name__ == "__main__":
    # ResNet50 output has 2048 channels and a /32 spatial reduction, so a
    # 128x128 image -> [B, 2048, 4, 4] feature map.
    B, C_IN, HF, WF = 2, 2048, 4, 4
    D_MODEL = 32

    key = jax.random.PRNGKey(0)
    k_feat, k_w, k_b, k_row, k_col = jax.random.split(key, 5)

    # Backbone feature-map stand-in (see TODO above).
    features = jax.random.normal(k_feat, (B, C_IN, HF, WF), dtype=jnp.float32)

    # Deterministic parameter init (shapes per the module's __init__).
    conv_w = jax.random.normal(k_w, (D_MODEL, C_IN, 1, 1), dtype=jnp.float32) * 0.02
    conv_b = jax.random.normal(k_b, (D_MODEL,), dtype=jnp.float32) * 0.02
    row_embed = jax.random.uniform(k_row, (50, D_MODEL // 2), dtype=jnp.float32)
    col_embed = jax.random.uniform(k_col, (50, D_MODEL // 2), dtype=jnp.float32)

    out = scene_encoder_forward(features, conv_w, conv_b, row_embed, col_embed)
    out = jax.block_until_ready(out)

    ref = _reference(features, conv_w, conv_b, row_embed, col_embed)
    assert out.shape == (B, HF * WF, D_MODEL), out.shape
    assert out.dtype == jnp.float32, out.dtype
    # bf16 matmul operands (f32 accumulation) vs. f32 reference -> loosened tolerance.
    max_err = float(jnp.max(jnp.abs(out - ref)))
    assert jnp.allclose(out, ref, atol=5e-2, rtol=5e-2), max_err

    print("KERNEL_OK")
</pallas_src>

<mosaic_0001>
module attributes {stable_mosaic.version = 11 : i64} {
  func.func @scene_encoder_kernel(%arg0: i32, %arg1: memref<2x2048x16xbf16, #tpu.memory_space<vmem>>, %arg2: memref<2048x32xbf16, #tpu.memory_space<vmem>>, %arg3: memref<16x32xf32, #tpu.memory_space<vmem>>, %arg4: memref<2x16x32xf32, #tpu.memory_space<vmem>>) attributes {dimension_semantics = [#tpu.dimension_semantics<parallel>], iteration_bounds = array<i64: 1>, scalar_prefetch = 0 : i64, scratch_operands = 0 : i64, tpu.core_type = #tpu.core_type<tc>, window_params = [{transform_indices = @transform_0, window_bounds = array<i64: 2, 2048, 16>}, {pipeline_mode = #tpu.pipeline_mode<synchronous>, transform_indices = @transform_1, window_bounds = array<i64: 2048, 32>}, {transform_indices = @transform_2, window_bounds = array<i64: 16, 32>}, {transform_indices = @transform_3, window_bounds = array<i64: 2, 16, 32>}]} {
    %c0 = arith.constant 0 : index
    %c0_0 = arith.constant 0 : index
    %0 = vector.load %arg2[%c0, %c0_0] : memref<2048x32xbf16, #tpu.memory_space<vmem>>, vector<2048x32xbf16>
    %c0_1 = arith.constant 0 : index
    %c0_2 = arith.constant 0 : index
    %1 = vector.load %arg3[%c0_1, %c0_2] : memref<16x32xf32, #tpu.memory_space<vmem>>, vector<16x32xf32>
    %c0_3 = arith.constant 0 : index
    %c0_4 = arith.constant 0 : index
    %c0_5 = arith.constant 0 : index
    %2 = vector.load %arg1[%c0_3, %c0_4, %c0_5] : memref<2x2048x16xbf16, #tpu.memory_space<vmem>>, vector<1x2048x16xbf16>
    %3 = vector.shape_cast %2 : vector<1x2048x16xbf16> to vector<2048x16xbf16>
    %cst = arith.constant dense<0.000000e+00> : vector<16x32xf32>
    %4 = tpu.matmul %3, %0, %cst {dimension_numbers = #tpu.dot_dimension_numbers<[0], [0], [1], [1], [0, 1, 1, 1], [], []>} : vector<2048x16xbf16>, vector<2048x32xbf16>, vector<16x32xf32> -> vector<16x32xf32>
    %5 = arith.addf %4, %1 : vector<16x32xf32>
    %c0_6 = arith.constant 0 : index
    %c0_7 = arith.constant 0 : index
    %c0_8 = arith.constant 0 : index
    %6 = vector.load %arg4[%c0_6, %c0_7, %c0_8] : memref<2x16x32xf32, #tpu.memory_space<vmem>>, vector<1x16x32xf32>
    %7 = vector.shape_cast %6 : vector<1x16x32xf32> to vector<16x32xf32>
    %8 = vector.shape_cast %5 : vector<16x32xf32> to vector<1x16x32xf32>
    tpu.vector_store %arg4[%c0_6, %c0_7, %c0_8], %8 {strides = array<i32>} : memref<2x16x32xf32, #tpu.memory_space<vmem>>, vector<1x16x32xf32>,
    %c1 = arith.constant 1 : index
    %c0_9 = arith.constant 0 : index
    %c0_10 = arith.constant 0 : index
    %9 = vector.load %arg1[%c1, %c0_9, %c0_10] : memref<2x2048x16xbf16, #tpu.memory_space<vmem>>, vector<1x2048x16xbf16>
    %10 = vector.shape_cast %9 : vector<1x2048x16xbf16> to vector<2048x16xbf16>
    %cst_11 = arith.constant dense<0.000000e+00> : vector<16x32xf32>
    %11 = tpu.matmul %10, %0, %cst_11 {dimension_numbers = #tpu.dot_dimension_numbers<[0], [0], [1], [1], [0, 1, 1, 1], [], []>} : vector<2048x16xbf16>, vector<2048x32xbf16>, vector<16x32xf32> -> vector<16x32xf32>
    %12 = arith.addf %11, %1 : vector<16x32xf32>
    %c1_12 = arith.constant 1 : index
    %c0_13 = arith.constant 0 : index
    %c0_14 = arith.constant 0 : index
    %13 = vector.load %arg4[%c1_12, %c0_13, %c0_14] : memref<2x16x32xf32, #tpu.memory_space<vmem>>, vector<1x16x32xf32>
    %14 = vector.shape_cast %13 : vector<1x16x32xf32> to vector<16x32xf32>
    %15 = vector.shape_cast %12 : vector<16x32xf32> to vector<1x16x32xf32>
    tpu.vector_store %arg4[%c1_12, %c0_13, %c0_14], %15 {strides = array<i32>} : memref<2x16x32xf32, #tpu.memory_space<vmem>>, vector<1x16x32xf32>,
    return
  }
  func.func @transform_0(%arg0: i32) -> (i32, i32, i32) {
    %c0_i32 = arith.constant 0 : i32
    %c0_i32_0 = arith.constant 0 : i32
    %c0_i32_1 = arith.constant 0 : i32
    return %c0_i32, %c0_i32_0, %arg0 : i32, i32, i32
  }
  func.func @transform_1(%arg0: i32) -> (i32, i32) {
    %c0_i32 = arith.constant 0 : i32
    %c0_i32_0 = arith.constant 0 : i32
    %c0_i32_1 = arith.constant 0 : i32
    return %c0_i32, %c0_i32_0 : i32, i32
  }
  func.func @transform_2(%arg0: i32) -> (i32, i32) {
    %c0_i32 = arith.constant 0 : i32
    %c0_i32_0 = arith.constant 0 : i32
    return %arg0, %c0_i32 : i32, i32
  }
  func.func @transform_3(%arg0: i32) -> (i32, i32, i32) {
    %c0_i32 = arith.constant 0 : i32
    %c0_i32_0 = arith.constant 0 : i32
    %c0_i32_1 = arith.constant 0 : i32
    return %c0_i32, %arg0, %c0_i32_0 : i32, i32, i32
  }
}

</mosaic_0001>

<llo_original>
// kernel: tpu_custom_call.1
$region0: #{tpu_custom_call.1}
  #allocation0 [shape = 'u32[]', space=smem, size = 0x4, offset = 0x4, fixed_abs, tag = 'smem constant byte address 0x4 - core index']
  #allocation1 [shape = 'u32[144,128]{1,0:T(1,128)}', space=vmem, size = 0x12000, scoped, tag = 'internal scratch']
  %s0 = inlined_call_operand.vmem [shape: bf16[2,2048,16], index: 0, kind: input, shape index: {}]
  %s1 = inlined_call_operand.vmem [shape: bf16[2048,32], index: 1, kind: input, shape index: {}]
  %s2 = inlined_call_operand.vmem [shape: f32[16,32], index: 2, kind: input, shape index: {}]
  %s3 = inlined_call_operand.hbm [shape: f32[2,16,32], index: 3, kind: output, shape index: {}]
  %s4 = sld [smem:[#allocation0]]
  $region22: #{tpu_custom_call.1} parent=0
    _
  %s6 = ssub.s32 1, %s4
  %s7 = scalar_select 0, %s6, %s4
  $region1: #{tpu_custom_call.1} parent=0
    #allocation2 [shape = 'u8[16384]{0}', space=vmem, size = 0x4000, scoped, tag = 'output window, operand 0, single buffered']
    #allocation3 [shape = 's32[1]{0}', space=sflag, size = 0x4, scoped, tag = 'scoped memory for tpu_custom_call.1']
    %8 = vsyncpa [#allocation3], 0
    // Predicated region
    $region2: #{tpu_custom_call.1} parent=1 // pred_check
      _
    $region3: #{tpu_custom_call.1} parent=1 // pred_check_branch
      %10 = sbr.rel (0) target = $region5
    $region4: #{tpu_custom_call.1} parent=1 // pred_region
      _
    $region5: #{tpu_custom_call.1} parent=1 // pred_fallthru
      _
    // Predicated region
    $region6: #{tpu_custom_call.1} parent=1 // pred_check
      _
    $region7: #{tpu_custom_call.1} parent=1 // pred_check_branch
      %12 = sbr.rel (0) target = $region9
    $region8: #{tpu_custom_call.1} parent=1 // pred_region
      _
    $region9: #{tpu_custom_call.1} parent=1 // pred_fallthru
      _
    // Predicated region
    $region10: #{tpu_custom_call.1} parent=1 // pred_check
      _
    $region11: #{tpu_custom_call.1} parent=1 // pred_check_branch
      %14 = sbr.rel (0) target = $region13
    $region12: #{tpu_custom_call.1} parent=1 // pred_region
      _
    $region13: #{tpu_custom_call.1} parent=1 // pred_fallthru
      _
    %v16 = vld [vmem:[%s1] sm:$0xf]
    %v17 = vld [vmem:[%s1 + $0x4] sm:$0xf]
    %v18 = vld [vmem:[%s1 + $0x8] sm:$0xf]
    %v19 = vld [vmem:[%s1 + $0xc] sm:$0xf]
    %v20 = vld [vmem:[%s1 + $0x10] sm:$0xf]
    %v21 = vld [vmem:[%s1 + $0x14] sm:$0xf]
    %v22 = vld [vmem:[%s1 + $0x18] sm:$0xf]
    %v23 = vld [vmem:[%s1 + $0x1c] sm:$0xf]
    %v24 = vld [vmem:[%s1 + $0x20] sm:$0xf]
    %v25 = vld [vmem:[%s1 + $0x24] sm:$0xf]
    %v26 = vld [vmem:[%s1 + $0x28] sm:$0xf]
    %v27 = vld [vmem:[%s1 + $0x2c] sm:$0xf]
    %v28 = vld [vmem:[%s1 + $0x30] sm:$0xf]
    %v29 = vld [vmem:[%s1 + $0x34] sm:$0xf]
    %v30 = vld [vmem:[%s1 + $0x38] sm:$0xf]
    %v31 = vld [vmem:[%s1 + $0x3c] sm:$0xf]
    %v32 = vld [vmem:[%s1 + $0x40] sm:$0xf]
    %v33 = vld [vmem:[%s1 + $0x44] sm:$0xf]
    %v34 = vld [vmem:[%s1 + $0x48] sm:$0xf]
    %v35 = vld [vmem:[%s1 + $0x4c] sm:$0xf]
    %v36 = vld [vmem:[%s1 + $0x50] sm:$0xf]
    %v37 = vld [vmem:[%s1 + $0x54] sm:$0xf]
    %v38 = vld [vmem:[%s1 + $0x58] sm:$0xf]
    %v39 = vld [vmem:[%s1 + $0x5c] sm:$0xf]
    %v40 = vld [vmem:[%s1 + $0x60] sm:$0xf]
    %v41 = vld [vmem:[%s1 + $0x64] sm:$0xf]
    %v42 = vld [vmem:[%s1 + $0x68] sm:$0xf]
    %v43 = vld [vmem:[%s1 + $0x6c] sm:$0xf]
    %v44 = vld [vmem:[%s1 + $0x70] sm:$0xf]
    %v45 = vld [vmem:[%s1 + $0x74] sm:$0xf]
    %v46 = vld [vmem:[%s1 + $0x78] sm:$0xf]
    %v47 = vld [vmem:[%s1 + $0x7c] sm:$0xf]
    %v48 = vld [vmem:[%s1 + $0x80] sm:$0xf]
    %v49 = vld [vmem:[%s1 + $0x84] sm:$0xf]
    %v50 = vld [vmem:[%s1 + $0x88] sm:$0xf]
    %v51 = vld [vmem:[%s1 + $0x8c] sm:$0xf]
    %v52 = vld [vmem:[%s1 + $0x90] sm:$0xf]
    %v53 = vld [vmem:[%s1 + $0x94] sm:$0xf]
    %v54 = vld [vmem:[%s1 + $0x98] sm:$0xf]
    %v55 = vld [vmem:[%s1 + $0x9c] sm:$0xf]
    %v56 = vld [vmem:[%s1 + $0xa0] sm:$0xf]
    %v57 = vld [vmem:[%s1 + $0xa4] sm:$0xf]
    %v58 = vld [vmem:[%s1 + $0xa8] sm:$0xf]
    %v59 = vld [vmem:[%s1 + $0xac] sm:$0xf]
    %v60 = vld [vmem:[%s1 + $0xb0] sm:$0xf]
    %v61 = vld [vmem:[%s1 + $0xb4] sm:$0xf]
    %v62 = vld [vmem:[%s1 + $0xb8] sm:$0xf]
    %v63 = vld [vmem:[%s1 + $0xbc] sm:$0xf]
    %v64 = vld [vmem:[%s1 + $0xc0] sm:$0xf]
    %v65 = vld [vmem:[%s1 + $0xc4] sm:$0xf]
    %v66 = vld [vmem:[%s1 + $0xc8] sm:$0xf]
    %v67 = vld [vmem:[%s1 + $0xcc] sm:$0xf]
    %v68 = vld [vmem:[%s1 + $0xd0] sm:$0xf]
    %v69 = vld [vmem:[%s1 + $0xd4] sm:$0xf]
    %v70 = vld [vmem:[%s1 + $0xd8] sm:$0xf]
    %v71 = vld [vmem:[%s1 + $0xdc] sm:$0xf]
    %v72 = vld [vmem:[%s1 + $0xe0] sm:$0xf]
    %v73 = vld [vmem:[%s1 + $0xe4] sm:$0xf]
    %v74 = vld [vmem:[%s1 + $0xe8] sm:$0xf]
    %v75 = vld [vmem:[%s1 + $0xec] sm:$0xf]
    %v76 = vld [vmem:[%s1 + $0xf0] sm:$0xf]
    %v77 = vld [vmem:[%s1 + $0xf4] sm:$0xf]
    %v78 = vld [vmem:[%s1 + $0xf8] sm:$0xf]
    %v79 = vld [vmem:[%s1 + $0xfc] sm:$0xf]
    %v80 = vld [vmem:[%s1 + $0x100] sm:$0xf]
    %v81 = vld [vmem:[%s1 + $0x104] sm:$0xf]
    %v82 = vld [vmem:[%s1 + $0x108] sm:$0xf]
    %v83 = vld [vmem:[%s1 + $0x10c] sm:$0xf]
    %v84 = vld [vmem:[%s1 + $0x110] sm:$0xf]
    %v85 = vld [vmem:[%s1 + $0x114] sm:$0xf]
    %v86 = vld [vmem:[%s1 + $0x118] sm:$0xf]
    %v87 = vld [vmem:[%s1 + $0x11c] sm:$0xf]
    %v88 = vld [vmem:[%s1 + $0x120] sm:$0xf]
    %v89 = vld [vmem:[%s1 + $0x124] sm:$0xf]
    %v90 = vld [vmem:[%s1 + $0x128] sm:$0xf]
    %v91 = vld [vmem:[%s1 + $0x12c] sm:$0xf]
    %v92 = vld [vmem:[%s1 + $0x130] sm:$0xf]
    %v93 = vld [vmem:[%s1 + $0x134] sm:$0xf]
    %v94 = vld [vmem:[%s1 + $0x138] sm:$0xf]
    %v95 = vld [vmem:[%s1 + $0x13c] sm:$0xf]
    %v96 = vld [vmem:[%s1 + $0x140] sm:$0xf]
    %v97 = vld [vmem:[%s1 + $0x144] sm:$0xf]
    %v98 = vld [vmem:[%s1 + $0x148] sm:$0xf]
    %v99 = vld [vmem:[%s1 + $0x14c] sm:$0xf]
    %v100 = vld [vmem:[%s1 + $0x150] sm:$0xf]
    %v101 = vld [vmem:[%s1 + $0x154] sm:$0xf]
    %v102 = vld [vmem:[%s1 + $0x158] sm:$0xf]
    %v103 = vld [vmem:[%s1 + $0x15c] sm:$0xf]
    %v104 = vld [vmem:[%s1 + $0x160] sm:$0xf]
    %v105 = vld [vmem:[%s1 + $0x164] sm:$0xf]
    %v106 = vld [vmem:[%s1 + $0x168] sm:$0xf]
    %v107 = vld [vmem:[%s1 + $0x16c] sm:$0xf]
    %v108 = vld [vmem:[%s1 + $0x170] sm:$0xf]
    %v109 = vld [vmem:[%s1 + $0x174] sm:$0xf]
    %v110 = vld [vmem:[%s1 + $0x178] sm:$0xf]
    %v111 = vld [vmem:[%s1 + $0x17c] sm:$0xf]
    %v112 = vld [vmem:[%s1 + $0x180] sm:$0xf]
    %v113 = vld [vmem:[%s1 + $0x184] sm:$0xf]
    %v114 = vld [vmem:[%s1 + $0x188] sm:$0xf]
    %v115 = vld [vmem:[%s1 + $0x18c] sm:$0xf]
    %v116 = vld [vmem:[%s1 + $0x190] sm:$0xf]
    %v117 = vld [vmem:[%s1 + $0x194] sm:$0xf]
    %v118 = vld [vmem:[%s1 + $0x198] sm:$0xf]
    %v119 = vld [vmem:[%s1 + $0x19c] sm:$0xf]
    %v120 = vld [vmem:[%s1 + $0x1a0] sm:$0xf]
    %v121 = vld [vmem:[%s1 + $0x1a4] sm:$0xf]
    %v122 = vld [vmem:[%s1 + $0x1a8] sm:$0xf]
    %v123 = vld [vmem:[%s1 + $0x1ac] sm:$0xf]
    %v124 = vld [vmem:[%s1 + $0x1b0] sm:$0xf]
    %v125 = vld [vmem:[%s1 + $0x1b4] sm:$0xf]
    %v126 = vld [vmem:[%s1 + $0x1b8] sm:$0xf]
    %v127 = vld [vmem:[%s1 + $0x1bc] sm:$0xf]
    %v128 = vld [vmem:[%s1 + $0x1c0] sm:$0xf]
    %v129 = vld [vmem:[%s1 + $0x1c4] sm:$0xf]
    %v130 = vld [vmem:[%s1 + $0x1c8] sm:$0xf]
    %v131 = vld [vmem:[%s1 + $0x1cc] sm:$0xf]
    %v132 = vld [vmem:[%s1 + $0x1d0] sm:$0xf]
    %v133 = vld [vmem:[%s1 + $0x1d4] sm:$0xf]
    %v134 = vld [vmem:[%s1 + $0x1d8] sm:$0xf]
    %v135 = vld [vmem:[%s1 + $0x1dc] sm:$0xf]
    %v136 = vld [vmem:[%s1 + $0x1e0] sm:$0xf]
    %v137 = vld [vmem:[%s1 + $0x1e4] sm:$0xf]
    %v138 = vld [vmem:[%s1 + $0x1e8] sm:$0xf]
    %v139 = vld [vmem:[%s1 + $0x1ec] sm:$0xf]
    %v140 = vld [vmem:[%s1 + $0x1f0] sm:$0xf]
    %v141 = vld [vmem:[%s1 + $0x1f4] sm:$0xf]
    %v142 = vld [vmem:[%s1 + $0x1f8] sm:$0xf]
    %v143 = vld [vmem:[%s1 + $0x1fc] sm:$0xf]
    %v144 = vld [vmem:[%s1 + $0x200] sm:$0xf]
    %v145 = vld [vmem:[%s1 + $0x204] sm:$0xf]
    %v146 = vld [vmem:[%s1 + $0x208] sm:$0xf]
    %v147 = vld [vmem:[%s1 + $0x20c] sm:$0xf]
    %v148 = vld [vmem:[%s1 + $0x210] sm:$0xf]
    %v149 = vld [vmem:[%s1 + $0x214] sm:$0xf]
    %v150 = vld [vmem:[%s1 + $0x218] sm:$0xf]
    %v151 = vld [vmem:[%s1 + $0x21c] sm:$0xf]
    %v152 = vld [vmem:[%s1 + $0x220] sm:$0xf]
    %v153 = vld [vmem:[%s1 + $0x224] sm:$0xf]
    %v154 = vld [vmem:[%s1 + $0x228] sm:$0xf]
    %v155 = vld [vmem:[%s1 + $0x22c] sm:$0xf]
    %v156 = vld [vmem:[%s1 + $0x230] sm:$0xf]
    %v157 = vld [vmem:[%s1 + $0x234] sm:$0xf]
    %v158 = vld [vmem:[%s1 + $0x238] sm:$0xf]
    %v159 = vld [vmem:[%s1 + $0x23c] sm:$0xf]
    %v160 = vld [vmem:[%s1 + $0x240] sm:$0xf]
    %v161 = vld [vmem:[%s1 + $0x244] sm:$0xf]
    %v162 = vld [vmem:[%s1 + $0x248] sm:$0xf]
    %v163 = vld [vmem:[%s1 + $0x24c] sm:$0xf]
    %v164 = vld [vmem:[%s1 + $0x250] sm:$0xf]
    %v165 = vld [vmem:[%s1 + $0x254] sm:$0xf]
    %v166 = vld [vmem:[%s1 + $0x258] sm:$0xf]
    %v167 = vld [vmem:[%s1 + $0x25c] sm:$0xf]
    %v168 = vld [vmem:[%s1 + $0x260] sm:$0xf]
    %v169 = vld [vmem:[%s1 + $0x264] sm:$0xf]
    %v170 = vld [vmem:[%s1 + $0x268] sm:$0xf]
    %v171 = vld [vmem:[%s1 + $0x26c] sm:$0xf]
    %v172 = vld [vmem:[%s1 + $0x270] sm:$0xf]
    %v173 = vld [vmem:[%s1 + $0x274] sm:$0xf]
    %v174 = vld [vmem:[%s1 + $0x278] sm:$0xf]
    %v175 = vld [vmem:[%s1 + $0x27c] sm:$0xf]
    %v176 = vld [vmem:[%s1 + $0x280] sm:$0xf]
    %v177 = vld [vmem:[%s1 + $0x284] sm:$0xf]
    %v178 = vld [vmem:[%s1 + $0x288] sm:$0xf]
    %v179 = vld [vmem:[%s1 + $0x28c] sm:$0xf]
    %v180 = vld [vmem:[%s1 + $0x290] sm:$0xf]
    %v181 = vld [vmem:[%s1 + $0x294] sm:$0xf]
    %v182 = vld [vmem:[%s1 + $0x298] sm:$0xf]
    %v183 = vld [vmem:[%s1 + $0x29c] sm:$0xf]
    %v184 = vld [vmem:[%s1 + $0x2a0] sm:$0xf]
    %v185 = vld [vmem:[%s1 + $0x2a4] sm:$0xf]
    %v186 = vld [vmem:[%s1 + $0x2a8] sm:$0xf]
    %v187 = vld [vmem:[%s1 + $0x2ac] sm:$0xf]
    %v188 = vld [vmem:[%s1 + $0x2b0] sm:$0xf]
    %v189 = vld [vmem:[%s1 + $0x2b4] sm:$0xf]
    %v190 = vld [vmem:[%s1 + $0x2b8] sm:$0xf]
    %v191 = vld [vmem:[%s1 + $0x2bc] sm:$0xf]
    %v192 = vld [vmem:[%s1 + $0x2c0] sm:$0xf]
    %v193 = vld [vmem:[%s1 + $0x2c4] sm:$0xf]
    %v194 = vld [vmem:[%s1 + $0x2c8] sm:$0xf]
    %v195 = vld [vmem:[%s1 + $0x2cc] sm:$0xf]
    %v196 = vld [vmem:[%s1 + $0x2d0] sm:$0xf]
    %v197 = vld [vmem:[%s1 + $0x2d4] sm:$0xf]
    %v198 = vld [vmem:[%s1 + $0x2d8] sm:$0xf]
    %v199 = vld [vmem:[%s1 + $0x2dc] sm:$0xf]
    %v200 = vld [vmem:[%s1 + $0x2e0] sm:$0xf]
    %v201 = vld [vmem:[%s1 + $0x2e4] sm:$0xf]
    %v202 = vld [vmem:[%s1 + $0x2e8] sm:$0xf]
    %v203 = vld [vmem:[%s1 + $0x2ec] sm:$0xf]
    %v204 = vld [vmem:[%s1 + $0x2f0] sm:$0xf]
    %v205 = vld [vmem:[%s1 + $0x2f4] sm:$0xf]
    %v206 = vld [vmem:[%s1 + $0x2f8] sm:$0xf]
    %v207 = vld [vmem:[%s1 + $0x2fc] sm:$0xf]
    %v208 = vld [vmem:[%s1 + $0x300] sm:$0xf]
    %v209 = vld [vmem:[%s1 + $0x304] sm:$0xf]
    %v210 = vld [vmem:[%s1 + $0x308] sm:$0xf]
    %v211 = vld [vmem:[%s1 + $0x30c] sm:$0xf]
    %v212 = vld [vmem:[%s1 + $0x310] sm:$0xf]
    %v213 = vld [vmem:[%s1 + $0x314] sm:$0xf]
    %v214 = vld [vmem:[%s1 + $0x318] sm:$0xf]
    %v215 = vld [vmem:[%s1 + $0x31c] sm:$0xf]
    %v216 = vld [vmem:[%s1 + $0x320] sm:$0xf]
    %v217 = vld [vmem:[%s1 + $0x324] sm:$0xf]
    %v218 = vld [vmem:[%s1 + $0x328] sm:$0xf]
    %v219 = vld [vmem:[%s1 + $0x32c] sm:$0xf]
    %v220 = vld [vmem:[%s1 + $0x330] sm:$0xf]
    %v221 = vld [vmem:[%s1 + $0x334] sm:$0xf]
    %v222 = vld [vmem:[%s1 + $0x338] sm:$0xf]
    %v223 = vld [vmem:[%s1 + $0x33c] sm:$0xf]
    %v224 = vld [vmem:[%s1 + $0x340] sm:$0xf]
    %v225 = vld [vmem:[%s1 + $0x344] sm:$0xf]
    %v226 = vld [vmem:[%s1 + $0x348] sm:$0xf]
    %v227 = vld [vmem:[%s1 + $0x34c] sm:$0xf]
    %v228 = vld [vmem:[%s1 + $0x350] sm:$0xf]
    %v229 = vld [vmem:[%s1 + $0x354] sm:$0xf]
    %v230 = vld [vmem:[%s1 + $0x358] sm:$0xf]
    %v231 = vld [vmem:[%s1 + $0x35c] sm:$0xf]
    %v232 = vld [vmem:[%s1 + $0x360] sm:$0xf]
    %v233 = vld [vmem:[%s1 + $0x364] sm:$0xf]
    %v234 = vld [vmem:[%s1 + $0x368] sm:$0xf]
    %v235 = vld [vmem:[%s1 + $0x36c] sm:$0xf]
    %v236 = vld [vmem:[%s1 + $0x370] sm:$0xf]
    %v237 = vld [vmem:[%s1 + $0x374] sm:$0xf]
    %v238 = vld [vmem:[%s1 + $0x378] sm:$0xf]
    %v239 = vld [vmem:[%s1 + $0x37c] sm:$0xf]
    %v240 = vld [vmem:[%s1 + $0x380] sm:$0xf]
    %v241 = vld [vmem:[%s1 + $0x384] sm:$0xf]
    %v242 = vld [vmem:[%s1 + $0x388] sm:$0xf]
    %v243 = vld [vmem:[%s1 + $0x38c] sm:$0xf]
    %v244 = vld [vmem:[%s1 + $0x390] sm:$0xf]
    %v245 = vld [vmem:[%s1 + $0x394] sm:$0xf]
    %v246 = vld [vmem:[%s1 + $0x398] sm:$0xf]
    %v247 = vld [vmem:[%s1 + $0x39c] sm:$0xf]
    %v248 = vld [vmem:[%s1 + $0x3a0] sm:$0xf]
    %v249 = vld [vmem:[%s1 + $0x3a4] sm:$0xf]
    %v250 = vld [vmem:[%s1 + $0x3a8] sm:$0xf]
    %v251 = vld [vmem:[%s1 + $0x3ac] sm:$0xf]
    %v252 = vld [vmem:[%s1 + $0x3b0] sm:$0xf]
    %v253 = vld [vmem:[%s1 + $0x3b4] sm:$0xf]
    %v254 = vld [vmem:[%s1 + $0x3b8] sm:$0xf]
    %v255 = vld [vmem:[%s1 + $0x3bc] sm:$0xf]
    %v256 = vld [vmem:[%s1 + $0x3c0] sm:$0xf]
    %v257 = vld [vmem:[%s1 + $0x3c4] sm:$0xf]
    %v258 = vld [vmem:[%s1 + $0x3c8] sm:$0xf]
    %v259 = vld [vmem:[%s1 + $0x3cc] sm:$0xf]
    %v260 = vld [vmem:[%s1 + $0x3d0] sm:$0xf]
    %v261 = vld [vmem:[%s1 + $0x3d4] sm:$0xf]
    %v262 = vld [vmem:[%s1 + $0x3d8] sm:$0xf]
    %v263 = vld [vmem:[%s1 + $0x3dc] sm:$0xf]
    %v264 = vld [vmem:[%s1 + $0x3e0] sm:$0xf]
    %v265 = vld [vmem:[%s1 + $0x3e4] sm:$0xf]
    %v266 = vld [vmem:[%s1 + $0x3e8] sm:$0xf]
    %v267 = vld [vmem:[%s1 + $0x3ec] sm:$0xf]
    %v268 = vld [vmem:[%s1 + $0x3f0] sm:$0xf]
    %v269 = vld [vmem:[%s1 + $0x3f4] sm:$0xf]
    %v270 = vld [vmem:[%s1 + $0x3f8] sm:$0xf]
    %v271 = vld [vmem:[%s1 + $0x3fc] sm:$0xf]
    %v272 = vld [vmem:[%s2] sm:$0xff]
    %v273 = vld [vmem:[%s2 + $0x8] sm:$0xff]
    %v274 = vld [vmem:[%s0] sm:$0xf]
    %v275 = vld [vmem:[%s0 + $0x4] sm:$0xf]
    %v276 = vld [vmem:[%s0 + $0x8] sm:$0xf]
    %v277 = vld [vmem:[%s0 + $0xc] sm:$0xf]
    %v278 = vld [vmem:[%s0 + $0x10] sm:$0xf]
    %v279 = vld [vmem:[%s0 + $0x14] sm:$0xf]
    %v280 = vld [vmem:[%s0 + $0x18] sm:$0xf]
    %v281 = vld [vmem:[%s0 + $0x1c] sm:$0xf]
    %v282 = vld [vmem:[%s0 + $0x20] sm:$0xf]
    %v283 = vld [vmem:[%s0 + $0x24] sm:$0xf]
    %v284 = vld [vmem:[%s0 + $0x28] sm:$0xf]
    %v285 = vld [vmem:[%s0 + $0x2c] sm:$0xf]
    %v286 = vld [vmem:[%s0 + $0x30] sm:$0xf]
    %v287 = vld [vmem:[%s0 + $0x34] sm:$0xf]
    %v288 = vld [vmem:[%s0 + $0x38] sm:$0xf]
    %v289 = vld [vmem:[%s0 + $0x3c] sm:$0xf]
    %v290 = vld [vmem:[%s0 + $0x40] sm:$0xf]
    %v291 = vld [vmem:[%s0 + $0x44] sm:$0xf]
    %v292 = vld [vmem:[%s0 + $0x48] sm:$0xf]
    %v293 = vld [vmem:[%s0 + $0x4c] sm:$0xf]
    %v294 = vld [vmem:[%s0 + $0x50] sm:$0xf]
    %v295 = vld [vmem:[%s0 + $0x54] sm:$0xf]
    %v296 = vld [vmem:[%s0 + $0x58] sm:$0xf]
    %v297 = vld [vmem:[%s0 + $0x5c] sm:$0xf]
    %v298 = vld [vmem:[%s0 + $0x60] sm:$0xf]
    %v299 = vld [vmem:[%s0 + $0x64] sm:$0xf]
    %v300 = vld [vmem:[%s0 + $0x68] sm:$0xf]
    %v301 = vld [vmem:[%s0 + $0x6c] sm:$0xf]
    %v302 = vld [vmem:[%s0 + $0x70] sm:$0xf]
    %v303 = vld [vmem:[%s0 + $0x74] sm:$0xf]
    %v304 = vld [vmem:[%s0 + $0x78] sm:$0xf]
    %v305 = vld [vmem:[%s0 + $0x7c] sm:$0xf]
    %v306 = vld [vmem:[%s0 + $0x80] sm:$0xf]
    %v307 = vld [vmem:[%s0 + $0x84] sm:$0xf]
    %v308 = vld [vmem:[%s0 + $0x88] sm:$0xf]
    %v309 = vld [vmem:[%s0 + $0x8c] sm:$0xf]
    %v310 = vld [vmem:[%s0 + $0x90] sm:$0xf]
    %v311 = vld [vmem:[%s0 + $0x94] sm:$0xf]
    %v312 = vld [vmem:[%s0 + $0x98] sm:$0xf]
    %v313 = vld [vmem:[%s0 + $0x9c] sm:$0xf]
    %v314 = vld [vmem:[%s0 + $0xa0] sm:$0xf]
    %v315 = vld [vmem:[%s0 + $0xa4] sm:$0xf]
    %v316 = vld [vmem:[%s0 + $0xa8] sm:$0xf]
    %v317 = vld [vmem:[%s0 + $0xac] sm:$0xf]
    %v318 = vld [vmem:[%s0 + $0xb0] sm:$0xf]
    %v319 = vld [vmem:[%s0 + $0xb4] sm:$0xf]
    %v320 = vld [vmem:[%s0 + $0xb8] sm:$0xf]
    %v321 = vld [vmem:[%s0 + $0xbc] sm:$0xf]
    %v322 = vld [vmem:[%s0 + $0xc0] sm:$0xf]
    %v323 = vld [vmem:[%s0 + $0xc4] sm:$0xf]
    %v324 = vld [vmem:[%s0 + $0xc8] sm:$0xf]
    %v325 = vld [vmem:[%s0 + $0xcc] sm:$0xf]
    %v326 = vld [vmem:[%s0 + $0xd0] sm:$0xf]
    %v327 = vld [vmem:[%s0 + $0xd4] sm:$0xf]
    %v328 = vld [vmem:[%s0 + $0xd8] sm:$0xf]
    %v329 = vld [vmem:[%s0 + $0xdc] sm:$0xf]
    %v330 = vld [vmem:[%s0 + $0xe0] sm:$0xf]
    %v331 = vld [vmem:[%s0 + $0xe4] sm:$0xf]
    %v332 = vld [vmem:[%s0 + $0xe8] sm:$0xf]
    %v333 = vld [vmem:[%s0 + $0xec] sm:$0xf]
    %v334 = vld [vmem:[%s0 + $0xf0] sm:$0xf]
    %v335 = vld [vmem:[%s0 + $0xf4] sm:$0xf]
    %v336 = vld [vmem:[%s0 + $0xf8] sm:$0xf]
    %v337 = vld [vmem:[%s0 + $0xfc] sm:$0xf]
    %v338 = vld [vmem:[%s0 + $0x100] sm:$0xf]
    %v339 = vld [vmem:[%s0 + $0x104] sm:$0xf]
    %v340 = vld [vmem:[%s0 + $0x108] sm:$0xf]
    %v341 = vld [vmem:[%s0 + $0x10c] sm:$0xf]
    %v342 = vld [vmem:[%s0 + $0x110] sm:$0xf]
    %v343 = vld [vmem:[%s0 + $0x114] sm:$0xf]
    %v344 = vld [vmem:[%s0 + $0x118] sm:$0xf]
    %v345 = vld [vmem:[%s0 + $0x11c] sm:$0xf]
    %v346 = vld [vmem:[%s0 + $0x120] sm:$0xf]
    %v347 = vld [vmem:[%s0 + $0x124] sm:$0xf]
    %v348 = vld [vmem:[%s0 + $0x128] sm:$0xf]
    %v349 = vld [vmem:[%s0 + $0x12c] sm:$0xf]
    %v350 = vld [vmem:[%s0 + $0x130] sm:$0xf]
    %v351 = vld [vmem:[%s0 + $0x134] sm:$0xf]
    %v352 = vld [vmem:[%s0 + $0x138] sm:$0xf]
    %v353 = vld [vmem:[%s0 + $0x13c] sm:$0xf]
    %v354 = vld [vmem:[%s0 + $0x140] sm:$0xf]
    %v355 = vld [vmem:[%s0 + $0x144] sm:$0xf]
    %v356 = vld [vmem:[%s0 + $0x148] sm:$0xf]
    %v357 = vld [vmem:[%s0 + $0x14c] sm:$0xf]
    %v358 = vld [vmem:[%s0 + $0x150] sm:$0xf]
    %v359 = vld [vmem:[%s0 + $0x154] sm:$0xf]
    %v360 = vld [vmem:[%s0 + $0x158] sm:$0xf]
    %v361 = vld [vmem:[%s0 + $0x15c] sm:$0xf]
    %v362 = vld [vmem:[%s0 + $0x160] sm:$0xf]
    %v363 = vld [vmem:[%s0 + $0x164] sm:$0xf]
    %v364 = vld [vmem:[%s0 + $0x168] sm:$0xf]
    %v365 = vld [vmem:[%s0 + $0x16c] sm:$0xf]
    %v366 = vld [vmem:[%s0 + $0x170] sm:$0xf]
    %v367 = vld [vmem:[%s0 + $0x174] sm:$0xf]
    %v368 = vld [vmem:[%s0 + $0x178] sm:$0xf]
    %v369 = vld [vmem:[%s0 + $0x17c] sm:$0xf]
    %v370 = vld [vmem:[%s0 + $0x180] sm:$0xf]
    %v371 = vld [vmem:[%s0 + $0x184] sm:$0xf]
    %v372 = vld [vmem:[%s0 + $0x188] sm:$0xf]
    %v373 = vld [vmem:[%s0 + $0x18c] sm:$0xf]
    %v374 = vld [vmem:[%s0 + $0x190] sm:$0xf]
    %v375 = vld [vmem:[%s0 + $0x194] sm:$0xf]
    %v376 = vld [vmem:[%s0 + $0x198] sm:$0xf]
    %v377 = vld [vmem:[%s0 + $0x19c] sm:$0xf]
    %v378 = vld [vmem:[%s0 + $0x1a0] sm:$0xf]
    %v379 = vld [vmem:[%s0 + $0x1a4] sm:$0xf]
    %v380 = vld [vmem:[%s0 + $0x1a8] sm:$0xf]
    %v381 = vld [vmem:[%s0 + $0x1ac] sm:$0xf]
    %v382 = vld [vmem:[%s0 + $0x1b0] sm:$0xf]
    %v383 = vld [vmem:[%s0 + $0x1b4] sm:$0xf]
    %v384 = vld [vmem:[%s0 + $0x1b8] sm:$0xf]
    %v385 = vld [vmem:[%s0 + $0x1bc] sm:$0xf]
    %v386 = vld [vmem:[%s0 + $0x1c0] sm:$0xf]
    %v387 = vld [vmem:[%s0 + $0x1c4] sm:$0xf]
    %v388 = vld [vmem:[%s0 + $0x1c8] sm:$0xf]
    %v389 = vld [vmem:[%s0 + $0x1cc] sm:$0xf]
    %v390 = vld [vmem:[%s0 + $0x1d0] sm:$0xf]
    %v391 = vld [vmem:[%s0 + $0x1d4] sm:$0xf]
    %v392 = vld [vmem:[%s0 + $0x1d8] sm:$0xf]
    %v393 = vld [vmem:[%s0 + $0x1dc] sm:$0xf]
    %v394 = vld [vmem:[%s0 + $0x1e0] sm:$0xf]
    %v395 = vld [vmem:[%s0 + $0x1e4] sm:$0xf]
    %v396 = vld [vmem:[%s0 + $0x1e8] sm:$0xf]
    %v397 = vld [vmem:[%s0 + $0x1ec] sm:$0xf]
    %v398 = vld [vmem:[%s0 + $0x1f0] sm:$0xf]
    %v399 = vld [vmem:[%s0 + $0x1f4] sm:$0xf]
    %v400 = vld [vmem:[%s0 + $0x1f8] sm:$0xf]
    %v401 = vld [vmem:[%s0 + $0x1fc] sm:$0xf]
    %v402 = vld [vmem:[%s0 + $0x200] sm:$0xf]
    %v403 = vld [vmem:[%s0 + $0x204] sm:$0xf]
    %v404 = vld [vmem:[%s0 + $0x208] sm:$0xf]
    %v405 = vld [vmem:[%s0 + $0x20c] sm:$0xf]
    %v406 = vld [vmem:[%s0 + $0x210] sm:$0xf]
    %v407 = vld [vmem:[%s0 + $0x214] sm:$0xf]
    %v408 = vld [vmem:[%s0 + $0x218] sm:$0xf]
    %v409 = vld [vmem:[%s0 + $0x21c] sm:$0xf]
    %v410 = vld [vmem:[%s0 + $0x220] sm:$0xf]
    %v411 = vld [vmem:[%s0 + $0x224] sm:$0xf]
    %v412 = vld [vmem:[%s0 + $0x228] sm:$0xf]
    %v413 = vld [vmem:[%s0 + $0x22c] sm:$0xf]
    %v414 = vld [vmem:[%s0 + $0x230] sm:$0xf]
    %v415 = vld [vmem:[%s0 + $0x234] sm:$0xf]
    %v416 = vld [vmem:[%s0 + $0x238] sm:$0xf]
    %v417 = vld [vmem:[%s0 + $0x23c] sm:$0xf]
    %v418 = vld [vmem:[%s0 + $0x240] sm:$0xf]
    %v419 = vld [vmem:[%s0 + $0x244] sm:$0xf]
    %v420 = vld [vmem:[%s0 + $0x248] sm:$0xf]
    %v421 = vld [vmem:[%s0 + $0x24c] sm:$0xf]
    %v422 = vld [vmem:[%s0 + $0x250] sm:$0xf]
    %v423 = vld [vmem:[%s0 + $0x254] sm:$0xf]
    %v424 = vld [vmem:[%s0 + $0x258] sm:$0xf]
    %v425 = vld [vmem:[%s0 + $0x25c] sm:$0xf]
    %v426 = vld [vmem:[%s0 + $0x260] sm:$0xf]
    %v427 = vld [vmem:[%s0 + $0x264] sm:$0xf]
    %v428 = vld [vmem:[%s0 + $0x268] sm:$0xf]
    %v429 = vld [vmem:[%s0 + $0x26c] sm:$0xf]
    %v430 = vld [vmem:[%s0 + $0x270] sm:$0xf]
    %v431 = vld [vmem:[%s0 + $0x274] sm:$0xf]
    %v432 = vld [vmem:[%s0 + $0x278] sm:$0xf]
    %v433 = vld [vmem:[%s0 + $0x27c] sm:$0xf]
    %v434 = vld [vmem:[%s0 + $0x280] sm:$0xf]
    %v435 = vld [vmem:[%s0 + $0x284] sm:$0xf]
    %v436 = vld [vmem:[%s0 + $0x288] sm:$0xf]
    %v437 = vld [vmem:[%s0 + $0x28c] sm:$0xf]
    %v438 = vld [vmem:[%s0 + $0x290] sm:$0xf]
    %v439 = vld [vmem:[%s0 + $0x294] sm:$0xf]
    %v440 = vld [vmem:[%s0 + $0x298] sm:$0xf]
    %v441 = vld [vmem:[%s0 + $0x29c] sm:$0xf]
    %v442 = vld [vmem:[%s0 + $0x2a0] sm:$0xf]
    %v443 = vld [vmem:[%s0 + $0x2a4] sm:$0xf]
    %v444 = vld [vmem:[%s0 + $0x2a8] sm:$0xf]
    %v445 = vld [vmem:[%s0 + $0x2ac] sm:$0xf]
    %v446 = vld [vmem:[%s0 + $0x2b0] sm:$0xf]
    %v447 = vld [vmem:[%s0 + $0x2b4] sm:$0xf]
    %v448 = vld [vmem:[%s0 + $0x2b8] sm:$0xf]
    %v449 = vld [vmem:[%s0 + $0x2bc] sm:$0xf]
    %v450 = vld [vmem:[%s0 + $0x2c0] sm:$0xf]
    %v451 = vld [vmem:[%s0 + $0x2c4] sm:$0xf]
    %v452 = vld [vmem:[%s0 + $0x2c8] sm:$0xf]
    %v453 = vld [vmem:[%s0 + $0x2cc] sm:$0xf]
    %v454 = vld [vmem:[%s0 + $0x2d0] sm:$0xf]
    %v455 = vld [vmem:[%s0 + $0x2d4] sm:$0xf]
    %v456 = vld [vmem:[%s0 + $0x2d8] sm:$0xf]
    %v457 = vld [vmem:[%s0 + $0x2dc] sm:$0xf]
    %v458 = vld [vmem:[%s0 + $0x2e0] sm:$0xf]
    %v459 = vld [vmem:[%s0 + $0x2e4] sm:$0xf]
    %v460 = vld [vmem:[%s0 + $0x2e8] sm:$0xf]
    %v461 = vld [vmem:[%s0 + $0x2ec] sm:$0xf]
    %v462 = vld [vmem:[%s0 + $0x2f0] sm:$0xf]
    %v463 = vld [vmem:[%s0 + $0x2f4] sm:$0xf]
    %v464 = vld [vmem:[%s0 + $0x2f8] sm:$0xf]
    %v465 = vld [vmem:[%s0 + $0x2fc] sm:$0xf]
    %v466 = vld [vmem:[%s0 + $0x300] sm:$0xf]
    %v467 = vld [vmem:[%s0 + $0x304] sm:$0xf]
    %v468 = vld [vmem:[%s0 + $0x308] sm:$0xf]
    %v469 = vld [vmem:[%s0 + $0x30c] sm:$0xf]
    %v470 = vld [vmem:[%s0 + $0x310] sm:$0xf]
    %v471 = vld [vmem:[%s0 + $0x314] sm:$0xf]
    %v472 = vld [vmem:[%s0 + $0x318] sm:$0xf]
    %v473 = vld [vmem:[%s0 + $0x31c] sm:$0xf]
    %v474 = vld [vmem:[%s0 + $0x320] sm:$0xf]
    %v475 = vld [vmem:[%s0 + $0x324] sm:$0xf]
    %v476 = vld [vmem:[%s0 + $0x328] sm:$0xf]
    %v477 = vld [vmem:[%s0 + $0x32c] sm:$0xf]
    %v478 = vld [vmem:[%s0 + $0x330] sm:$0xf]
    %v479 = vld [vmem:[%s0 + $0x334] sm:$0xf]
    %v480 = vld [vmem:[%s0 + $0x338] sm:$0xf]
    %v481 = vld [vmem:[%s0 + $0x33c] sm:$0xf]
    %v482 = vld [vmem:[%s0 + $0x340] sm:$0xf]
    %v483 = vld [vmem:[%s0 + $0x344] sm:$0xf]
    %v484 = vld [vmem:[%s0 + $0x348] sm:$0xf]
    %v485 = vld [vmem:[%s0 + $0x34c] sm:$0xf]
    %v486 = vld [vmem:[%s0 + $0x350] sm:$0xf]
    %v487 = vld [vmem:[%s0 + $0x354] sm:$0xf]
    %v488 = vld [vmem:[%s0 + $0x358] sm:$0xf]
    %v489 = vld [vmem:[%s0 + $0x35c] sm:$0xf]
    %v490 = vld [vmem:[%s0 + $0x360] sm:$0xf]
    %v491 = vld [vmem:[%s0 + $0x364] sm:$0xf]
    %v492 = vld [vmem:[%s0 + $0x368] sm:$0xf]
    %v493 = vld [vmem:[%s0 + $0x36c] sm:$0xf]
    %v494 = vld [vmem:[%s0 + $0x370] sm:$0xf]
    %v495 = vld [vmem:[%s0 + $0x374] sm:$0xf]
    %v496 = vld [vmem:[%s0 + $0x378] sm:$0xf]
    %v497 = vld [vmem:[%s0 + $0x37c] sm:$0xf]
    %v498 = vld [vmem:[%s0 + $0x380] sm:$0xf]
    %v499 = vld [vmem:[%s0 + $0x384] sm:$0xf]
    %v500 = vld [vmem:[%s0 + $0x388] sm:$0xf]
    %v501 = vld [vmem:[%s0 + $0x38c] sm:$0xf]
    %v502 = vld [vmem:[%s0 + $0x390] sm:$0xf]
    %v503 = vld [vmem:[%s0 + $0x394] sm:$0xf]
    %v504 = vld [vmem:[%s0 + $0x398] sm:$0xf]
    %v505 = vld [vmem:[%s0 + $0x39c] sm:$0xf]
    %v506 = vld [vmem:[%s0 + $0x3a0] sm:$0xf]
    %v507 = vld [vmem:[%s0 + $0x3a4] sm:$0xf]
    %v508 = vld [vmem:[%s0 + $0x3a8] sm:$0xf]
    %v509 = vld [vmem:[%s0 + $0x3ac] sm:$0xf]
    %v510 = vld [vmem:[%s0 + $0x3b0] sm:$0xf]
    %v511 = vld [vmem:[%s0 + $0x3b4] sm:$0xf]
    %v512 = vld [vmem:[%s0 + $0x3b8] sm:$0xf]
    %v513 = vld [vmem:[%s0 + $0x3bc] sm:$0xf]
    %v514 = vld [vmem:[%s0 + $0x3c0] sm:$0xf]
    %v515 = vld [vmem:[%s0 + $0x3c4] sm:$0xf]
    %v516 = vld [vmem:[%s0 + $0x3c8] sm:$0xf]
    %v517 = vld [vmem:[%s0 + $0x3cc] sm:$0xf]
    %v518 = vld [vmem:[%s0 + $0x3d0] sm:$0xf]
    %v519 = vld [vmem:[%s0 + $0x3d4] sm:$0xf]
    %v520 = vld [vmem:[%s0 + $0x3d8] sm:$0xf]
    %v521 = vld [vmem:[%s0 + $0x3dc] sm:$0xf]
    %v522 = vld [vmem:[%s0 + $0x3e0] sm:$0xf]
    %v523 = vld [vmem:[%s0 + $0x3e4] sm:$0xf]
    %v524 = vld [vmem:[%s0 + $0x3e8] sm:$0xf]
    %v525 = vld [vmem:[%s0 + $0x3ec] sm:$0xf]
    %v526 = vld [vmem:[%s0 + $0x3f0] sm:$0xf]
    %v527 = vld [vmem:[%s0 + $0x3f4] sm:$0xf]
    %v528 = vld [vmem:[%s0 + $0x3f8] sm:$0xf]
    %v529 = vld [vmem:[%s0 + $0x3fc] sm:$0xf]
    %v786 = vunpack.c.l.b16 %v274
    %v787 = vunpack.c.l.b16 %v275
    %v788 = vunpack.c.l.b16 %v276
    %v789 = vunpack.c.l.b16 %v277
    %v790 = vunpack.c.l.b16 %v278
    %v791 = vunpack.c.l.b16 %v279
    %v792 = vunpack.c.l.b16 %v280
    %v793 = vunpack.c.l.b16 %v281
    %v794 = vunpack.c.l.b16 %v282
    %v795 = vunpack.c.l.b16 %v283
    %v796 = vunpack.c.l.b16 %v284
    %v797 = vunpack.c.l.b16 %v285
    %v798 = vunpack.c.l.b16 %v286
    %v799 = vunpack.c.l.b16 %v287
    %v800 = vunpack.c.l.b16 %v288
    %v801 = vunpack.c.l.b16 %v289
    %v802 = vunpack.c.l.b16 %v290
    %v803 = vunpack.c.l.b16 %v291
    %v804 = vunpack.c.l.b16 %v292
    %v805 = vunpack.c.l.b16 %v293
    %v806 = vunpack.c.l.b16 %v294
    %v807 = vunpack.c.l.b16 %v295
    %v808 = vunpack.c.l.b16 %v296
    %v809 = vunpack.c.l.b16 %v297
    %v810 = vunpack.c.l.b16 %v298
    %v811 = vunpack.c.l.b16 %v299
    %v812 = vunpack.c.l.b16 %v300
    %v813 = vunpack.c.l.b16 %v301
    %v814 = vunpack.c.l.b16 %v302
    %v815 = vunpack.c.l.b16 %v303
    %v816 = vunpack.c.l.b16 %v304
    %v817 = vunpack.c.l.b16 %v305
    %v818 = vunpack.c.l.b16 %v306
    %v819 = vunpack.c.l.b16 %v307
    %v820 = vunpack.c.l.b16 %v308
    %v821 = vunpack.c.l.b16 %v309
    %v822 = vunpack.c.l.b16 %v310
    %v823 = vunpack.c.l.b16 %v311
    %v824 = vunpack.c.l.b16 %v312
    %v825 = vunpack.c.l.b16 %v313
    %v826 = vunpack.c.l.b16 %v314
    %v827 = vunpack.c.l.b16 %v315
    %v828 = vunpack.c.l.b16 %v316
    %v829 = vunpack.c.l.b16 %v317
    %v830 = vunpack.c.l.b16 %v318
    %v831 = vunpack.c.l.b16 %v319
    %v832 = vunpack.c.l.b16 %v320
    %v833 = vunpack.c.l.b16 %v321
    %v834 = vunpack.c.l.b16 %v322
    %v835 = vunpack.c.l.b16 %v323
    %v836 = vunpack.c.l.b16 %v324
    %v837 = vunpack.c.l.b16 %v325
    %v838 = vunpack.c.l.b16 %v326
    %v839 = vunpack.c.l.b16 %v327
    %v840 = vunpack.c.l.b16 %v328
    %v841 = vunpack.c.l.b16 %v329
    %v842 = vunpack.c.l.b16 %v330
    %v843 = vunpack.c.l.b16 %v331
    %v844 = vunpack.c.l.b16 %v332
    %v845 = vunpack.c.l.b16 %v333
    %v846 = vunpack.c.l.b16 %v334
    %v847 = vunpack.c.l.b16 %v335
    %v848 = vunpack.c.l.b16 %v336
    %v849 = vunpack.c.l.b16 %v337
    %v850 = vunpack.c.l.b16 %v338
    %v851 = vunpack.c.l.b16 %v339
    %v852 = vunpack.c.l.b16 %v340
    %v853 = vunpack.c.l.b16 %v341
    %v854 = vunpack.c.l.b16 %v342
    %v855 = vunpack.c.l.b16 %v343
    %v856 = vunpack.c.l.b16 %v344
    %v857 = vunpack.c.l.b16 %v345
    %v858 = vunpack.c.l.b16 %v346
    %v859 = vunpack.c.l.b16 %v347
    %v860 = vunpack.c.l.b16 %v348
    %v861 = vunpack.c.l.b16 %v349
    %v862 = vunpack.c.l.b16 %v350
    %v863 = vunpack.c.l.b16 %v351
    %v864 = vunpack.c.l.b16 %v352
    %v865 = vunpack.c.l.b16 %v353
    %v866 = vunpack.c.l.b16 %v354
    %v867 = vunpack.c.l.b16 %v355
    %v868 = vunpack.c.l.b16 %v356
    %v869 = vunpack.c.l.b16 %v357
    %v870 = vunpack.c.l.b16 %v358
    %v871 = vunpack.c.l.b16 %v359
    %v872 = vunpack.c.l.b16 %v360
    %v873 = vunpack.c.l.b16 %v361
    %v874 = vunpack.c.l.b16 %v362
    %v875 = vunpack.c.l.b16 %v363
    %v876 = vunpack.c.l.b16 %v364
    %v877 = vunpack.c.l.b16 %v365
    %v878 = vunpack.c.l.b16 %v366
    %v879 = vunpack.c.l.b16 %v367
    %v880 = vunpack.c.l.b16 %v368
    %v881 = vunpack.c.l.b16 %v369
    %v882 = vunpack.c.l.b16 %v370
    %v883 = vunpack.c.l.b16 %v371
    %v884 = vunpack.c.l.b16 %v372
    %v885 = vunpack.c.l.b16 %v373
    %v886 = vunpack.c.l.b16 %v374
    %v887 = vunpack.c.l.b16 %v375
    %v888 = vunpack.c.l.b16 %v376
    %v889 = vunpack.c.l.b16 %v377
    %v890 = vunpack.c.l.b16 %v378
    %v891 = vunpack.c.l.b16 %v379
    %v892 = vunpack.c.l.b16 %v380
    %v893 = vunpack.c.l.b16 %v381
    %v894 = vunpack.c.l.b16 %v382
    %v895 = vunpack.c.l.b16 %v383
    %v896 = vunpack.c.l.b16 %v384
    %v897 = vunpack.c.l.b16 %v385
    %v898 = vunpack.c.l.b16 %v386
    %v899 = vunpack.c.l.b16 %v387
    %v900 = vunpack.c.l.b16 %v388
    %v901 = vunpack.c.l.b16 %v389
    %v902 = vunpack.c.l.b16 %v390
    %v903 = vunpack.c.l.b16 %v391
    %v904 = vunpack.c.l.b16 %v392
    %v905 = vunpack.c.l.b16 %v393
    %v906 = vunpack.c.l.b16 %v394
    %v907 = vunpack.c.l.b16 %v395
    %v908 = vunpack.c.l.b16 %v396
    %v909 = vunpack.c.l.b16 %v397
    %v910 = vunpack.c.l.b16 %v398
    %v911 = vunpack.c.l.b16 %v399
    %v912 = vunpack.c.l.b16 %v400
    %v913 = vunpack.c.l.b16 %v401
    %v914 = vunpack.c.l.b16 %v402
    %v915 = vunpack.c.l.b16 %v403
    %v916 = vunpack.c.l.b16 %v404
    %v917 = vunpack.c.l.b16 %v405
    %v918 = vunpack.c.l.b16 %v406
    %v919 = vunpack.c.l.b16 %v407
    %v920 = vunpack.c.l.b16 %v408
    %v921 = vunpack.c.l.b16 %v409
    %v922 = vunpack.c.l.b16 %v410
    %v923 = vunpack.c.l.b16 %v411
    %v924 = vunpack.c.l.b16 %v412
    %v925 = vunpack.c.l.b16 %v413
    %v926 = vunpack.c.l.b16 %v414
    %v927 = vunpack.c.l.b16 %v415
    %v928 = vunpack.c.l.b16 %v416
    %v929 = vunpack.c.l.b16 %v417
    %v930 = vunpack.c.l.b16 %v418
    %v931 = vunpack.c.l.b16 %v419
    %v932 = vunpack.c.l.b16 %v420
    %v933 = vunpack.c.l.b16 %v421
    %v934 = vunpack.c.l.b16 %v422
    %v935 = vunpack.c.l.b16 %v423
    %v936 = vunpack.c.l.b16 %v424
    %v937 = vunpack.c.l.b16 %v425
    %v938 = vunpack.c.l.b16 %v426
    %v939 = vunpack.c.l.b16 %v427
    %v940 = vunpack.c.l.b16 %v428
    %v941 = vunpack.c.l.b16 %v429
    %v942 = vunpack.c.l.b16 %v430
    %v943 = vunpack.c.l.b16 %v431
    %v944 = vunpack.c.l.b16 %v432
    %v945 = vunpack.c.l.b16 %v433
    %v946 = vunpack.c.l.b16 %v434
    %v947 = vunpack.c.l.b16 %v435
    %v948 = vunpack.c.l.b16 %v436
    %v949 = vunpack.c.l.b16 %v437
    %v950 = vunpack.c.l.b16 %v438
    %v951 = vunpack.c.l.b16 %v439
    %v952 = vunpack.c.l.b16 %v440
    %v953 = vunpack.c.l.b16 %v441
    %v954 = vunpack.c.l.b16 %v442
    %v955 = vunpack.c.l.b16 %v443
    %v956 = vunpack.c.l.b16 %v444
    %v957 = vunpack.c.l.b16 %v445
    %v958 = vunpack.c.l.b16 %v446
    %v959 = vunpack.c.l.b16 %v447
    %v960 = vunpack.c.l.b16 %v448
    %v961 = vunpack.c.l.b16 %v449
    %v962 = vunpack.c.l.b16 %v450
    %v963 = vunpack.c.l.b16 %v451
    %v964 = vunpack.c.l.b16 %v452
    %v965 = vunpack.c.l.b16 %v453
    %v966 = vunpack.c.l.b16 %v454
    %v967 = vunpack.c.l.b16 %v455
    %v968 = vunpack.c.l.b16 %v456
    %v969 = vunpack.c.l.b16 %v457
    %v970 = vunpack.c.l.b16 %v458
    %v971 = vunpack.c.l.b16 %v459
    %v972 = vunpack.c.l.b16 %v460
    %v973 = vunpack.c.l.b16 %v461
    %v974 = vunpack.c.l.b16 %v462
    %v975 = vunpack.c.l.b16 %v463
    %v976 = vunpack.c.l.b16 %v464
    %v977 = vunpack.c.l.b16 %v465
    %v978 = vunpack.c.l.b16 %v466
    %v979 = vunpack.c.l.b16 %v467
    %v980 = vunpack.c.l.b16 %v468
    %v981 = vunpack.c.l.b16 %v469
    %v982 = vunpack.c.l.b16 %v470
    %v983 = vunpack.c.l.b16 %v471
    %v984 = vunpack.c.l.b16 %v472
    %v985 = vunpack.c.l.b16 %v473
    %v986 = vunpack.c.l.b16 %v474
    %v987 = vunpack.c.l.b16 %v475
    %v988 = vunpack.c.l.b16 %v476
    %v989 = vunpack.c.l.b16 %v477
    %v990 = vunpack.c.l.b16 %v478
    %v991 = vunpack.c.l.b16 %v479
    %v992 = vunpack.c.l.b16 %v480
    %v993 = vunpack.c.l.b16 %v481
    %v994 = vunpack.c.l.b16 %v482
    %v995 = vunpack.c.l.b16 %v483
    %v996 = vunpack.c.l.b16 %v484
    %v997 = vunpack.c.l.b16 %v485
    %v998 = vunpack.c.l.b16 %v486
    %v999 = vunpack.c.l.b16 %v487
    %v1000 = vunpack.c.l.b16 %v488
    %v1001 = vunpack.c.l.b16 %v489
    %v1002 = vunpack.c.l.b16 %v490
    %v1003 = vunpack.c.l.b16 %v491
    %v1004 = vunpack.c.l.b16 %v492
    %v1005 = vunpack.c.l.b16 %v493
    %v1006 = vunpack.c.l.b16 %v494
    %v1007 = vunpack.c.l.b16 %v495
    %v1008 = vunpack.c.l.b16 %v496
    %v1009 = vunpack.c.l.b16 %v497
    %v1010 = vunpack.c.l.b16 %v498
    %v1011 = vunpack.c.l.b16 %v499
    %v1012 = vunpack.c.l.b16 %v500
    %v1013 = vunpack.c.l.b16 %v501
    %v1014 = vunpack.c.l.b16 %v502
    %v1015 = vunpack.c.l.b16 %v503
    %v1016 = vunpack.c.l.b16 %v504
    %v1017 = vunpack.c.l.b16 %v505
    %v1018 = vunpack.c.l.b16 %v506
    %v1019 = vunpack.c.l.b16 %v507
    %v1020 = vunpack.c.l.b16 %v508
    %v1021 = vunpack.c.l.b16 %v509
    %v1022 = vunpack.c.l.b16 %v510
    %v1023 = vunpack.c.l.b16 %v511
    %v1024 = vunpack.c.l.b16 %v512
    %v1025 = vunpack.c.l.b16 %v513
    %v1026 = vunpack.c.l.b16 %v514
    %v1027 = vunpack.c.l.b16 %v515
    %v1028 = vunpack.c.l.b16 %v516
    %v1029 = vunpack.c.l.b16 %v517
    %v1030 = vunpack.c.l.b16 %v518
    %v1031 = vunpack.c.l.b16 %v519
    %v1032 = vunpack.c.l.b16 %v520
    %v1033 = vunpack.c.l.b16 %v521
    %v1034 = vunpack.c.l.b16 %v522
    %v1035 = vunpack.c.l.b16 %v523
    %v1036 = vunpack.c.l.b16 %v524
    %v1037 = vunpack.c.l.b16 %v525
    %v1038 = vunpack.c.l.b16 %v526
    %v1039 = vunpack.c.l.b16 %v527
    %v1040 = vunpack.c.l.b16 %v528
    %v1041 = vunpack.c.l.b16 %v529
    %v1042 = vpack.c.b16 %v787, %v786
    %v1043 = vpack.c.b16 %v789, %v788
    %v1044 = vpack.c.b16 %v791, %v790
    %v1045 = vpack.c.b16 %v793, %v792
    %v1046 = vpack.c.b16 %v795, %v794
    %v1047 = vpack.c.b16 %v797, %v796
    %v1048 = vpack.c.b16 %v799, %v798
    %v1049 = vpack.c.b16 %v801, %v800
    %v1050 = vpack.c.b16 %v803, %v802
    %v1051 = vpack.c.b16 %v805, %v804
    %v1052 = vpack.c.b16 %v807, %v806
    %v1053 = vpack.c.b16 %v809, %v808
    %v1054 = vpack.c.b16 %v811, %v810
    %v1055 = vpack.c.b16 %v813, %v812
    %v1056 = vpack.c.b16 %v815, %v814
    %v1057 = vpack.c.b16 %v817, %v816
    %v1058 = vpack.c.b16 %v819, %v818
    %v1059 = vpack.c.b16 %v821, %v820
    %v1060 = vpack.c.b16 %v823, %v822
    %v1061 = vpack.c.b16 %v825, %v824
    %v1062 = vpack.c.b16 %v827, %v826
    %v1063 = vpack.c.b16 %v829, %v828
    %v1064 = vpack.c.b16 %v831, %v830
    %v1065 = vpack.c.b16 %v833, %v832
    %v1066 = vpack.c.b16 %v835, %v834
    %v1067 = vpack.c.b16 %v837, %v836
    %v1068 = vpack.c.b16 %v839, %v838
    %v1069 = vpack.c.b16 %v841, %v840
    %v1070 = vpack.c.b16 %v843, %v842
    %v1071 = vpack.c.b16 %v845, %v844
    %v1072 = vpack.c.b16 %v847, %v846
    %v1073 = vpack.c.b16 %v849, %v848
    %v1074 = vpack.c.b16 %v851, %v850
    %v1075 = vpack.c.b16 %v853, %v852
    %v1076 = vpack.c.b16 %v855, %v854
    %v1077 = vpack.c.b16 %v857, %v856
    %v1078 = vpack.c.b16 %v859, %v858
    %v1079 = vpack.c.b16 %v861, %v860
    %v1080 = vpack.c.b16 %v863, %v862
    %v1081 = vpack.c.b16 %v865, %v864
    %v1082 = vpack.c.b16 %v867, %v866
    %v1083 = vpack.c.b16 %v869, %v868
    %v1084 = vpack.c.b16 %v871, %v870
    %v1085 = vpack.c.b16 %v873, %v872
    %v1086 = vpack.c.b16 %v875, %v874
    %v1087 = vpack.c.b16 %v877, %v876
    %v1088 = vpack.c.b16 %v879, %v878
    %v1089 = vpack.c.b16 %v881, %v880
    %v1090 = vpack.c.b16 %v883, %v882
    %v1091 = vpack.c.b16 %v885, %v884
    %v1092 = vpack.c.b16 %v887, %v886
    %v1093 = vpack.c.b16 %v889, %v888
    %v1094 = vpack.c.b16 %v891, %v890
    %v1095 = vpack.c.b16 %v893, %v892
    %v1096 = vpack.c.b16 %v895, %v894
    %v1097 = vpack.c.b16 %v897, %v896
    %v1098 = vpack.c.b16 %v899, %v898
    %v1099 = vpack.c.b16 %v901, %v900
    %v1100 = vpack.c.b16 %v903, %v902
    %v1101 = vpack.c.b16 %v905, %v904
    %v1102 = vpack.c.b16 %v907, %v906
    %v1103 = vpack.c.b16 %v909, %v908
    %v1104 = vpack.c.b16 %v911, %v910
    %v1105 = vpack.c.b16 %v913, %v912
    %v1106 = vpack.c.b16 %v915, %v914
    %v1107 = vpack.c.b16 %v917, %v916
    %v1108 = vpack.c.b16 %v919, %v918
    %v1109 = vpack.c.b16 %v921, %v920
    %v1110 = vpack.c.b16 %v923, %v922
    %v1111 = vpack.c.b16 %v925, %v924
    %v1112 = vpack.c.b16 %v927, %v926
    %v1113 = vpack.c.b16 %v929, %v928
    %v1114 = vpack.c.b16 %v931, %v930
    %v1115 = vpack.c.b16 %v933, %v932
    %v1116 = vpack.c.b16 %v935, %v934
    %v1117 = vpack.c.b16 %v937, %v936
    %v1118 = vpack.c.b16 %v939, %v938
    %v1119 = vpack.c.b16 %v941, %v940
    %v1120 = vpack.c.b16 %v943, %v942
    %v1121 = vpack.c.b16 %v945, %v944
    %v1122 = vpack.c.b16 %v947, %v946
    %v1123 = vpack.c.b16 %v949, %v948
    %v1124 = vpack.c.b16 %v951, %v950
    %v1125 = vpack.c.b16 %v953, %v952
    %v1126 = vpack.c.b16 %v955, %v954
    %v1127 = vpack.c.b16 %v957, %v956
    %v1128 = vpack.c.b16 %v959, %v958
    %v1129 = vpack.c.b16 %v961, %v960
    %v1130 = vpack.c.b16 %v963, %v962
    %v1131 = vpack.c.b16 %v965, %v964
    %v1132 = vpack.c.b16 %v967, %v966
    %v1133 = vpack.c.b16 %v969, %v968
    %v1134 = vpack.c.b16 %v971, %v970
    %v1135 = vpack.c.b16 %v973, %v972
    %v1136 = vpack.c.b16 %v975, %v974
    %v1137 = vpack.c.b16 %v977, %v976
    %v1138 = vpack.c.b16 %v979, %v978
    %v1139 = vpack.c.b16 %v981, %v980
    %v1140 = vpack.c.b16 %v983, %v982
    %v1141 = vpack.c.b16 %v985, %v984
    %v1142 = vpack.c.b16 %v987, %v986
    %v1143 = vpack.c.b16 %v989, %v988
    %v1144 = vpack.c.b16 %v991, %v990
    %v1145 = vpack.c.b16 %v993, %v992
    %v1146 = vpack.c.b16 %v995, %v994
    %v1147 = vpack.c.b16 %v997, %v996
    %v1148 = vpack.c.b16 %v999, %v998
    %v1149 = vpack.c.b16 %v1001, %v1000
    %v1150 = vpack.c.b16 %v1003, %v1002
    %v1151 = vpack.c.b16 %v1005, %v1004
    %v1152 = vpack.c.b16 %v1007, %v1006
    %v1153 = vpack.c.b16 %v1009, %v1008
    %v1154 = vpack.c.b16 %v1011, %v1010
    %v1155 = vpack.c.b16 %v1013, %v1012
    %v1156 = vpack.c.b16 %v1015, %v1014
    %v1157 = vpack.c.b16 %v1017, %v1016
    %v1158 = vpack.c.b16 %v1019, %v1018
    %v1159 = vpack.c.b16 %v1021, %v1020
    %v1160 = vpack.c.b16 %v1023, %v1022
    %v1161 = vpack.c.b16 %v1025, %v1024
    %v1162 = vpack.c.b16 %v1027, %v1026
    %v1163 = vpack.c.b16 %v1029, %v1028
    %v1164 = vpack.c.b16 %v1031, %v1030
    %v1165 = vpack.c.b16 %v1033, %v1032
    %v1166 = vpack.c.b16 %v1035, %v1034
    %v1167 = vpack.c.b16 %v1037, %v1036
    %v1168 = vpack.c.b16 %v1039, %v1038
    %v1169 = vpack.c.b16 %v1041, %v1040
    %1298 = vxpose.xlu0.c.b16.start [1/8] %v1042, 128
    %1299 = vxpose.xlu0.c.b16.cont [2/8] %v1043, 128
    %1300 = vxpose.xlu0.c.b16.cont [3/8] %v1044, 128
    %1301 = vxpose.xlu0.c.b16.cont [4/8] %v1045, 128
    %1302 = vxpose.xlu0.c.b16.cont [5/8] %v1046, 128
    %1303 = vxpose.xlu0.c.b16.cont [6/8] %v1047, 128
    %1304 = vxpose.xlu0.c.b16.cont [7/8] %v1048, 128
    %1305 = vxpose.xlu0.c.b16.end [8/8] %v1049, 128
    %v1306 = vpop.trf.xlu0
    %v1307 = vpop.trf.xlu0
    %v1308 = vpop.trf.xlu0
    %v1309 = vpop.trf.xlu0
    %v1310 = vpop.trf.xlu0
    %v1311 = vpop.trf.xlu0
    %v1312 = vpop.trf.xlu0
    %v1313 = vpop.trf.xlu0
    %1314 = vxpose.xlu0.c.b16.start [1/8] %v1050, 128
    %1315 = vxpose.xlu0.c.b16.cont [2/8] %v1051, 128
    %1316 = vxpose.xlu0.c.b16.cont [3/8] %v1052, 128
    %1317 = vxpose.xlu0.c.b16.cont [4/8] %v1053, 128
    %1318 = vxpose.xlu0.c.b16.cont [5/8] %v1054, 128
    %1319 = vxpose.xlu0.c.b16.cont [6/8] %v1055, 128
    %1320 = vxpose.xlu0.c.b16.cont [7/8] %v1056, 128
    %1321 = vxpose.xlu0.c.b16.end [8/8] %v1057, 128
    %v1322 = vpop.trf.xlu0
    %v1323 = vpop.trf.xlu0
    %v1324 = vpop.trf.xlu0
    %v1325 = vpop.trf.xlu0
    %v1326 = vpop.trf.xlu0
    %v1327 = vpop.trf.xlu0
    %v1328 = vpop.trf.xlu0
    %v1329 = vpop.trf.xlu0
    %1330 = vxpose.xlu0.c.b16.start [1/8] %v1058, 128
    %1331 = vxpose.xlu0.c.b16.cont [2/8] %v1059, 128
    %1332 = vxpose.xlu0.c.b16.cont [3/8] %v1060, 128
    %1333 = vxpose.xlu0.c.b16.cont [4/8] %v1061, 128
    %1334 = vxpose.xlu0.c.b16.cont [5/8] %v1062, 128
    %1335 = vxpose.xlu0.c.b16.cont [6/8] %v1063, 128
    %1336 = vxpose.xlu0.c.b16.cont [7/8] %v1064, 128
    %1337 = vxpose.xlu0.c.b16.end [8/8] %v1065, 128
    %v1338 = vpop.trf.xlu0
    %v1339 = vpop.trf.xlu0
    %v1340 = vpop.trf.xlu0
    %v1341 = vpop.trf.xlu0
    %v1342 = vpop.trf.xlu0
    %v1343 = vpop.trf.xlu0
    %v1344 = vpop.trf.xlu0
    %v1345 = vpop.trf.xlu0
    %1346 = vxpose.xlu0.c.b16.start [1/8] %v1066, 128
    %1347 = vxpose.xlu0.c.b16.cont [2/8] %v1067, 128
    %1348 = vxpose.xlu0.c.b16.cont [3/8] %v1068, 128
    %1349 = vxpose.xlu0.c.b16.cont [4/8] %v1069, 128
    %1350 = vxpose.xlu0.c.b16.cont [5/8] %v1070, 128
    %1351 = vxpose.xlu0.c.b16.cont [6/8] %v1071, 128
    %1352 = vxpose.xlu0.c.b16.cont [7/8] %v1072, 128
    %1353 = vxpose.xlu0.c.b16.end [8/8] %v1073, 128
    %v1354 = vpop.trf.xlu0
    %v1355 = vpop.trf.xlu0
    %v1356 = vpop.trf.xlu0
    %v1357 = vpop.trf.xlu0
    %v1358 = vpop.trf.xlu0
    %v1359 = vpop.trf.xlu0
    %v1360 = vpop.trf.xlu0
    %v1361 = vpop.trf.xlu0
    %1362 = vxpose.xlu0.c.b16.start [1/8] %v1074, 128
    %1363 = vxpose.xlu0.c.b16.cont [2/8] %v1075, 128
    %1364 = vxpose.xlu0.c.b16.cont [3/8] %v1076, 128
    %1365 = vxpose.xlu0.c.b16.cont [4/8] %v1077, 128
    %1366 = vxpose.xlu0.c.b16.cont [5/8] %v1078, 128
    %1367 = vxpose.xlu0.c.b16.cont [6/8] %v1079, 128
    %1368 = vxpose.xlu0.c.b16.cont [7/8] %v1080, 128
    %1369 = vxpose.xlu0.c.b16.end [8/8] %v1081, 128
    %v1370 = vpop.trf.xlu0
    %v1371 = vpop.trf.xlu0
    %v1372 = vpop.trf.xlu0
    %v1373 = vpop.trf.xlu0
    %v1374 = vpop.trf.xlu0
    %v1375 = vpop.trf.xlu0
    %v1376 = vpop.trf.xlu0
    %v1377 = vpop.trf.xlu0
    %1378 = vxpose.xlu0.c.b16.start [1/8] %v1082, 128
    %1379 = vxpose.xlu0.c.b16.cont [2/8] %v1083, 128
    %1380 = vxpose.xlu0.c.b16.cont [3/8] %v1084, 128
    %1381 = vxpose.xlu0.c.b16.cont [4/8] %v1085, 128
    %1382 = vxpose.xlu0.c.b16.cont [5/8] %v1086, 128
    %1383 = vxpose.xlu0.c.b16.cont [6/8] %v1087, 128
    %1384 = vxpose.xlu0.c.b16.cont [7/8] %v1088, 128
    %1385 = vxpose.xlu0.c.b16.end [8/8] %v1089, 128
    %v1386 = vpop.trf.xlu0
    %v1387 = vpop.trf.xlu0
    %v1388 = vpop.trf.xlu0
    %v1389 = vpop.trf.xlu0
    %v1390 = vpop.trf.xlu0
    %v1391 = vpop.trf.xlu0
    %v1392 = vpop.trf.xlu0
    %v1393 = vpop.trf.xlu0
    %1394 = vxpose.xlu0.c.b16.start [1/8] %v1090, 128
    %1395 = vxpose.xlu0.c.b16.cont [2/8] %v1091, 128
    %1396 = vxpose.xlu0.c.b16.cont [3/8] %v1092, 128
    %1397 = vxpose.xlu0.c.b16.cont [4/8] %v1093, 128
    %1398 = vxpose.xlu0.c.b16.cont [5/8] %v1094, 128
    %1399 = vxpose.xlu0.c.b16.cont [6/8] %v1095, 128
    %1400 = vxpose.xlu0.c.b16.cont [7/8] %v1096, 128
    %1401 = vxpose.xlu0.c.b16.end [8/8] %v1097, 128
    %v1402 = vpop.trf.xlu0
    %v1403 = vpop.trf.xlu0
    %v1404 = vpop.trf.xlu0
    %v1405 = vpop.trf.xlu0
    %v1406 = vpop.trf.xlu0
    %v1407 = vpop.trf.xlu0
    %v1408 = vpop.trf.xlu0
    %v1409 = vpop.trf.xlu0
    %1410 = vxpose.xlu0.c.b16.start [1/8] %v1098, 128
    %1411 = vxpose.xlu0.c.b16.cont [2/8] %v1099, 128
    %1412 = vxpose.xlu0.c.b16.cont [3/8] %v1100, 128
    %1413 = vxpose.xlu0.c.b16.cont [4/8] %v1101, 128
    %1414 = vxpose.xlu0.c.b16.cont [5/8] %v1102, 128
    %1415 = vxpose.xlu0.c.b16.cont [6/8] %v1103, 128
    %1416 = vxpose.xlu0.c.b16.cont [7/8] %v1104, 128
    %1417 = vxpose.xlu0.c.b16.end [8/8] %v1105, 128
    %v1418 = vpop.trf.xlu0
    %v1419 = vpop.trf.xlu0
    %v1420 = vpop.trf.xlu0
    %v1421 = vpop.trf.xlu0
    %v1422 = vpop.trf.xlu0
    %v1423 = vpop.trf.xlu0
    %v1424 = vpop.trf.xlu0
    %v1425 = vpop.trf.xlu0
    %1426 = vxpose.xlu0.c.b16.start [1/8] %v1106, 128
    %1427 = vxpose.xlu0.c.b16.cont [2/8] %v1107, 128
    %1428 = vxpose.xlu0.c.b16.cont [3/8] %v1108, 128
    %1429 = vxpose.xlu0.c.b16.cont [4/8] %v1109, 128
    %1430 = vxpose.xlu0.c.b16.cont [5/8] %v1110, 128
    %1431 = vxpose.xlu0.c.b16.cont [6/8] %v1111, 128
    %1432 = vxpose.xlu0.c.b16.cont [7/8] %v1112, 128
    %1433 = vxpose.xlu0.c.b16.end [8/8] %v1113, 128
    %v1434 = vpop.trf.xlu0
    %v1435 = vpop.trf.xlu0
    %v1436 = vpop.trf.xlu0
    %v1437 = vpop.trf.xlu0
    %v1438 = vpop.trf.xlu0
    %v1439 = vpop.trf.xlu0
    %v1440 = vpop.trf.xlu0
    %v1441 = vpop.trf.xlu0
    %1442 = vxpose.xlu0.c.b16.start [1/8] %v1114, 128
    %1443 = vxpose.xlu0.c.b16.cont [2/8] %v1115, 128
    %1444 = vxpose.xlu0.c.b16.cont [3/8] %v1116, 128
    %1445 = vxpose.xlu0.c.b16.cont [4/8] %v1117, 128
    %1446 = vxpose.xlu0.c.b16.cont [5/8] %v1118, 128
    %1447 = vxpose.xlu0.c.b16.cont [6/8] %v1119, 128
    %1448 = vxpose.xlu0.c.b16.cont [7/8] %v1120, 128
    %1449 = vxpose.xlu0.c.b16.end [8/8] %v1121, 128
    %v1450 = vpop.trf.xlu0
    %v1451 = vpop.trf.xlu0
    %v1452 = vpop.trf.xlu0
    %v1453 = vpop.trf.xlu0
    %v1454 = vpop.trf.xlu0
    %v1455 = vpop.trf.xlu0
    %v1456 = vpop.trf.xlu0
    %v1457 = vpop.trf.xlu0
    %1458 = vxpose.xlu0.c.b16.start [1/8] %v1122, 128
    %1459 = vxpose.xlu0.c.b16.cont [2/8] %v1123, 128
    %1460 = vxpose.xlu0.c.b16.cont [3/8] %v1124, 128
    %1461 = vxpose.xlu0.c.b16.cont [4/8] %v1125, 128
    %1462 = vxpose.xlu0.c.b16.cont [5/8] %v1126, 128
    %1463 = vxpose.xlu0.c.b16.cont [6/8] %v1127, 128
    %1464 = vxpose.xlu0.c.b16.cont [7/8] %v1128, 128
    %1465 = vxpose.xlu0.c.b16.end [8/8] %v1129, 128
    %v1466 = vpop.trf.xlu0
    %v1467 = vpop.trf.xlu0
    %v1468 = vpop.trf.xlu0
    %v1469 = vpop.trf.xlu0
    %v1470 = vpop.trf.xlu0
    %v1471 = vpop.trf.xlu0
    %v1472 = vpop.trf.xlu0
    %v1473 = vpop.trf.xlu0
    %1474 = vxpose.xlu0.c.b16.start [1/8] %v1130, 128
    %1475 = vxpose.xlu0.c.b16.cont [2/8] %v1131, 128
    %1476 = vxpose.xlu0.c.b16.cont [3/8] %v1132, 128
    %1477 = vxpose.xlu0.c.b16.cont [4/8] %v1133, 128
    %1478 = vxpose.xlu0.c.b16.cont [5/8] %v1134, 128
    %1479 = vxpose.xlu0.c.b16.cont [6/8] %v1135, 128
    %1480 = vxpose.xlu0.c.b16.cont [7/8] %v1136, 128
    %1481 = vxpose.xlu0.c.b16.end [8/8] %v1137, 128
    %v1482 = vpop.trf.xlu0
    %v1483 = vpop.trf.xlu0
    %v1484 = vpop.trf.xlu0
    %v1485 = vpop.trf.xlu0
    %v1486 = vpop.trf.xlu0
    %v1487 = vpop.trf.xlu0
    %v1488 = vpop.trf.xlu0
    %v1489 = vpop.trf.xlu0
    %1490 = vxpose.xlu0.c.b16.start [1/8] %v1138, 128
    %1491 = vxpose.xlu0.c.b16.cont [2/8] %v1139, 128
    %1492 = vxpose.xlu0.c.b16.cont [3/8] %v1140, 128
    %1493 = vxpose.xlu0.c.b16.cont [4/8] %v1141, 128
    %1494 = vxpose.xlu0.c.b16.cont [5/8] %v1142, 128
    %1495 = vxpose.xlu0.c.b16.cont [6/8] %v1143, 128
    %1496 = vxpose.xlu0.c.b16.cont [7/8] %v1144, 128
    %1497 = vxpose.xlu0.c.b16.end [8/8] %v1145, 128
    %v1498 = vpop.trf.xlu0
    %v1499 = vpop.trf.xlu0
    %v1500 = vpop.trf.xlu0
    %v1501 = vpop.trf.xlu0
    %v1502 = vpop.trf.xlu0
    %v1503 = vpop.trf.xlu0
    %v1504 = vpop.trf.xlu0
    %v1505 = vpop.trf.xlu0
    %1506 = vxpose.xlu0.c.b16.start [1/8] %v1146, 128
    %1507 = vxpose.xlu0.c.b16.cont [2/8] %v1147, 128
    %1508 = vxpose.xlu0.c.b16.cont [3/8] %v1148, 128
    %1509 = vxpose.xlu0.c.b16.cont [4/8] %v1149, 128
    %1510 = vxpose.xlu0.c.b16.cont [5/8] %v1150, 128
    %1511 = vxpose.xlu0.c.b16.cont [6/8] %v1151, 128
    %1512 = vxpose.xlu0.c.b16.cont [7/8] %v1152, 128
    %1513 = vxpose.xlu0.c.b16.end [8/8] %v1153, 128
    %v1514 = vpop.trf.xlu0
    %v1515 = vpop.trf.xlu0
    %v1516 = vpop.trf.xlu0
    %v1517 = vpop.trf.xlu0
    %v1518 = vpop.trf.xlu0
    %v1519 = vpop.trf.xlu0
    %v1520 = vpop.trf.xlu0
    %v1521 = vpop.trf.xlu0
    %1522 = vxpose.xlu0.c.b16.start [1/8] %v1154, 128
    %1523 = vxpose.xlu0.c.b16.cont [2/8] %v1155, 128
    %1524 = vxpose.xlu0.c.b16.cont [3/8] %v1156, 128
    %1525 = vxpose.xlu0.c.b16.cont [4/8] %v1157, 128
    %1526 = vxpose.xlu0.c.b16.cont [5/8] %v1158, 128
    %1527 = vxpose.xlu0.c.b16.cont [6/8] %v1159, 128
    %1528 = vxpose.xlu0.c.b16.cont [7/8] %v1160, 128
    %1529 = vxpose.xlu0.c.b16.end [8/8] %v1161, 128
    %v1530 = vpop.trf.xlu0
    %v1531 = vpop.trf.xlu0
    %v1532 = vpop.trf.xlu0
    %v1533 = vpop.trf.xlu0
    %v1534 = vpop.trf.xlu0
    %v1535 = vpop.trf.xlu0
    %v1536 = vpop.trf.xlu0
    %v1537 = vpop.trf.xlu0
    %1538 = vxpose.xlu0.c.b16.start [1/8] %v1162, 128
    %1539 = vxpose.xlu0.c.b16.cont [2/8] %v1163, 128
    %1540 = vxpose.xlu0.c.b16.cont [3/8] %v1164, 128
    %1541 = vxpose.xlu0.c.b16.cont [4/8] %v1165, 128
    %1542 = vxpose.xlu0.c.b16.cont [5/8] %v1166, 128
    %1543 = vxpose.xlu0.c.b16.cont [6/8] %v1167, 128
    %1544 = vxpose.xlu0.c.b16.cont [7/8] %v1168, 128
    %1545 = vxpose.xlu0.c.b16.end [8/8] %v1169, 128
    %v1546 = vpop.trf.xlu0
    %v1547 = vpop.trf.xlu0
    %v1548 = vpop.trf.xlu0
    %v1549 = vpop.trf.xlu0
    %v1550 = vpop.trf.xlu0
    %v1551 = vpop.trf.xlu0
    %v1552 = vpop.trf.xlu0
    %v1553 = vpop.trf.xlu0
    %v1810 = vunpack.c.l.b16 %v16
    %v1811 = vunpack.c.l.b16 %v17
    %v1812 = vunpack.c.l.b16 %v18
    %v1813 = vunpack.c.l.b16 %v19
    %v1814 = vunpack.c.l.b16 %v20
    %v1815 = vunpack.c.l.b16 %v21
    %v1816 = vunpack.c.l.b16 %v22
    %v1817 = vunpack.c.l.b16 %v23
    %v1818 = vunpack.c.l.b16 %v24
    %v1819 = vunpack.c.l.b16 %v25
    %v1820 = vunpack.c.l.b16 %v26
    %v1821 = vunpack.c.l.b16 %v27
    %v1822 = vunpack.c.l.b16 %v28
    %v1823 = vunpack.c.l.b16 %v29
    %v1824 = vunpack.c.l.b16 %v30
    %v1825 = vunpack.c.l.b16 %v31
    %v1826 = vunpack.c.l.b16 %v32
    %v1827 = vunpack.c.l.b16 %v33
    %v1828 = vunpack.c.l.b16 %v34
    %v1829 = vunpack.c.l.b16 %v35
    %v1830 = vunpack.c.l.b16 %v36
    %v1831 = vunpack.c.l.b16 %v37
    %v1832 = vunpack.c.l.b16 %v38
    %v1833 = vunpack.c.l.b16 %v39
    %v1834 = vunpack.c.l.b16 %v40
    %v1835 = vunpack.c.l.b16 %v41
    %v1836 = vunpack.c.l.b16 %v42
    %v1837 = vunpack.c.l.b16 %v43
    %v1838 = vunpack.c.l.b16 %v44
    %v1839 = vunpack.c.l.b16 %v45
    %v1840 = vunpack.c.l.b16 %v46
    %v1841 = vunpack.c.l.b16 %v47
    %v1842 = vunpack.c.l.b16 %v48
    %v1843 = vunpack.c.l.b16 %v49
    %v1844 = vunpack.c.l.b16 %v50
    %v1845 = vunpack.c.l.b16 %v51
    %v1846 = vunpack.c.l.b16 %v52
    %v1847 = vunpack.c.l.b16 %v53
    %v1848 = vunpack.c.l.b16 %v54
    %v1849 = vunpack.c.l.b16 %v55
    %v1850 = vunpack.c.l.b16 %v56
    %v1851 = vunpack.c.l.b16 %v57
    %v1852 = vunpack.c.l.b16 %v58
    %v1853 = vunpack.c.l.b16 %v59
    %v1854 = vunpack.c.l.b16 %v60
    %v1855 = vunpack.c.l.b16 %v61
    %v1856 = vunpack.c.l.b16 %v62
    %v1857 = vunpack.c.l.b16 %v63
    %v1858 = vunpack.c.l.b16 %v64
    %v1859 = vunpack.c.l.b16 %v65
    %v1860 = vunpack.c.l.b16 %v66
    %v1861 = vunpack.c.l.b16 %v67
    %v1862 = vunpack.c.l.b16 %v68
    %v1863 = vunpack.c.l.b16 %v69
    %v1864 = vunpack.c.l.b16 %v70
    %v1865 = vunpack.c.l.b16 %v71
    %v1866 = vunpack.c.l.b16 %v72
    %v1867 = vunpack.c.l.b16 %v73
    %v1868 = vunpack.c.l.b16 %v74
    %v1869 = vunpack.c.l.b16 %v75
    %v1870 = vunpack.c.l.b16 %v76
    %v1871 = vunpack.c.l.b16 %v77
    %v1872 = vunpack.c.l.b16 %v78
    %v1873 = vunpack.c.l.b16 %v79
    %v1874 = vunpack.c.l.b16 %v80
    %v1875 = vunpack.c.l.b16 %v81
    %v1876 = vunpack.c.l.b16 %v82
    %v1877 = vunpack.c.l.b16 %v83
    %v1878 = vunpack.c.l.b16 %v84
    %v1879 = vunpack.c.l.b16 %v85
    %v1880 = vunpack.c.l.b16 %v86
    %v1881 = vunpack.c.l.b16 %v87
    %v1882 = vunpack.c.l.b16 %v88
    %v1883 = vunpack.c.l.b16 %v89
    %v1884 = vunpack.c.l.b16 %v90
    %v1885 = vunpack.c.l.b16 %v91
    %v1886 = vunpack.c.l.b16 %v92
    %v1887 = vunpack.c.l.b16 %v93
    %v1888 = vunpack.c.l.b16 %v94
    %v1889 = vunpack.c.l.b16 %v95
    %v1890 = vunpack.c.l.b16 %v96
    %v1891 = vunpack.c.l.b16 %v97
    %v1892 = vunpack.c.l.b16 %v98
    %v1893 = vunpack.c.l.b16 %v99
    %v1894 = vunpack.c.l.b16 %v100
    %v1895 = vunpack.c.l.b16 %v101
    %v1896 = vunpack.c.l.b16 %v102
    %v1897 = vunpack.c.l.b16 %v103
    %v1898 = vunpack.c.l.b16 %v104
    %v1899 = vunpack.c.l.b16 %v105
    %v1900 = vunpack.c.l.b16 %v106
    %v1901 = vunpack.c.l.b16 %v107
    %v1902 = vunpack.c.l.b16 %v108
    %v1903 = vunpack.c.l.b16 %v109
    %v1904 = vunpack.c.l.b16 %v110
    %v1905 = vunpack.c.l.b16 %v111
    %v1906 = vunpack.c.l.b16 %v112
    %v1907 = vunpack.c.l.b16 %v113
    %v1908 = vunpack.c.l.b16 %v114
    %v1909 = vunpack.c.l.b16 %v115
    %v1910 = vunpack.c.l.b16 %v116
    %v1911 = vunpack.c.l.b16 %v117
    %v1912 = vunpack.c.l.b16 %v118
    %v1913 = vunpack.c.l.b16 %v119
    %v1914 = vunpack.c.l.b16 %v120
    %v1915 = vunpack.c.l.b16 %v121
    %v1916 = vunpack.c.l.b16 %v122
    %v1917 = vunpack.c.l.b16 %v123
    %v1918 = vunpack.c.l.b16 %v124
    %v1919 = vunpack.c.l.b16 %v125
    %v1920 = vunpack.c.l.b16 %v126
    %v1921 = vunpack.c.l.b16 %v127
    %v1922 = vunpack.c.l.b16 %v128
    %v1923 = vunpack.c.l.b16 %v129
    %v1924 = vunpack.c.l.b16 %v130
    %v1925 = vunpack.c.l.b16 %v131
    %v1926 = vunpack.c.l.b16 %v132
    %v1927 = vunpack.c.l.b16 %v133
    %v1928 = vunpack.c.l.b16 %v134
    %v1929 = vunpack.c.l.b16 %v135
    %v1930 = vunpack.c.l.b16 %v136
    %v1931 = vunpack.c.l.b16 %v137
    %v1932 = vunpack.c.l.b16 %v138
    %v1933 = vunpack.c.l.b16 %v139
    %v1934 = vunpack.c.l.b16 %v140
    %v1935 = vunpack.c.l.b16 %v141
    %v1936 = vunpack.c.l.b16 %v142
    %v1937 = vunpack.c.l.b16 %v143
    %v1938 = vunpack.c.l.b16 %v144
    %v1939 = vunpack.c.l.b16 %v145
    %v1940 = vunpack.c.l.b16 %v146
    %v1941 = vunpack.c.l.b16 %v147
    %v1942 = vunpack.c.l.b16 %v148
    %v1943 = vunpack.c.l.b16 %v149
    %v1944 = vunpack.c.l.b16 %v150
    %v1945 = vunpack.c.l.b16 %v151
    %v1946 = vunpack.c.l.b16 %v152
    %v1947 = vunpack.c.l.b16 %v153
    %v1948 = vunpack.c.l.b16 %v154
    %v1949 = vunpack.c.l.b16 %v155
    %v1950 = vunpack.c.l.b16 %v156
    %v1951 = vunpack.c.l.b16 %v157
    %v1952 = vunpack.c.l.b16 %v158
    %v1953 = vunpack.c.l.b16 %v159
    %v1954 = vunpack.c.l.b16 %v160
    %v1955 = vunpack.c.l.b16 %v161
    %v1956 = vunpack.c.l.b16 %v162
    %v1957 = vunpack.c.l.b16 %v163
    %v1958 = vunpack.c.l.b16 %v164
    %v1959 = vunpack.c.l.b16 %v165
    %v1960 = vunpack.c.l.b16 %v166
    %v1961 = vunpack.c.l.b16 %v167
    %v1962 = vunpack.c.l.b16 %v168
    %v1963 = vunpack.c.l.b16 %v169
    %v1964 = vunpack.c.l.b16 %v170
    %v1965 = vunpack.c.l.b16 %v171
    %v1966 = vunpack.c.l.b16 %v172
    %v1967 = vunpack.c.l.b16 %v173
    %v1968 = vunpack.c.l.b16 %v174
    %v1969 = vunpack.c.l.b16 %v175
    %v1970 = vunpack.c.l.b16 %v176
    %v1971 = vunpack.c.l.b16 %v177
    %v1972 = vunpack.c.l.b16 %v178
    %v1973 = vunpack.c.l.b16 %v179
    %v1974 = vunpack.c.l.b16 %v180
    %v1975 = vunpack.c.l.b16 %v181
    %v1976 = vunpack.c.l.b16 %v182
    %v1977 = vunpack.c.l.b16 %v183
    %v1978 = vunpack.c.l.b16 %v184
    %v1979 = vunpack.c.l.b16 %v185
    %v1980 = vunpack.c.l.b16 %v186
    %v1981 = vunpack.c.l.b16 %v187
    %v1982 = vunpack.c.l.b16 %v188
    %v1983 = vunpack.c.l.b16 %v189
    %v1984 = vunpack.c.l.b16 %v190
    %v1985 = vunpack.c.l.b16 %v191
    %v1986 = vunpack.c.l.b16 %v192
    %v1987 = vunpack.c.l.b16 %v193
    %v1988 = vunpack.c.l.b16 %v194
    %v1989 = vunpack.c.l.b16 %v195
    %v1990 = vunpack.c.l.b16 %v196
    %v1991 = vunpack.c.l.b16 %v197
    %v1992 = vunpack.c.l.b16 %v198
    %v1993 = vunpack.c.l.b16 %v199
    %v1994 = vunpack.c.l.b16 %v200
    %v1995 = vunpack.c.l.b16 %v201
    %v1996 = vunpack.c.l.b16 %v202
    %v1997 = vunpack.c.l.b16 %v203
    %v1998 = vunpack.c.l.b16 %v204
    %v1999 = vunpack.c.l.b16 %v205
    %v2000 = vunpack.c.l.b16 %v206
    %v2001 = vunpack.c.l.b16 %v207
    %v2002 = vunpack.c.l.b16 %v208
    %v2003 = vunpack.c.l.b16 %v209
    %v2004 = vunpack.c.l.b16 %v210
    %v2005 = vunpack.c.l.b16 %v211
    %v2006 = vunpack.c.l.b16 %v212
    %v2007 = vunpack.c.l.b16 %v213
    %v2008 = vunpack.c.l.b16 %v214
    %v2009 = vunpack.c.l.b16 %v215
    %v2010 = vunpack.c.l.b16 %v216
    %v2011 = vunpack.c.l.b16 %v217
    %v2012 = vunpack.c.l.b16 %v218
    %v2013 = vunpack.c.l.b16 %v219
    %v2014 = vunpack.c.l.b16 %v220
    %v2015 = vunpack.c.l.b16 %v221
    %v2016 = vunpack.c.l.b16 %v222
    %v2017 = vunpack.c.l.b16 %v223
    %v2018 = vunpack.c.l.b16 %v224
    %v2019 = vunpack.c.l.b16 %v225
    %v2020 = vunpack.c.l.b16 %v226
    %v2021 = vunpack.c.l.b16 %v227
    %v2022 = vunpack.c.l.b16 %v228
    %v2023 = vunpack.c.l.b16 %v229
    %v2024 = vunpack.c.l.b16 %v230
    %v2025 = vunpack.c.l.b16 %v231
    %v2026 = vunpack.c.l.b16 %v232
    %v2027 = vunpack.c.l.b16 %v233
    %v2028 = vunpack.c.l.b16 %v234
    %v2029 = vunpack.c.l.b16 %v235
    %v2030 = vunpack.c.l.b16 %v236
    %v2031 = vunpack.c.l.b16 %v237
    %v2032 = vunpack.c.l.b16 %v238
    %v2033 = vunpack.c.l.b16 %v239
    %v2034 = vunpack.c.l.b16 %v240
    %v2035 = vunpack.c.l.b16 %v241
    %v2036 = vunpack.c.l.b16 %v242
    %v2037 = vunpack.c.l.b16 %v243
    %v2038 = vunpack.c.l.b16 %v244
    %v2039 = vunpack.c.l.b16 %v245
    %v2040 = vunpack.c.l.b16 %v246
    %v2041 = vunpack.c.l.b16 %v247
    %v2042 = vunpack.c.l.b16 %v248
    %v2043 = vunpack.c.l.b16 %v249
    %v2044 = vunpack.c.l.b16 %v250
    %v2045 = vunpack.c.l.b16 %v251
    %v2046 = vunpack.c.l.b16 %v252
    %v2047 = vunpack.c.l.b16 %v253
    %v2048 = vunpack.c.l.b16 %v254
    %v2049 = vunpack.c.l.b16 %v255
    %v2050 = vunpack.c.l.b16 %v256
    %v2051 = vunpack.c.l.b16 %v257
    %v2052 = vunpack.c.l.b16 %v258
    %v2053 = vunpack.c.l.b16 %v259
    %v2054 = vunpack.c.l.b16 %v260
    %v2055 = vunpack.c.l.b16 %v261
    %v2056 = vunpack.c.l.b16 %v262
    %v2057 = vunpack.c.l.b16 %v263
    %v2058 = vunpack.c.l.b16 %v264
    %v2059 = vunpack.c.l.b16 %v265
    %v2060 = vunpack.c.l.b16 %v266
    %v2061 = vunpack.c.l.b16 %v267
    %v2062 = vunpack.c.l.b16 %v268
    %v2063 = vunpack.c.l.b16 %v269
    %v2064 = vunpack.c.l.b16 %v270
    %v2065 = vunpack.c.l.b16 %v271
    %v2066 = vpack.c.b16 %v1811, %v1810
    %v2067 = vpack.c.b16 %v1813, %v1812
    %v2068 = vpack.c.b16 %v1815, %v1814
    %v2069 = vpack.c.b16 %v1817, %v1816
    %v2070 = vpack.c.b16 %v1819, %v1818
    %v2071 = vpack.c.b16 %v1821, %v1820
    %v2072 = vpack.c.b16 %v1823, %v1822
    %v2073 = vpack.c.b16 %v1825, %v1824
    %v2074 = vpack.c.b16 %v1827, %v1826
    %v2075 = vpack.c.b16 %v1829, %v1828
    %v2076 = vpack.c.b16 %v1831, %v1830
    %v2077 = vpack.c.b16 %v1833, %v1832
    %v2078 = vpack.c.b16 %v1835, %v1834
    %v2079 = vpack.c.b16 %v1837, %v1836
    %v2080 = vpack.c.b16 %v1839, %v1838
    %v2081 = vpack.c.b16 %v1841, %v1840
    %v2082 = vpack.c.b16 %v1843, %v1842
    %v2083 = vpack.c.b16 %v1845, %v1844
    %v2084 = vpack.c.b16 %v1847, %v1846
    %v2085 = vpack.c.b16 %v1849, %v1848
    %v2086 = vpack.c.b16 %v1851, %v1850
    %v2087 = vpack.c.b16 %v1853, %v1852
    %v2088 = vpack.c.b16 %v1855, %v1854
    %v2089 = vpack.c.b16 %v1857, %v1856
    %v2090 = vpack.c.b16 %v1859, %v1858
    %v2091 = vpack.c.b16 %v1861, %v1860
    %v2092 = vpack.c.b16 %v1863, %v1862
    %v2093 = vpack.c.b16 %v1865, %v1864
    %v2094 = vpack.c.b16 %v1867, %v1866
    %v2095 = vpack.c.b16 %v1869, %v1868
    %v2096 = vpack.c.b16 %v1871, %v1870
    %v2097 = vpack.c.b16 %v1873, %v1872
    %v2098 = vpack.c.b16 %v1875, %v1874
    %v2099 = vpack.c.b16 %v1877, %v1876
    %v2100 = vpack.c.b16 %v1879, %v1878
    %v2101 = vpack.c.b16 %v1881, %v1880
    %v2102 = vpack.c.b16 %v1883, %v1882
    %v2103 = vpack.c.b16 %v1885, %v1884
    %v2104 = vpack.c.b16 %v1887, %v1886
    %v2105 = vpack.c.b16 %v1889, %v1888
    %v2106 = vpack.c.b16 %v1891, %v1890
    %v2107 = vpack.c.b16 %v1893, %v1892
    %v2108 = vpack.c.b16 %v1895, %v1894
    %v2109 = vpack.c.b16 %v1897, %v1896
    %v2110 = vpack.c.b16 %v1899, %v1898
    %v2111 = vpack.c.b16 %v1901, %v1900
    %v2112 = vpack.c.b16 %v1903, %v1902
    %v2113 = vpack.c.b16 %v1905, %v1904
    %v2114 = vpack.c.b16 %v1907, %v1906
    %v2115 = vpack.c.b16 %v1909, %v1908
    %v2116 = vpack.c.b16 %v1911, %v1910
    %v2117 = vpack.c.b16 %v1913, %v1912
    %v2118 = vpack.c.b16 %v1915, %v1914
    %v2119 = vpack.c.b16 %v1917, %v1916
    %v2120 = vpack.c.b16 %v1919, %v1918
    %v2121 = vpack.c.b16 %v1921, %v1920
    %v2122 = vpack.c.b16 %v1923, %v1922
    %v2123 = vpack.c.b16 %v1925, %v1924
    %v2124 = vpack.c.b16 %v1927, %v1926
    %v2125 = vpack.c.b16 %v1929, %v1928
    %v2126 = vpack.c.b16 %v1931, %v1930
    %v2127 = vpack.c.b16 %v1933, %v1932
    %v2128 = vpack.c.b16 %v1935, %v1934
    %v2129 = vpack.c.b16 %v1937, %v1936
    %v2130 = vpack.c.b16 %v1939, %v1938
    %v2131 = vpack.c.b16 %v1941, %v1940
    %v2132 = vpack.c.b16 %v1943, %v1942
    %v2133 = vpack.c.b16 %v1945, %v1944
    %v2134 = vpack.c.b16 %v1947, %v1946
    %v2135 = vpack.c.b16 %v1949, %v1948
    %v2136 = vpack.c.b16 %v1951, %v1950
    %v2137 = vpack.c.b16 %v1953, %v1952
    %v2138 = vpack.c.b16 %v1955, %v1954
    %v2139 = vpack.c.b16 %v1957, %v1956
    %v2140 = vpack.c.b16 %v1959, %v1958
    %v2141 = vpack.c.b16 %v1961, %v1960
    %v2142 = vpack.c.b16 %v1963, %v1962
    %v2143 = vpack.c.b16 %v1965, %v1964
    %v2144 = vpack.c.b16 %v1967, %v1966
    %v2145 = vpack.c.b16 %v1969, %v1968
    %v2146 = vpack.c.b16 %v1971, %v1970
    %v2147 = vpack.c.b16 %v1973, %v1972
    %v2148 = vpack.c.b16 %v1975, %v1974
    %v2149 = vpack.c.b16 %v1977, %v1976
    %v2150 = vpack.c.b16 %v1979, %v1978
    %v2151 = vpack.c.b16 %v1981, %v1980
    %v2152 = vpack.c.b16 %v1983, %v1982
    %v2153 = vpack.c.b16 %v1985, %v1984
    %v2154 = vpack.c.b16 %v1987, %v1986
    %v2155 = vpack.c.b16 %v1989, %v1988
    %v2156 = vpack.c.b16 %v1991, %v1990
    %v2157 = vpack.c.b16 %v1993, %v1992
    %v2158 = vpack.c.b16 %v1995, %v1994
    %v2159 = vpack.c.b16 %v1997, %v1996
    %v2160 = vpack.c.b16 %v1999, %v1998
    %v2161 = vpack.c.b16 %v2001, %v2000
    %v2162 = vpack.c.b16 %v2003, %v2002
    %v2163 = vpack.c.b16 %v2005, %v2004
    %v2164 = vpack.c.b16 %v2007, %v2006
    %v2165 = vpack.c.b16 %v2009, %v2008
    %v2166 = vpack.c.b16 %v2011, %v2010
    %v2167 = vpack.c.b16 %v2013, %v2012
    %v2168 = vpack.c.b16 %v2015, %v2014
    %v2169 = vpack.c.b16 %v2017, %v2016
    %v2170 = vpack.c.b16 %v2019, %v2018
    %v2171 = vpack.c.b16 %v2021, %v2020
    %v2172 = vpack.c.b16 %v2023, %v2022
    %v2173 = vpack.c.b16 %v2025, %v2024
    %v2174 = vpack.c.b16 %v2027, %v2026
    %v2175 = vpack.c.b16 %v2029, %v2028
    %v2176 = vpack.c.b16 %v2031, %v2030
    %v2177 = vpack.c.b16 %v2033, %v2032
    %v2178 = vpack.c.b16 %v2035, %v2034
    %v2179 = vpack.c.b16 %v2037, %v2036
    %v2180 = vpack.c.b16 %v2039, %v2038
    %v2181 = vpack.c.b16 %v2041, %v2040
    %v2182 = vpack.c.b16 %v2043, %v2042
    %v2183 = vpack.c.b16 %v2045, %v2044
    %v2184 = vpack.c.b16 %v2047, %v2046
    %v2185 = vpack.c.b16 %v2049, %v2048
    %v2186 = vpack.c.b16 %v2051, %v2050
    %v2187 = vpack.c.b16 %v2053, %v2052
    %v2188 = vpack.c.b16 %v2055, %v2054
    %v2189 = vpack.c.b16 %v2057, %v2056
    %v2190 = vpack.c.b16 %v2059, %v2058
    %v2191 = vpack.c.b16 %v2061, %v2060
    %v2192 = vpack.c.b16 %v2063, %v2062
    %v2193 = vpack.c.b16 %v2065, %v2064
    %2322 = vmatprep.subr.bf16.mxu0 0
    %2323 = vmatpush1.bf16.msra.mxu0 %v2073
    %2324 = vmatprep.subr.bf16.mxu0 0
    %2325 = vmatpush1.bf16.msra.mxu0 %v2072
    %2326 = vmatprep.subr.bf16.mxu0 0
    %2327 = vmatpush1.bf16.msra.mxu0 %v2071
    %2328 = vmatprep.subr.bf16.mxu0 0
    %2329 = vmatpush1.bf16.msra.mxu0 %v2070
    %2330 = vmatprep.subr.bf16.mxu0 0
    %2331 = vmatpush1.bf16.msra.mxu0 %v2069
    %2332 = vmatprep.subr.bf16.mxu0 0
    %2333 = vmatpush1.bf16.msra.mxu0 %v2068
    %2334 = vmatprep.subr.bf16.mxu0 0
    %2335 = vmatpush1.bf16.msra.mxu0 %v2067
    %2336 = vmatprep.subr.bf16.mxu0 0
    %2337 = vmatpush1.bf16.msra.mxu0 %v2066
    %2338 = vmatprep.subr.bf16.mxu0 0
    %2339 = vmatpush2.bf16.msra.mxu0 %v2081
    %2340 = vmatprep.subr.bf16.mxu0 0
    %2341 = vmatpush2.bf16.msra.mxu0 %v2080
    %2342 = vmatprep.subr.bf16.mxu0 0
    %2343 = vmatpush2.bf16.msra.mxu0 %v2079
    %2344 = vmatprep.subr.bf16.mxu0 0
    %2345 = vmatpush2.bf16.msra.mxu0 %v2078
    %2346 = vmatprep.subr.bf16.mxu0 0
    %2347 = vmatpush2.bf16.msra.mxu0 %v2077
    %2348 = vmatprep.subr.bf16.mxu0 0
    %2349 = vmatpush2.bf16.msra.mxu0 %v2076
    %2350 = vmatprep.subr.bf16.mxu0 0
    %2351 = vmatpush2.bf16.msra.mxu0 %v2075
    %2352 = vmatprep.subr.bf16.mxu0 0
    %2353 = vmatpush2.bf16.msra.mxu0 %v2074
    %2354 = vmatprep.mubr.bf16.mxu0 %v1322
    %2355 = vmatmul.mubr.bf16.gmra.mxu0 %v1306
    %v2356 = vpop.f32.mrf.mxu0
    %v2357 = vadd.f32 %v272, %v2356
    %v2358 = vpop.f32.mrf.mxu0
    %v2359 = vpop.f32.mrf.mxu0
    %v2360 = vadd.f32 %v273, %v2359
    %v2361 = vpop.f32.mrf.mxu0
    %2362 = vdwg.mxu0
    %2363 = vmatprep.subr.bf16.mxu0 0
    %2364 = vmatpush1.bf16.msra.mxu0 %v2089
    %2365 = vmatprep.subr.bf16.mxu0 0
    %2366 = vmatpush1.bf16.msra.mxu0 %v2088
    %2367 = vmatprep.subr.bf16.mxu0 0
    %2368 = vmatpush1.bf16.msra.mxu0 %v2087
    %2369 = vmatprep.subr.bf16.mxu0 0
    %2370 = vmatpush1.bf16.msra.mxu0 %v2086
    %2371 = vmatprep.subr.bf16.mxu0 0
    %2372 = vmatpush1.bf16.msra.mxu0 %v2085
    %2373 = vmatprep.subr.bf16.mxu0 0
    %2374 = vmatpush1.bf16.msra.mxu0 %v2084
    %2375 = vmatprep.subr.bf16.mxu0 0
    %2376 = vmatpush1.bf16.msra.mxu0 %v2083
    %2377 = vmatprep.subr.bf16.mxu0 0
    %2378 = vmatpush1.bf16.msra.mxu0 %v2082
    %2379 = vmatprep.subr.bf16.mxu0 0
    %2380 = vmatpush2.bf16.msra.mxu0 %v2097
    %2381 = vmatprep.subr.bf16.mxu0 0
    %2382 = vmatpush2.bf16.msra.mxu0 %v2096
    %2383 = vmatprep.subr.bf16.mxu0 0
    %2384 = vmatpush2.bf16.msra.mxu0 %v2095
    %2385 = vmatprep.subr.bf16.mxu0 0
    %2386 = vmatpush2.bf16.msra.mxu0 %v2094
    %2387 = vmatprep.subr.bf16.mxu0 0
    %2388 = vmatpush2.bf16.msra.mxu0 %v2093
    %2389 = vmatprep.subr.bf16.mxu0 0
    %2390 = vmatpush2.bf16.msra.mxu0 %v2092
    %2391 = vmatprep.subr.bf16.mxu0 0
    %2392 = vmatpush2.bf16.msra.mxu0 %v2091
    %2393 = vmatprep.subr.bf16.mxu0 0
    %2394 = vmatpush2.bf16.msra.mxu0 %v2090
    %2395 = vmatprep.mubr.bf16.mxu0 %v1354
    %2396 = vmatmul.mubr.bf16.gmra.mxu0 %v1338
    %v2397 = vpop.f32.mrf.mxu0
    %v2398 = vadd.f32 %v2357, %v2397
    %v2399 = vpop.f32.mrf.mxu0
    %v2400 = vpop.f32.mrf.mxu0
    %v2401 = vadd.f32 %v2360, %v2400
    %v2402 = vpop.f32.mrf.mxu0
    %2403 = vdwg.mxu0
    %2404 = vmatprep.subr.bf16.mxu0 0
    %2405 = vmatpush1.bf16.msra.mxu0 %v2105
    %2406 = vmatprep.subr.bf16.mxu0 0
    %2407 = vmatpush1.bf16.msra.mxu0 %v2104
    %2408 = vmatprep.subr.bf16.mxu0 0
    %2409 = vmatpush1.bf16.msra.mxu0 %v2103
    %2410 = vmatprep.subr.bf16.mxu0 0
    %2411 = vmatpush1.bf16.msra.mxu0 %v2102
    %2412 = vmatprep.subr.bf16.mxu0 0
    %2413 = vmatpush1.bf16.msra.mxu0 %v2101
    %2414 = vmatprep.subr.bf16.mxu0 0
    %2415 = vmatpush1.bf16.msra.mxu0 %v2100
    %2416 = vmatprep.subr.bf16.mxu0 0
    %2417 = vmatpush1.bf16.msra.mxu0 %v2099
    %2418 = vmatprep.subr.bf16.mxu0 0
    %2419 = vmatpush1.bf16.msra.mxu0 %v2098
    %2420 = vmatprep.subr.bf16.mxu0 0
    %2421 = vmatpush2.bf16.msra.mxu0 %v2113
    %2422 = vmatprep.subr.bf16.mxu0 0
    %2423 = vmatpush2.bf16.msra.mxu0 %v2112
    %2424 = vmatprep.subr.bf16.mxu0 0
    %2425 = vmatpush2.bf16.msra.mxu0 %v2111
    %2426 = vmatprep.subr.bf16.mxu0 0
    %2427 = vmatpush2.bf16.msra.mxu0 %v2110
    %2428 = vmatprep.subr.bf16.mxu0 0
    %2429 = vmatpush2.bf16.msra.mxu0 %v2109
    %2430 = vmatprep.subr.bf16.mxu0 0
    %2431 = vmatpush2.bf16.msra.mxu0 %v2108
    %2432 = vmatprep.subr.bf16.mxu0 0
    %2433 = vmatpush2.bf16.msra.mxu0 %v2107
    %2434 = vmatprep.subr.bf16.mxu0 0
    %2435 = vmatpush2.bf16.msra.mxu0 %v2106
    %2436 = vmatprep.mubr.bf16.mxu0 %v1386
    %2437 = vmatmul.mubr.bf16.gmra.mxu0 %v1370
    %v2438 = vpop.f32.mrf.mxu0
    %v2439 = vadd.f32 %v2398, %v2438
    %v2440 = vpop.f32.mrf.mxu0
    %v2441 = vpop.f32.mrf.mxu0
    %v2442 = vadd.f32 %v2401, %v2441
    %v2443 = vpop.f32.mrf.mxu0
    %2444 = vdwg.mxu0
    %2445 = vmatprep.subr.bf16.mxu0 0
    %2446 = vmatpush1.bf16.msra.mxu0 %v2121
    %2447 = vmatprep.subr.bf16.mxu0 0
    %2448 = vmatpush1.bf16.msra.mxu0 %v2120
    %2449 = vmatprep.subr.bf16.mxu0 0
    %2450 = vmatpush1.bf16.msra.mxu0 %v2119
    %2451 = vmatprep.subr.bf16.mxu0 0
    %2452 = vmatpush1.bf16.msra.mxu0 %v2118
    %2453 = vmatprep.subr.bf16.mxu0 0
    %2454 = vmatpush1.bf16.msra.mxu0 %v2117
    %2455 = vmatprep.subr.bf16.mxu0 0
    %2456 = vmatpush1.bf16.msra.mxu0 %v2116
    %2457 = vmatprep.subr.bf16.mxu0 0
    %2458 = vmatpush1.bf16.msra.mxu0 %v2115
    %2459 = vmatprep.subr.bf16.mxu0 0
    %2460 = vmatpush1.bf16.msra.mxu0 %v2114
    %2461 = vmatprep.subr.bf16.mxu0 0
    %2462 = vmatpush2.bf16.msra.mxu0 %v2129
    %2463 = vmatprep.subr.bf16.mxu0 0
    %2464 = vmatpush2.bf16.msra.mxu0 %v2128
    %2465 = vmatprep.subr.bf16.mxu0 0
    %2466 = vmatpush2.bf16.msra.mxu0 %v2127
    %2467 = vmatprep.subr.bf16.mxu0 0
    %2468 = vmatpush2.bf16.msra.mxu0 %v2126
    %2469 = vmatprep.subr.bf16.mxu0 0
    %2470 = vmatpush2.bf16.msra.mxu0 %v2125
    %2471 = vmatprep.subr.bf16.mxu0 0
    %2472 = vmatpush2.bf16.msra.mxu0 %v2124
    %2473 = vmatprep.subr.bf16.mxu0 0
    %2474 = vmatpush2.bf16.msra.mxu0 %v2123
    %2475 = vmatprep.subr.bf16.mxu0 0
    %2476 = vmatpush2.bf16.msra.mxu0 %v2122
    %2477 = vmatprep.mubr.bf16.mxu0 %v1418
    %2478 = vmatmul.mubr.bf16.gmra.mxu0 %v1402
    %v2479 = vpop.f32.mrf.mxu0
    %v2480 = vadd.f32 %v2439, %v2479
    %v2481 = vpop.f32.mrf.mxu0
    %v2482 = vpop.f32.mrf.mxu0
    %v2483 = vadd.f32 %v2442, %v2482
    %v2484 = vpop.f32.mrf.mxu0
    %2485 = vdwg.mxu0
    %2486 = vmatprep.subr.bf16.mxu0 0
    %2487 = vmatpush1.bf16.msra.mxu0 %v2137
    %2488 = vmatprep.subr.bf16.mxu0 0
    %2489 = vmatpush1.bf16.msra.mxu0 %v2136
    %2490 = vmatprep.subr.bf16.mxu0 0
    %2491 = vmatpush1.bf16.msra.mxu0 %v2135
    %2492 = vmatprep.subr.bf16.mxu0 0
    %2493 = vmatpush1.bf16.msra.mxu0 %v2134
    %2494 = vmatprep.subr.bf16.mxu0 0
    %2495 = vmatpush1.bf16.msra.mxu0 %v2133
    %2496 = vmatprep.subr.bf16.mxu0 0
    %2497 = vmatpush1.bf16.msra.mxu0 %v2132
    %2498 = vmatprep.subr.bf16.mxu0 0
    %2499 = vmatpush1.bf16.msra.mxu0 %v2131
    %2500 = vmatprep.subr.bf16.mxu0 0
    %2501 = vmatpush1.bf16.msra.mxu0 %v2130
    %2502 = vmatprep.subr.bf16.mxu0 0
    %2503 = vmatpush2.bf16.msra.mxu0 %v2145
    %2504 = vmatprep.subr.bf16.mxu0 0
    %2505 = vmatpush2.bf16.msra.mxu0 %v2144
    %2506 = vmatprep.subr.bf16.mxu0 0
    %2507 = vmatpush2.bf16.msra.mxu0 %v2143
    %2508 = vmatprep.subr.bf16.mxu0 0
    %2509 = vmatpush2.bf16.msra.mxu0 %v2142
    %2510 = vmatprep.subr.bf16.mxu0 0
    %2511 = vmatpush2.bf16.msra.mxu0 %v2141
    %2512 = vmatprep.subr.bf16.mxu0 0
    %2513 = vmatpush2.bf16.msra.mxu0 %v2140
    %2514 = vmatprep.subr.bf16.mxu0 0
    %2515 = vmatpush2.bf16.msra.mxu0 %v2139
    %2516 = vmatprep.subr.bf16.mxu0 0
    %2517 = vmatpush2.bf16.msra.mxu0 %v2138
    %2518 = vmatprep.mubr.bf16.mxu0 %v1450
    %2519 = vmatmul.mubr.bf16.gmra.mxu0 %v1434
    %v2520 = vpop.f32.mrf.mxu0
    %v2521 = vadd.f32 %v2480, %v2520
    %v2522 = vpop.f32.mrf.mxu0
    %v2523 = vpop.f32.mrf.mxu0
    %v2524 = vadd.f32 %v2483, %v2523
    %v2525 = vpop.f32.mrf.mxu0
    %2526 = vdwg.mxu0
    %2527 = vmatprep.subr.bf16.mxu0 0
    %2528 = vmatpush1.bf16.msra.mxu0 %v2153
    %2529 = vmatprep.subr.bf16.mxu0 0
    %2530 = vmatpush1.bf16.msra.mxu0 %v2152
    %2531 = vmatprep.subr.bf16.mxu0 0
    %2532 = vmatpush1.bf16.msra.mxu0 %v2151
    %2533 = vmatprep.subr.bf16.mxu0 0
    %2534 = vmatpush1.bf16.msra.mxu0 %v2150
    %2535 = vmatprep.subr.bf16.mxu0 0
    %2536 = vmatpush1.bf16.msra.mxu0 %v2149
    %2537 = vmatprep.subr.bf16.mxu0 0
    %2538 = vmatpush1.bf16.msra.mxu0 %v2148
    %2539 = vmatprep.subr.bf16.mxu0 0
    %2540 = vmatpush1.bf16.msra.mxu0 %v2147
    %2541 = vmatprep.subr.bf16.mxu0 0
    %2542 = vmatpush1.bf16.msra.mxu0 %v2146
    %2543 = vmatprep.subr.bf16.mxu0 0
    %2544 = vmatpush2.bf16.msra.mxu0 %v2161
    %2545 = vmatprep.subr.bf16.mxu0 0
    %2546 = vmatpush2.bf16.msra.mxu0 %v2160
    %2547 = vmatprep.subr.bf16.mxu0 0
    %2548 = vmatpush2.bf16.msra.mxu0 %v2159
    %2549 = vmatprep.subr.bf16.mxu0 0
    %2550 = vmatpush2.bf16.msra.mxu0 %v2158
    %2551 = vmatprep.subr.bf16.mxu0 0
    %2552 = vmatpush2.bf16.msra.mxu0 %v2157
    %2553 = vmatprep.subr.bf16.mxu0 0
    %2554 = vmatpush2.bf16.msra.mxu0 %v2156
    %2555 = vmatprep.subr.bf16.mxu0 0
    %2556 = vmatpush2.bf16.msra.mxu0 %v2155
    %2557 = vmatprep.subr.bf16.mxu0 0
    %2558 = vmatpush2.bf16.msra.mxu0 %v2154
    %2559 = vmatprep.mubr.bf16.mxu0 %v1482
    %2560 = vmatmul.mubr.bf16.gmra.mxu0 %v1466
    %v2561 = vpop.f32.mrf.mxu0
    %v2562 = vadd.f32 %v2521, %v2561
    %v2563 = vpop.f32.mrf.mxu0
    %v2564 = vpop.f32.mrf.mxu0
    %v2565 = vadd.f32 %v2524, %v2564
    %v2566 = vpop.f32.mrf.mxu0
    %2567 = vdwg.mxu0
    %2568 = vmatprep.subr.bf16.mxu0 0
    %2569 = vmatpush1.bf16.msra.mxu0 %v2169
    %2570 = vmatprep.subr.bf16.mxu0 0
    %2571 = vmatpush1.bf16.msra.mxu0 %v2168
    %2572 = vmatprep.subr.bf16.mxu0 0
    %2573 = vmatpush1.bf16.msra.mxu0 %v2167
    %2574 = vmatprep.subr.bf16.mxu0 0
    %2575 = vmatpush1.bf16.msra.mxu0 %v2166
    %2576 = vmatprep.subr.bf16.mxu0 0
    %2577 = vmatpush1.bf16.msra.mxu0 %v2165
    %2578 = vmatprep.subr.bf16.mxu0 0
    %2579 = vmatpush1.bf16.msra.mxu0 %v2164
    %2580 = vmatprep.subr.bf16.mxu0 0
    %2581 = vmatpush1.bf16.msra.mxu0 %v2163
    %2582 = vmatprep.subr.bf16.mxu0 0
    %2583 = vmatpush1.bf16.msra.mxu0 %v2162
    %2584 = vmatprep.subr.bf16.mxu0 0
    %2585 = vmatpush2.bf16.msra.mxu0 %v2177
    %2586 = vmatprep.subr.bf16.mxu0 0
    %2587 = vmatpush2.bf16.msra.mxu0 %v2176
    %2588 = vmatprep.subr.bf16.mxu0 0
    %2589 = vmatpush2.bf16.msra.mxu0 %v2175
    %2590 = vmatprep.subr.bf16.mxu0 0
    %2591 = vmatpush2.bf16.msra.mxu0 %v2174
    %2592 = vmatprep.subr.bf16.mxu0 0
    %2593 = vmatpush2.bf16.msra.mxu0 %v2173
    %2594 = vmatprep.subr.bf16.mxu0 0
    %2595 = vmatpush2.bf16.msra.mxu0 %v2172
    %2596 = vmatprep.subr.bf16.mxu0 0
    %2597 = vmatpush2.bf16.msra.mxu0 %v2171
    %2598 = vmatprep.subr.bf16.mxu0 0
    %2599 = vmatpush2.bf16.msra.mxu0 %v2170
    %2600 = vmatprep.mubr.bf16.mxu0 %v1514
    %2601 = vmatmul.mubr.bf16.gmra.mxu0 %v1498
    %v2602 = vpop.f32.mrf.mxu0
    %v2603 = vadd.f32 %v2562, %v2602
    %v2604 = vpop.f32.mrf.mxu0
    %v2605 = vpop.f32.mrf.mxu0
    %v2606 = vadd.f32 %v2565, %v2605
    %v2607 = vpop.f32.mrf.mxu0
    %2608 = vdwg.mxu0
    %2609 = vmatprep.subr.bf16.mxu0 0
    %2610 = vmatpush1.bf16.msra.mxu0 %v2185
    %2611 = vmatprep.subr.bf16.mxu0 0
    %2612 = vmatpush1.bf16.msra.mxu0 %v2184
    %2613 = vmatprep.subr.bf16.mxu0 0
    %2614 = vmatpush1.bf16.msra.mxu0 %v2183
    %2615 = vmatprep.subr.bf16.mxu0 0
    %2616 = vmatpush1.bf16.msra.mxu0 %v2182
    %2617 = vmatprep.subr.bf16.mxu0 0
    %2618 = vmatpush1.bf16.msra.mxu0 %v2181
    %2619 = vmatprep.subr.bf16.mxu0 0
    %2620 = vmatpush1.bf16.msra.mxu0 %v2180
    %2621 = vmatprep.subr.bf16.mxu0 0
    %2622 = vmatpush1.bf16.msra.mxu0 %v2179
    %2623 = vmatprep.subr.bf16.mxu0 0
    %2624 = vmatpush1.bf16.msra.mxu0 %v2178
    %2625 = vmatprep.subr.bf16.mxu0 0
    %2626 = vmatpush2.bf16.msra.mxu0 %v2193
    %2627 = vmatprep.subr.bf16.mxu0 0
    %2628 = vmatpush2.bf16.msra.mxu0 %v2192
    %2629 = vmatprep.subr.bf16.mxu0 0
    %2630 = vmatpush2.bf16.msra.mxu0 %v2191
    %2631 = vmatprep.subr.bf16.mxu0 0
    %2632 = vmatpush2.bf16.msra.mxu0 %v2190
    %2633 = vmatprep.subr.bf16.mxu0 0
    %2634 = vmatpush2.bf16.msra.mxu0 %v2189
    %2635 = vmatprep.subr.bf16.mxu0 0
    %2636 = vmatpush2.bf16.msra.mxu0 %v2188
    %2637 = vmatprep.subr.bf16.mxu0 0
    %2638 = vmatpush2.bf16.msra.mxu0 %v2187
    %2639 = vmatprep.subr.bf16.mxu0 0
    %2640 = vmatpush2.bf16.msra.mxu0 %v2186
    %2641 = vmatprep.mubr.bf16.mxu0 %v1546
    %2642 = vmatmul.mubr.bf16.gmra.mxu0 %v1530
    %v2643 = vpop.f32.mrf.mxu0
    %v2644 = vadd.f32 %v2603, %v2643
    %v2645 = vpop.f32.mrf.mxu0
    %v2646 = vpop.f32.mrf.mxu0
    %v2647 = vadd.f32 %v2606, %v2646
    %v2648 = vpop.f32.mrf.mxu0
    %2649 = vdwg.mxu0
    %vm2650 = vcmask 261120
    %2651 = vst.msk [vmem:[#allocation2] sm:$0xff] %vm2650, %v2644
    %2652 = vst.msk [vmem:[#allocation2 + $0x8] sm:$0xff] %vm2650, %v2647
    %s2653 = scalar_lea.vmem %s0, 1024
    %v2654 = vld [vmem:[%s2653] sm:$0xf]
    %v2655 = vld [vmem:[%s2653 + $0x4] sm:$0xf]
    %v2656 = vld [vmem:[%s2653 + $0x8] sm:$0xf]
    %v2657 = vld [vmem:[%s2653 + $0xc] sm:$0xf]
    %v2658 = vld [vmem:[%s2653 + $0x10] sm:$0xf]
    %v2659 = vld [vmem:[%s2653 + $0x14] sm:$0xf]
    %v2660 = vld [vmem:[%s2653 + $0x18] sm:$0xf]
    %v2661 = vld [vmem:[%s2653 + $0x1c] sm:$0xf]
    %v2662 = vld [vmem:[%s2653 + $0x20] sm:$0xf]
    %v2663 = vld [vmem:[%s2653 + $0x24] sm:$0xf]
    %v2664 = vld [vmem:[%s2653 + $0x28] sm:$0xf]
    %v2665 = vld [vmem:[%s2653 + $0x2c] sm:$0xf]
    %v2666 = vld [vmem:[%s2653 + $0x30] sm:$0xf]
    %v2667 = vld [vmem:[%s2653 + $0x34] sm:$0xf]
    %v2668 = vld [vmem:[%s2653 + $0x38] sm:$0xf]
    %v2669 = vld [vmem:[%s2653 + $0x3c] sm:$0xf]
    %v2670 = vld [vmem:[%s2653 + $0x40] sm:$0xf]
    %v2671 = vld [vmem:[%s2653 + $0x44] sm:$0xf]
    %v2672 = vld [vmem:[%s2653 + $0x48] sm:$0xf]
    %v2673 = vld [vmem:[%s2653 + $0x4c] sm:$0xf]
    %v2674 = vld [vmem:[%s2653 + $0x50] sm:$0xf]
    %v2675 = vld [vmem:[%s2653 + $0x54] sm:$0xf]
    %v2676 = vld [vmem:[%s2653 + $0x58] sm:$0xf]
    %v2677 = vld [vmem:[%s2653 + $0x5c] sm:$0xf]
    %v2678 = vld [vmem:[%s2653 + $0x60] sm:$0xf]
    %v2679 = vld [vmem:[%s2653 + $0x64] sm:$0xf]
    %v2680 = vld [vmem:[%s2653 + $0x68] sm:$0xf]
    %v2681 = vld [vmem:[%s2653 + $0x6c] sm:$0xf]
    %v2682 = vld [vmem:[%s2653 + $0x70] sm:$0xf]
    %v2683 = vld [vmem:[%s2653 + $0x74] sm:$0xf]
    %v2684 = vld [vmem:[%s2653 + $0x78] sm:$0xf]
    %v2685 = vld [vmem:[%s2653 + $0x7c] sm:$0xf]
    %v2686 = vld [vmem:[%s2653 + $0x80] sm:$0xf]
    %v2687 = vld [vmem:[%s2653 + $0x84] sm:$0xf]
    %v2688 = vld [vmem:[%s2653 + $0x88] sm:$0xf]
    %v2689 = vld [vmem:[%s2653 + $0x8c] sm:$0xf]
    %v2690 = vld [vmem:[%s2653 + $0x90] sm:$0xf]
    %v2691 = vld [vmem:[%s2653 + $0x94] sm:$0xf]
    %v2692 = vld [vmem:[%s2653 + $0x98] sm:$0xf]
    %v2693 = vld [vmem:[%s2653 + $0x9c] sm:$0xf]
    %v2694 = vld [vmem:[%s2653 + $0xa0] sm:$0xf]
    %v2695 = vld [vmem:[%s2653 + $0xa4] sm:$0xf]
    %v2696 = vld [vmem:[%s2653 + $0xa8] sm:$0xf]
    %v2697 = vld [vmem:[%s2653 + $0xac] sm:$0xf]
    %v2698 = vld [vmem:[%s2653 + $0xb0] sm:$0xf]
    %v2699 = vld [vmem:[%s2653 + $0xb4] sm:$0xf]
    %v2700 = vld [vmem:[%s2653 + $0xb8] sm:$0xf]
    %v2701 = vld [vmem:[%s2653 + $0xbc] sm:$0xf]
    %v2702 = vld [vmem:[%s2653 + $0xc0] sm:$0xf]
    %v2703 = vld [vmem:[%s2653 + $0xc4] sm:$0xf]
    %v2704 = vld [vmem:[%s2653 + $0xc8] sm:$0xf]
    %v2705 = vld [vmem:[%s2653 + $0xcc] sm:$0xf]
    %v2706 = vld [vmem:[%s2653 + $0xd0] sm:$0xf]
    %v2707 = vld [vmem:[%s2653 + $0xd4] sm:$0xf]
    %v2708 = vld [vmem:[%s2653 + $0xd8] sm:$0xf]
    %v2709 = vld [vmem:[%s2653 + $0xdc] sm:$0xf]
    %v2710 = vld [vmem:[%s2653 + $0xe0] sm:$0xf]
    %v2711 = vld [vmem:[%s2653 + $0xe4] sm:$0xf]
    %v2712 = vld [vmem:[%s2653 + $0xe8] sm:$0xf]
    %v2713 = vld [vmem:[%s2653 + $0xec] sm:$0xf]
    %v2714 = vld [vmem:[%s2653 + $0xf0] sm:$0xf]
    %v2715 = vld [vmem:[%s2653 + $0xf4] sm:$0xf]
    %v2716 = vld [vmem:[%s2653 + $0xf8] sm:$0xf]
    %v2717 = vld [vmem:[%s2653 + $0xfc] sm:$0xf]
    %v2718 = vld [vmem:[%s2653 + $0x100] sm:$0xf]
    %v2719 = vld [vmem:[%s2653 + $0x104] sm:$0xf]
    %v2720 = vld [vmem:[%s2653 + $0x108] sm:$0xf]
    %v2721 = vld [vmem:[%s2653 + $0x10c] sm:$0xf]
    %v2722 = vld [vmem:[%s2653 + $0x110] sm:$0xf]
    %v2723 = vld [vmem:[%s2653 + $0x114] sm:$0xf]
    %v2724 = vld [vmem:[%s2653 + $0x118] sm:$0xf]
    %v2725 = vld [vmem:[%s2653 + $0x11c] sm:$0xf]
    %v2726 = vld [vmem:[%s2653 + $0x120] sm:$0xf]
    %v2727 = vld [vmem:[%s2653 + $0x124] sm:$0xf]
    %v2728 = vld [vmem:[%s2653 + $0x128] sm:$0xf]
    %v2729 = vld [vmem:[%s2653 + $0x12c] sm:$0xf]
    %v2730 = vld [vmem:[%s2653 + $0x130] sm:$0xf]
    %v2731 = vld [vmem:[%s2653 + $0x134] sm:$0xf]
    %v2732 = vld [vmem:[%s2653 + $0x138] sm:$0xf]
    %v2733 = vld [vmem:[%s2653 + $0x13c] sm:$0xf]
    %v2734 = vld [vmem:[%s2653 + $0x140] sm:$0xf]
    %v2735 = vld [vmem:[%s2653 + $0x144] sm:$0xf]
    %v2736 = vld [vmem:[%s2653 + $0x148] sm:$0xf]
    %v2737 = vld [vmem:[%s2653 + $0x14c] sm:$0xf]
    %v2738 = vld [vmem:[%s2653 + $0x150] sm:$0xf]
    %v2739 = vld [vmem:[%s2653 + $0x154] sm:$0xf]
    %v2740 = vld [vmem:[%s2653 + $0x158] sm:$0xf]
    %v2741 = vld [vmem:[%s2653 + $0x15c] sm:$0xf]
    %v2742 = vld [vmem:[%s2653 + $0x160] sm:$0xf]
    %v2743 = vld [vmem:[%s2653 + $0x164] sm:$0xf]
    %v2744 = vld [vmem:[%s2653 + $0x168] sm:$0xf]
    %v2745 = vld [vmem:[%s2653 + $0x16c] sm:$0xf]
    %v2746 = vld [vmem:[%s2653 + $0x170] sm:$0xf]
    %v2747 = vld [vmem:[%s2653 + $0x174] sm:$0xf]
    %v2748 = vld [vmem:[%s2653 + $0x178] sm:$0xf]
    %v2749 = vld [vmem:[%s2653 + $0x17c] sm:$0xf]
    %v2750 = vld [vmem:[%s2653 + $0x180] sm:$0xf]
    %v2751 = vld [vmem:[%s2653 + $0x184] sm:$0xf]
    %v2752 = vld [vmem:[%s2653 + $0x188] sm:$0xf]
    %v2753 = vld [vmem:[%s2653 + $0x18c] sm:$0xf]
    %v2754 = vld [vmem:[%s2653 + $0x190] sm:$0xf]
    %v2755 = vld [vmem:[%s2653 + $0x194] sm:$0xf]
    %v2756 = vld [vmem:[%s2653 + $0x198] sm:$0xf]
    %v2757 = vld [vmem:[%s2653 + $0x19c] sm:$0xf]
    %v2758 = vld [vmem:[%s2653 + $0x1a0] sm:$0xf]
    %v2759 = vld [vmem:[%s2653 + $0x1a4] sm:$0xf]
    %v2760 = vld [vmem:[%s2653 + $0x1a8] sm:$0xf]
    %v2761 = vld [vmem:[%s2653 + $0x1ac] sm:$0xf]
    %v2762 = vld [vmem:[%s2653 + $0x1b0] sm:$0xf]
    %v2763 = vld [vmem:[%s2653 + $0x1b4] sm:$0xf]
    %v2764 = vld [vmem:[%s2653 + $0x1b8] sm:$0xf]
    %v2765 = vld [vmem:[%s2653 + $0x1bc] sm:$0xf]
    %v2766 = vld [vmem:[%s2653 + $0x1c0] sm:$0xf]
    %v2767 = vld [vmem:[%s2653 + $0x1c4] sm:$0xf]
    %v2768 = vld [vmem:[%s2653 + $0x1c8] sm:$0xf]
    %v2769 = vld [vmem:[%s2653 + $0x1cc] sm:$0xf]
    %v2770 = vld [vmem:[%s2653 + $0x1d0] sm:$0xf]
    %v2771 = vld [vmem:[%s2653 + $0x1d4] sm:$0xf]
    %v2772 = vld [vmem:[%s2653 + $0x1d8] sm:$0xf]
    %v2773 = vld [vmem:[%s2653 + $0x1dc] sm:$0xf]
    %v2774 = vld [vmem:[%s2653 + $0x1e0] sm:$0xf]
    %v2775 = vld [vmem:[%s2653 + $0x1e4] sm:$0xf]
    %v2776 = vld [vmem:[%s2653 + $0x1e8] sm:$0xf]
    %v2777 = vld [vmem:[%s2653 + $0x1ec] sm:$0xf]
    %v2778 = vld [vmem:[%s2653 + $0x1f0] sm:$0xf]
    %v2779 = vld [vmem:[%s2653 + $0x1f4] sm:$0xf]
    %v2780 = vld [vmem:[%s2653 + $0x1f8] sm:$0xf]
    %v2781 = vld [vmem:[%s2653 + $0x1fc] sm:$0xf]
    %v2782 = vld [vmem:[%s2653 + $0x200] sm:$0xf]
    %v2783 = vld [vmem:[%s2653 + $0x204] sm:$0xf]
    %v2784 = vld [vmem:[%s2653 + $0x208] sm:$0xf]
    %v2785 = vld [vmem:[%s2653 + $0x20c] sm:$0xf]
    %v2786 = vld [vmem:[%s2653 + $0x210] sm:$0xf]
    %v2787 = vld [vmem:[%s2653 + $0x214] sm:$0xf]
    %v2788 = vld [vmem:[%s2653 + $0x218] sm:$0xf]
    %v2789 = vld [vmem:[%s2653 + $0x21c] sm:$0xf]
    %v2790 = vld [vmem:[%s2653 + $0x220] sm:$0xf]
    %v2791 = vld [vmem:[%s2653 + $0x224] sm:$0xf]
    %v2792 = vld [vmem:[%s2653 + $0x228] sm:$0xf]
    %v2793 = vld [vmem:[%s2653 + $0x22c] sm:$0xf]
    %v2794 = vld [vmem:[%s2653 + $0x230] sm:$0xf]
    %v2795 = vld [vmem:[%s2653 + $0x234] sm:$0xf]
    %v2796 = vld [vmem:[%s2653 + $0x238] sm:$0xf]
    %v2797 = vld [vmem:[%s2653 + $0x23c] sm:$0xf]
    %v2798 = vld [vmem:[%s2653 + $0x240] sm:$0xf]
    %v2799 = vld [vmem:[%s2653 + $0x244] sm:$0xf]
    %v2800 = vld [vmem:[%s2653 + $0x248] sm:$0xf]
    %v2801 = vld [vmem:[%s2653 + $0x24c] sm:$0xf]
    %v2802 = vld [vmem:[%s2653 + $0x250] sm:$0xf]
    %v2803 = vld [vmem:[%s2653 + $0x254] sm:$0xf]
    %v2804 = vld [vmem:[%s2653 + $0x258] sm:$0xf]
    %v2805 = vld [vmem:[%s2653 + $0x25c] sm:$0xf]
    %v2806 = vld [vmem:[%s2653 + $0x260] sm:$0xf]
    %v2807 = vld [vmem:[%s2653 + $0x264] sm:$0xf]
    %v2808 = vld [vmem:[%s2653 + $0x268] sm:$0xf]
    %v2809 = vld [vmem:[%s2653 + $0x26c] sm:$0xf]
    %v2810 = vld [vmem:[%s2653 + $0x270] sm:$0xf]
    %v2811 = vld [vmem:[%s2653 + $0x274] sm:$0xf]
    %v2812 = vld [vmem:[%s2653 + $0x278] sm:$0xf]
    %v2813 = vld [vmem:[%s2653 + $0x27c] sm:$0xf]
    %v2814 = vld [vmem:[%s2653 + $0x280] sm:$0xf]
    %v2815 = vld [vmem:[%s2653 + $0x284] sm:$0xf]
    %v2816 = vld [vmem:[%s2653 + $0x288] sm:$0xf]
    %v2817 = vld [vmem:[%s2653 + $0x28c] sm:$0xf]
    %v2818 = vld [vmem:[%s2653 + $0x290] sm:$0xf]
    %v2819 = vld [vmem:[%s2653 + $0x294] sm:$0xf]
    %v2820 = vld [vmem:[%s2653 + $0x298] sm:$0xf]
    %v2821 = vld [vmem:[%s2653 + $0x29c] sm:$0xf]
    %v2822 = vld [vmem:[%s2653 + $0x2a0] sm:$0xf]
    %v2823 = vld [vmem:[%s2653 + $0x2a4] sm:$0xf]
    %v2824 = vld [vmem:[%s2653 + $0x2a8] sm:$0xf]
    %v2825 = vld [vmem:[%s2653 + $0x2ac] sm:$0xf]
    %v2826 = vld [vmem:[%s2653 + $0x2b0] sm:$0xf]
    %v2827 = vld [vmem:[%s2653 + $0x2b4] sm:$0xf]
    %v2828 = vld [vmem:[%s2653 + $0x2b8] sm:$0xf]
    %v2829 = vld [vmem:[%s2653 + $0x2bc] sm:$0xf]
    %v2830 = vld [vmem:[%s2653 + $0x2c0] sm:$0xf]
    %v2831 = vld [vmem:[%s2653 + $0x2c4] sm:$0xf]
    %v2832 = vld [vmem:[%s2653 + $0x2c8] sm:$0xf]
    %v2833 = vld [vmem:[%s2653 + $0x2cc] sm:$0xf]
    %v2834 = vld [vmem:[%s2653 + $0x2d0] sm:$0xf]
    %v2835 = vld [vmem:[%s2653 + $0x2d4] sm:$0xf]
    %v2836 = vld [vmem:[%s2653 + $0x2d8] sm:$0xf]
    %v2837 = vld [vmem:[%s2653 + $0x2dc] sm:$0xf]
    %v2838 = vld [vmem:[%s2653 + $0x2e0] sm:$0xf]
    %v2839 = vld [vmem:[%s2653 + $0x2e4] sm:$0xf]
    %v2840 = vld [vmem:[%s2653 + $0x2e8] sm:$0xf]
    %v2841 = vld [vmem:[%s2653 + $0x2ec] sm:$0xf]
    %v2842 = vld [vmem:[%s2653 + $0x2f0] sm:$0xf]
    %v2843 = vld [vmem:[%s2653 + $0x2f4] sm:$0xf]
    %v2844 = vld [vmem:[%s2653 + $0x2f8] sm:$0xf]
    %v2845 = vld [vmem:[%s2653 + $0x2fc] sm:$0xf]
    %v2846 = vld [vmem:[%s2653 + $0x300] sm:$0xf]
    %v2847 = vld [vmem:[%s2653 + $0x304] sm:$0xf]
    %v2848 = vld [vmem:[%s2653 + $0x308] sm:$0xf]
    %v2849 = vld [vmem:[%s2653 + $0x30c] sm:$0xf]
    %v2850 = vld [vmem:[%s2653 + $0x310] sm:$0xf]
    %v2851 = vld [vmem:[%s2653 + $0x314] sm:$0xf]
    %v2852 = vld [vmem:[%s2653 + $0x318] sm:$0xf]
    %v2853 = vld [vmem:[%s2653 + $0x31c] sm:$0xf]
    %v2854 = vld [vmem:[%s2653 + $0x320] sm:$0xf]
    %v2855 = vld [vmem:[%s2653 + $0x324] sm:$0xf]
    %v2856 = vld [vmem:[%s2653 + $0x328] sm:$0xf]
    %v2857 = vld [vmem:[%s2653 + $0x32c] sm:$0xf]
    %v2858 = vld [vmem:[%s2653 + $0x330] sm:$0xf]
    %v2859 = vld [vmem:[%s2653 + $0x334] sm:$0xf]
    %v2860 = vld [vmem:[%s2653 + $0x338] sm:$0xf]
    %v2861 = vld [vmem:[%s2653 + $0x33c] sm:$0xf]
    %v2862 = vld [vmem:[%s2653 + $0x340] sm:$0xf]
    %v2863 = vld [vmem:[%s2653 + $0x344] sm:$0xf]
    %v2864 = vld [vmem:[%s2653 + $0x348] sm:$0xf]
    %v2865 = vld [vmem:[%s2653 + $0x34c] sm:$0xf]
    %v2866 = vld [vmem:[%s2653 + $0x350] sm:$0xf]
    %v2867 = vld [vmem:[%s2653 + $0x354] sm:$0xf]
    %v2868 = vld [vmem:[%s2653 + $0x358] sm:$0xf]
    %v2869 = vld [vmem:[%s2653 + $0x35c] sm:$0xf]
    %v2870 = vld [vmem:[%s2653 + $0x360] sm:$0xf]
    %v2871 = vld [vmem:[%s2653 + $0x364] sm:$0xf]
    %v2872 = vld [vmem:[%s2653 + $0x368] sm:$0xf]
    %v2873 = vld [vmem:[%s2653 + $0x36c] sm:$0xf]
    %v2874 = vld [vmem:[%s2653 + $0x370] sm:$0xf]
    %v2875 = vld [vmem:[%s2653 + $0x374] sm:$0xf]
    %v2876 = vld [vmem:[%s2653 + $0x378] sm:$0xf]
    %v2877 = vld [vmem:[%s2653 + $0x37c] sm:$0xf]
    %v2878 = vld [vmem:[%s2653 + $0x380] sm:$0xf]
    %v2879 = vld [vmem:[%s2653 + $0x384] sm:$0xf]
    %v2880 = vld [vmem:[%s2653 + $0x388] sm:$0xf]
    %v2881 = vld [vmem:[%s2653 + $0x38c] sm:$0xf]
    %v2882 = vld [vmem:[%s2653 + $0x390] sm:$0xf]
    %v2883 = vld [vmem:[%s2653 + $0x394] sm:$0xf]
    %v2884 = vld [vmem:[%s2653 + $0x398] sm:$0xf]
    %v2885 = vld [vmem:[%s2653 + $0x39c] sm:$0xf]
    %v2886 = vld [vmem:[%s2653 + $0x3a0] sm:$0xf]
    %v2887 = vld [vmem:[%s2653 + $0x3a4] sm:$0xf]
    %v2888 = vld [vmem:[%s2653 + $0x3a8] sm:$0xf]
    %v2889 = vld [vmem:[%s2653 + $0x3ac] sm:$0xf]
    %v2890 = vld [vmem:[%s2653 + $0x3b0] sm:$0xf]
    %v2891 = vld [vmem:[%s2653 + $0x3b4] sm:$0xf]
    %v2892 = vld [vmem:[%s2653 + $0x3b8] sm:$0xf]
    %v2893 = vld [vmem:[%s2653 + $0x3bc] sm:$0xf]
    %v2894 = vld [vmem:[%s2653 + $0x3c0] sm:$0xf]
    %v2895 = vld [vmem:[%s2653 + $0x3c4] sm:$0xf]
    %v2896 = vld [vmem:[%s2653 + $0x3c8] sm:$0xf]
    %v2897 = vld [vmem:[%s2653 + $0x3cc] sm:$0xf]
    %v2898 = vld [vmem:[%s2653 + $0x3d0] sm:$0xf]
    %v2899 = vld [vmem:[%s2653 + $0x3d4] sm:$0xf]
    %v2900 = vld [vmem:[%s2653 + $0x3d8] sm:$0xf]
    %v2901 = vld [vmem:[%s2653 + $0x3dc] sm:$0xf]
    %v2902 = vld [vmem:[%s2653 + $0x3e0] sm:$0xf]
    %v2903 = vld [vmem:[%s2653 + $0x3e4] sm:$0xf]
    %v2904 = vld [vmem:[%s2653 + $0x3e8] sm:$0xf]
    %v2905 = vld [vmem:[%s2653 + $0x3ec] sm:$0xf]
    %v2906 = vld [vmem:[%s2653 + $0x3f0] sm:$0xf]
    %v2907 = vld [vmem:[%s2653 + $0x3f4] sm:$0xf]
    %v2908 = vld [vmem:[%s2653 + $0x3f8] sm:$0xf]
    %v2909 = vld [vmem:[%s2653 + $0x3fc] sm:$0xf]
    %v3166 = vunpack.c.l.b16 %v2654
    %v3167 = vunpack.c.l.b16 %v2655
    %v3168 = vunpack.c.l.b16 %v2656
    %v3169 = vunpack.c.l.b16 %v2657
    %v3170 = vunpack.c.l.b16 %v2658
    %v3171 = vunpack.c.l.b16 %v2659
    %v3172 = vunpack.c.l.b16 %v2660
    %v3173 = vunpack.c.l.b16 %v2661
    %v3174 = vunpack.c.l.b16 %v2662
    %v3175 = vunpack.c.l.b16 %v2663
    %v3176 = vunpack.c.l.b16 %v2664
    %v3177 = vunpack.c.l.b16 %v2665
    %v3178 = vunpack.c.l.b16 %v2666
    %v3179 = vunpack.c.l.b16 %v2667
    %v3180 = vunpack.c.l.b16 %v2668
    %v3181 = vunpack.c.l.b16 %v2669
    %v3182 = vunpack.c.l.b16 %v2670
    %v3183 = vunpack.c.l.b16 %v2671
    %v3184 = vunpack.c.l.b16 %v2672
    %v3185 = vunpack.c.l.b16 %v2673
    %v3186 = vunpack.c.l.b16 %v2674
    %v3187 = vunpack.c.l.b16 %v2675
    %v3188 = vunpack.c.l.b16 %v2676
    %v3189 = vunpack.c.l.b16 %v2677
    %v3190 = vunpack.c.l.b16 %v2678
    %v3191 = vunpack.c.l.b16 %v2679
    %v3192 = vunpack.c.l.b16 %v2680
    %v3193 = vunpack.c.l.b16 %v2681
    %v3194 = vunpack.c.l.b16 %v2682
    %v3195 = vunpack.c.l.b16 %v2683
    %v3196 = vunpack.c.l.b16 %v2684
    %v3197 = vunpack.c.l.b16 %v2685
    %v3198 = vunpack.c.l.b16 %v2686
    %v3199 = vunpack.c.l.b16 %v2687
    %v3200 = vunpack.c.l.b16 %v2688
    %v3201 = vunpack.c.l.b16 %v2689
    %v3202 = vunpack.c.l.b16 %v2690
    %v3203 = vunpack.c.l.b16 %v2691
    %v3204 = vunpack.c.l.b16 %v2692
    %v3205 = vunpack.c.l.b16 %v2693
    %v3206 = vunpack.c.l.b16 %v2694
    %v3207 = vunpack.c.l.b16 %v2695
    %v3208 = vunpack.c.l.b16 %v2696
    %v3209 = vunpack.c.l.b16 %v2697
    %v3210 = vunpack.c.l.b16 %v2698
    %v3211 = vunpack.c.l.b16 %v2699
    %v3212 = vunpack.c.l.b16 %v2700
    %v3213 = vunpack.c.l.b16 %v2701
    %v3214 = vunpack.c.l.b16 %v2702
    %v3215 = vunpack.c.l.b16 %v2703
    %v3216 = vunpack.c.l.b16 %v2704
    %v3217 = vunpack.c.l.b16 %v2705
    %v3218 = vunpack.c.l.b16 %v2706
    %v3219 = vunpack.c.l.b16 %v2707
    %v3220 = vunpack.c.l.b16 %v2708
    %v3221 = vunpack.c.l.b16 %v2709
    %v3222 = vunpack.c.l.b16 %v2710
    %v3223 = vunpack.c.l.b16 %v2711
    %v3224 = vunpack.c.l.b16 %v2712
    %v3225 = vunpack.c.l.b16 %v2713
    %v3226 = vunpack.c.l.b16 %v2714
    %v3227 = vunpack.c.l.b16 %v2715
    %v3228 = vunpack.c.l.b16 %v2716
    %v3229 = vunpack.c.l.b16 %v2717
    %v3230 = vunpack.c.l.b16 %v2718
    %v3231 = vunpack.c.l.b16 %v2719
    %v3232 = vunpack.c.l.b16 %v2720
    %v3233 = vunpack.c.l.b16 %v2721
    %v3234 = vunpack.c.l.b16 %v2722
    %v3235 = vunpack.c.l.b16 %v2723
    %v3236 = vunpack.c.l.b16 %v2724
    %v3237 = vunpack.c.l.b16 %v2725
    %v3238 = vunpack.c.l.b16 %v2726
    %v3239 = vunpack.c.l.b16 %v2727
    %v3240 = vunpack.c.l.b16 %v2728
    %v3241 = vunpack.c.l.b16 %v2729
    %v3242 = vunpack.c.l.b16 %v2730
    %v3243 = vunpack.c.l.b16 %v2731
    %v3244 = vunpack.c.l.b16 %v2732
    %v3245 = vunpack.c.l.b16 %v2733
    %v3246 = vunpack.c.l.b16 %v2734
    %v3247 = vunpack.c.l.b16 %v2735
    %v3248 = vunpack.c.l.b16 %v2736
    %v3249 = vunpack.c.l.b16 %v2737
    %v3250 = vunpack.c.l.b16 %v2738
    %v3251 = vunpack.c.l.b16 %v2739
    %v3252 = vunpack.c.l.b16 %v2740
    %v3253 = vunpack.c.l.b16 %v2741
    %v3254 = vunpack.c.l.b16 %v2742
    %v3255 = vunpack.c.l.b16 %v2743
    %v3256 = vunpack.c.l.b16 %v2744
    %v3257 = vunpack.c.l.b16 %v2745
    %v3258 = vunpack.c.l.b16 %v2746
    %v3259 = vunpack.c.l.b16 %v2747
    %v3260 = vunpack.c.l.b16 %v2748
    %v3261 = vunpack.c.l.b16 %v2749
    %v3262 = vunpack.c.l.b16 %v2750
    %v3263 = vunpack.c.l.b16 %v2751
    %v3264 = vunpack.c.l.b16 %v2752
    %v3265 = vunpack.c.l.b16 %v2753
    %v3266 = vunpack.c.l.b16 %v2754
    %v3267 = vunpack.c.l.b16 %v2755
    %v3268 = vunpack.c.l.b16 %v2756
    %v3269 = vunpack.c.l.b16 %v2757
    %v3270 = vunpack.c.l.b16 %v2758
    %v3271 = vunpack.c.l.b16 %v2759
    %v3272 = vunpack.c.l.b16 %v2760
    %v3273 = vunpack.c.l.b16 %v2761
    %v3274 = vunpack.c.l.b16 %v2762
    %v3275 = vunpack.c.l.b16 %v2763
    %v3276 = vunpack.c.l.b16 %v2764
    %v3277 = vunpack.c.l.b16 %v2765
    %v3278 = vunpack.c.l.b16 %v2766
    %v3279 = vunpack.c.l.b16 %v2767
    %v3280 = vunpack.c.l.b16 %v2768
    %v3281 = vunpack.c.l.b16 %v2769
    %v3282 = vunpack.c.l.b16 %v2770
    %v3283 = vunpack.c.l.b16 %v2771
    %v3284 = vunpack.c.l.b16 %v2772
    %v3285 = vunpack.c.l.b16 %v2773
    %v3286 = vunpack.c.l.b16 %v2774
    %v3287 = vunpack.c.l.b16 %v2775
    %v3288 = vunpack.c.l.b16 %v2776
    %v3289 = vunpack.c.l.b16 %v2777
    %v3290 = vunpack.c.l.b16 %v2778
    %v3291 = vunpack.c.l.b16 %v2779
    %v3292 = vunpack.c.l.b16 %v2780
    %v3293 = vunpack.c.l.b16 %v2781
    %v3294 = vunpack.c.l.b16 %v2782
    %v3295 = vunpack.c.l.b16 %v2783
    %v3296 = vunpack.c.l.b16 %v2784
    %v3297 = vunpack.c.l.b16 %v2785
    %v3298 = vunpack.c.l.b16 %v2786
    %v3299 = vunpack.c.l.b16 %v2787
    %v3300 = vunpack.c.l.b16 %v2788
    %v3301 = vunpack.c.l.b16 %v2789
    %v3302 = vunpack.c.l.b16 %v2790
    %v3303 = vunpack.c.l.b16 %v2791
    %v3304 = vunpack.c.l.b16 %v2792
    %v3305 = vunpack.c.l.b16 %v2793
    %v3306 = vunpack.c.l.b16 %v2794
    %v3307 = vunpack.c.l.b16 %v2795
    %v3308 = vunpack.c.l.b16 %v2796
    %v3309 = vunpack.c.l.b16 %v2797
    %v3310 = vunpack.c.l.b16 %v2798
    %v3311 = vunpack.c.l.b16 %v2799
    %v3312 = vunpack.c.l.b16 %v2800
    %v3313 = vunpack.c.l.b16 %v2801
    %v3314 = vunpack.c.l.b16 %v2802
    %v3315 = vunpack.c.l.b16 %v2803
    %v3316 = vunpack.c.l.b16 %v2804
    %v3317 = vunpack.c.l.b16 %v2805
    %v3318 = vunpack.c.l.b16 %v2806
    %v3319 = vunpack.c.l.b16 %v2807
    %v3320 = vunpack.c.l.b16 %v2808
    %v3321 = vunpack.c.l.b16 %v2809
    %v3322 = vunpack.c.l.b16 %v2810
    %v3323 = vunpack.c.l.b16 %v2811
    %v3324 = vunpack.c.l.b16 %v2812
    %v3325 = vunpack.c.l.b16 %v2813
    %v3326 = vunpack.c.l.b16 %v2814
    %v3327 = vunpack.c.l.b16 %v2815
    %v3328 = vunpack.c.l.b16 %v2816
    %v3329 = vunpack.c.l.b16 %v2817
    %v3330 = vunpack.c.l.b16 %v2818
    %v3331 = vunpack.c.l.b16 %v2819
    %v3332 = vunpack.c.l.b16 %v2820
    %v3333 = vunpack.c.l.b16 %v2821
    %v3334 = vunpack.c.l.b16 %v2822
    %v3335 = vunpack.c.l.b16 %v2823
    %v3336 = vunpack.c.l.b16 %v2824
    %v3337 = vunpack.c.l.b16 %v2825
    %v3338 = vunpack.c.l.b16 %v2826
    %v3339 = vunpack.c.l.b16 %v2827
    %v3340 = vunpack.c.l.b16 %v2828
    %v3341 = vunpack.c.l.b16 %v2829
    %v3342 = vunpack.c.l.b16 %v2830
    %v3343 = vunpack.c.l.b16 %v2831
    %v3344 = vunpack.c.l.b16 %v2832
    %v3345 = vunpack.c.l.b16 %v2833
    %v3346 = vunpack.c.l.b16 %v2834
    %v3347 = vunpack.c.l.b16 %v2835
    %v3348 = vunpack.c.l.b16 %v2836
    %v3349 = vunpack.c.l.b16 %v2837
    %v3350 = vunpack.c.l.b16 %v2838
    %v3351 = vunpack.c.l.b16 %v2839
    %v3352 = vunpack.c.l.b16 %v2840
    %v3353 = vunpack.c.l.b16 %v2841
    %v3354 = vunpack.c.l.b16 %v2842
    %v3355 = vunpack.c.l.b16 %v2843
    %v3356 = vunpack.c.l.b16 %v2844
    %v3357 = vunpack.c.l.b16 %v2845
    %v3358 = vunpack.c.l.b16 %v2846
    %v3359 = vunpack.c.l.b16 %v2847
    %v3360 = vunpack.c.l.b16 %v2848
    %v3361 = vunpack.c.l.b16 %v2849
    %v3362 = vunpack.c.l.b16 %v2850
    %v3363 = vunpack.c.l.b16 %v2851
    %v3364 = vunpack.c.l.b16 %v2852
    %v3365 = vunpack.c.l.b16 %v2853
    %v3366 = vunpack.c.l.b16 %v2854
    %v3367 = vunpack.c.l.b16 %v2855
    %v3368 = vunpack.c.l.b16 %v2856
    %v3369 = vunpack.c.l.b16 %v2857
    %v3370 = vunpack.c.l.b16 %v2858
    %v3371 = vunpack.c.l.b16 %v2859
    %v3372 = vunpack.c.l.b16 %v2860
    %v3373 = vunpack.c.l.b16 %v2861
    %v3374 = vunpack.c.l.b16 %v2862
    %v3375 = vunpack.c.l.b16 %v2863
    %v3376 = vunpack.c.l.b16 %v2864
    %v3377 = vunpack.c.l.b16 %v2865
    %v3378 = vunpack.c.l.b16 %v2866
    %v3379 = vunpack.c.l.b16 %v2867
    %v3380 = vunpack.c.l.b16 %v2868
    %v3381 = vunpack.c.l.b16 %v2869
    %v3382 = vunpack.c.l.b16 %v2870
    %v3383 = vunpack.c.l.b16 %v2871
    %v3384 = vunpack.c.l.b16 %v2872
    %v3385 = vunpack.c.l.b16 %v2873
    %v3386 = vunpack.c.l.b16 %v2874
    %v3387 = vunpack.c.l.b16 %v2875
    %v3388 = vunpack.c.l.b16 %v2876
    %v3389 = vunpack.c.l.b16 %v2877
    %v3390 = vunpack.c.l.b16 %v2878
    %v3391 = vunpack.c.l.b16 %v2879
    %v3392 = vunpack.c.l.b16 %v2880
    %v3393 = vunpack.c.l.b16 %v2881
    %v3394 = vunpack.c.l.b16 %v2882
    %v3395 = vunpack.c.l.b16 %v2883
    %v3396 = vunpack.c.l.b16 %v2884
    %v3397 = vunpack.c.l.b16 %v2885
    %v3398 = vunpack.c.l.b16 %v2886
    %v3399 = vunpack.c.l.b16 %v2887
    %v3400 = vunpack.c.l.b16 %v2888
    %v3401 = vunpack.c.l.b16 %v2889
    %v3402 = vunpack.c.l.b16 %v2890
    %v3403 = vunpack.c.l.b16 %v2891
    %v3404 = vunpack.c.l.b16 %v2892
    %v3405 = vunpack.c.l.b16 %v2893
    %v3406 = vunpack.c.l.b16 %v2894
    %v3407 = vunpack.c.l.b16 %v2895
    %v3408 = vunpack.c.l.b16 %v2896
    %v3409 = vunpack.c.l.b16 %v2897
    %v3410 = vunpack.c.l.b16 %v2898
    %v3411 = vunpack.c.l.b16 %v2899
    %v3412 = vunpack.c.l.b16 %v2900
    %v3413 = vunpack.c.l.b16 %v2901
    %v3414 = vunpack.c.l.b16 %v2902
    %v3415 = vunpack.c.l.b16 %v2903
    %v3416 = vunpack.c.l.b16 %v2904
    %v3417 = vunpack.c.l.b16 %v2905
    %v3418 = vunpack.c.l.b16 %v2906
    %v3419 = vunpack.c.l.b16 %v2907
    %v3420 = vunpack.c.l.b16 %v2908
    %v3421 = vunpack.c.l.b16 %v2909
    %v3422 = vpack.c.b16 %v3167, %v3166
    %v3423 = vpack.c.b16 %v3169, %v3168
    %v3424 = vpack.c.b16 %v3171, %v3170
    %v3425 = vpack.c.b16 %v3173, %v3172
    %v3426 = vpack.c.b16 %v3175, %v3174
    %v3427 = vpack.c.b16 %v3177, %v3176
    %v3428 = vpack.c.b16 %v3179, %v3178
    %v3429 = vpack.c.b16 %v3181, %v3180
    %v3430 = vpack.c.b16 %v3183, %v3182
    %v3431 = vpack.c.b16 %v3185, %v3184
    %v3432 = vpack.c.b16 %v3187, %v3186
    %v3433 = vpack.c.b16 %v3189, %v3188
    %v3434 = vpack.c.b16 %v3191, %v3190
    %v3435 = vpack.c.b16 %v3193, %v3192
    %v3436 = vpack.c.b16 %v3195, %v3194
    %v3437 = vpack.c.b16 %v3197, %v3196
    %v3438 = vpack.c.b16 %v3199, %v3198
    %v3439 = vpack.c.b16 %v3201, %v3200
    %v3440 = vpack.c.b16 %v3203, %v3202
    %v3441 = vpack.c.b16 %v3205, %v3204
    %v3442 = vpack.c.b16 %v3207, %v3206
    %v3443 = vpack.c.b16 %v3209, %v3208
    %v3444 = vpack.c.b16 %v3211, %v3210
    %v3445 = vpack.c.b16 %v3213, %v3212
    %v3446 = vpack.c.b16 %v3215, %v3214
    %v3447 = vpack.c.b16 %v3217, %v3216
    %v3448 = vpack.c.b16 %v3219, %v3218
    %v3449 = vpack.c.b16 %v3221, %v3220
    %v3450 = vpack.c.b16 %v3223, %v3222
    %v3451 = vpack.c.b16 %v3225, %v3224
    %v3452 = vpack.c.b16 %v3227, %v3226
    %v3453 = vpack.c.b16 %v3229, %v3228
    %v3454 = vpack.c.b16 %v3231, %v3230
    %v3455 = vpack.c.b16 %v3233, %v3232
    %v3456 = vpack.c.b16 %v3235, %v3234
    %v3457 = vpack.c.b16 %v3237, %v3236
    %v3458 = vpack.c.b16 %v3239, %v3238
    %v3459 = vpack.c.b16 %v3241, %v3240
    %v3460 = vpack.c.b16 %v3243, %v3242
    %v3461 = vpack.c.b16 %v3245, %v3244
    %v3462 = vpack.c.b16 %v3247, %v3246
    %v3463 = vpack.c.b16 %v3249, %v3248
    %v3464 = vpack.c.b16 %v3251, %v3250
    %v3465 = vpack.c.b16 %v3253, %v3252
    %v3466 = vpack.c.b16 %v3255, %v3254
    %v3467 = vpack.c.b16 %v3257, %v3256
    %v3468 = vpack.c.b16 %v3259, %v3258
    %v3469 = vpack.c.b16 %v3261, %v3260
    %v3470 = vpack.c.b16 %v3263, %v3262
    %v3471 = vpack.c.b16 %v3265, %v3264
    %v3472 = vpack.c.b16 %v3267, %v3266
    %v3473 = vpack.c.b16 %v3269, %v3268
    %v3474 = vpack.c.b16 %v3271, %v3270
    %v3475 = vpack.c.b16 %v3273, %v3272
    %v3476 = vpack.c.b16 %v3275, %v3274
    %v3477 = vpack.c.b16 %v3277, %v3276
    %v3478 = vpack.c.b16 %v3279, %v3278
    %v3479 = vpack.c.b16 %v3281, %v3280
    %v3480 = vpack.c.b16 %v3283, %v3282
    %v3481 = vpack.c.b16 %v3285, %v3284
    %v3482 = vpack.c.b16 %v3287, %v3286
    %v3483 = vpack.c.b16 %v3289, %v3288
    %v3484 = vpack.c.b16 %v3291, %v3290
    %v3485 = vpack.c.b16 %v3293, %v3292
    %v3486 = vpack.c.b16 %v3295, %v3294
    %v3487 = vpack.c.b16 %v3297, %v3296
    %v3488 = vpack.c.b16 %v3299, %v3298
    %v3489 = vpack.c.b16 %v3301, %v3300
    %v3490 = vpack.c.b16 %v3303, %v3302
    %v3491 = vpack.c.b16 %v3305, %v3304
    %v3492 = vpack.c.b16 %v3307, %v3306
    %v3493 = vpack.c.b16 %v3309, %v3308
    %v3494 = vpack.c.b16 %v3311, %v3310
    %v3495 = vpack.c.b16 %v3313, %v3312
    %v3496 = vpack.c.b16 %v3315, %v3314
    %v3497 = vpack.c.b16 %v3317, %v3316
    %v3498 = vpack.c.b16 %v3319, %v3318
    %v3499 = vpack.c.b16 %v3321, %v3320
    %v3500 = vpack.c.b16 %v3323, %v3322
    %v3501 = vpack.c.b16 %v3325, %v3324
    %v3502 = vpack.c.b16 %v3327, %v3326
    %v3503 = vpack.c.b16 %v3329, %v3328
    %v3504 = vpack.c.b16 %v3331, %v3330
    %v3505 = vpack.c.b16 %v3333, %v3332
    %v3506 = vpack.c.b16 %v3335, %v3334
    %v3507 = vpack.c.b16 %v3337, %v3336
    %v3508 = vpack.c.b16 %v3339, %v3338
    %v3509 = vpack.c.b16 %v3341, %v3340
    %v3510 = vpack.c.b16 %v3343, %v3342
    %v3511 = vpack.c.b16 %v3345, %v3344
    %v3512 = vpack.c.b16 %v3347, %v3346
    %v3513 = vpack.c.b16 %v3349, %v3348
    %v3514 = vpack.c.b16 %v3351, %v3350
    %v3515 = vpack.c.b16 %v3353, %v3352
    %v3516 = vpack.c.b16 %v3355, %v3354
    %v3517 = vpack.c.b16 %v3357, %v3356
    %v3518 = vpack.c.b16 %v3359, %v3358
    %v3519 = vpack.c.b16 %v3361, %v3360
    %v3520 = vpack.c.b16 %v3363, %v3362
    %v3521 = vpack.c.b16 %v3365, %v3364
    %v3522 = vpack.c.b16 %v3367, %v3366
    %v3523 = vpack.c.b16 %v3369, %v3368
    %v3524 = vpack.c.b16 %v3371, %v3370
    %v3525 = vpack.c.b16 %v3373, %v3372
    %v3526 = vpack.c.b16 %v3375, %v3374
    %v3527 = vpack.c.b16 %v3377, %v3376
    %v3528 = vpack.c.b16 %v3379, %v3378
    %v3529 = vpack.c.b16 %v3381, %v3380
    %v3530 = vpack.c.b16 %v3383, %v3382
    %v3531 = vpack.c.b16 %v3385, %v3384
    %v3532 = vpack.c.b16 %v3387, %v3386
    %v3533 = vpack.c.b16 %v3389, %v3388
    %v3534 = vpack.c.b16 %v3391, %v3390
    %v3535 = vpack.c.b16 %v3393, %v3392
    %v3536 = vpack.c.b16 %v3395, %v3394
    %v3537 = vpack.c.b16 %v3397, %v3396
    %v3538 = vpack.c.b16 %v3399, %v3398
    %v3539 = vpack.c.b16 %v3401, %v3400
    %v3540 = vpack.c.b16 %v3403, %v3402
    %v3541 = vpack.c.b16 %v3405, %v3404
    %v3542 = vpack.c.b16 %v3407, %v3406
    %v3543 = vpack.c.b16 %v3409, %v3408
    %v3544 = vpack.c.b16 %v3411, %v3410
    %v3545 = vpack.c.b16 %v3413, %v3412
    %v3546 = vpack.c.b16 %v3415, %v3414
    %v3547 = vpack.c.b16 %v3417, %v3416
    %v3548 = vpack.c.b16 %v3419, %v3418
    %v3549 = vpack.c.b16 %v3421, %v3420
    %3678 = vxpose.xlu0.c.b16.start [1/8] %v3422, 128
    %3679 = vxpose.xlu0.c.b16.cont [2/8] %v3423, 128
    %3680 = vxpose.xlu0.c.b16.cont [3/8] %v3424, 128
    %3681 = vxpose.xlu0.c.b16.cont [4/8] %v3425, 128
    %3682 = vxpose.xlu0.c.b16.cont [5/8] %v3426, 128
    %3683 = vxpose.xlu0.c.b16.cont [6/8] %v3427, 128
    %3684 = vxpose.xlu0.c.b16.cont [7/8] %v3428, 128
    %3685 = vxpose.xlu0.c.b16.end [8/8] %v3429, 128
    %v3686 = vpop.trf.xlu0
    %v3687 = vpop.trf.xlu0
    %v3688 = vpop.trf.xlu0
    %v3689 = vpop.trf.xlu0
    %v3690 = vpop.trf.xlu0
    %v3691 = vpop.trf.xlu0
    %v3692 = vpop.trf.xlu0
    %v3693 = vpop.trf.xlu0
    %3694 = vxpose.xlu0.c.b16.start [1/8] %v3430, 128
    %3695 = vxpose.xlu0.c.b16.cont [2/8] %v3431, 128
    %3696 = vxpose.xlu0.c.b16.cont [3/8] %v3432, 128
    %3697 = vxpose.xlu0.c.b16.cont [4/8] %v3433, 128
    %3698 = vxpose.xlu0.c.b16.cont [5/8] %v3434, 128
    %3699 = vxpose.xlu0.c.b16.cont [6/8] %v3435, 128
    %3700 = vxpose.xlu0.c.b16.cont [7/8] %v3436, 128
    %3701 = vxpose.xlu0.c.b16.end [8/8] %v3437, 128
    %v3702 = vpop.trf.xlu0
    %v3703 = vpop.trf.xlu0
    %v3704 = vpop.trf.xlu0
    %v3705 = vpop.trf.xlu0
    %v3706 = vpop.trf.xlu0
    %v3707 = vpop.trf.xlu0
    %v3708 = vpop.trf.xlu0
    %v3709 = vpop.trf.xlu0
    %3710 = vxpose.xlu0.c.b16.start [1/8] %v3438, 128
    %3711 = vxpose.xlu0.c.b16.cont [2/8] %v3439, 128
    %3712 = vxpose.xlu0.c.b16.cont [3/8] %v3440, 128
    %3713 = vxpose.xlu0.c.b16.cont [4/8] %v3441, 128
    %3714 = vxpose.xlu0.c.b16.cont [5/8] %v3442, 128
    %3715 = vxpose.xlu0.c.b16.cont [6/8] %v3443, 128
    %3716 = vxpose.xlu0.c.b16.cont [7/8] %v3444, 128
    %3717 = vxpose.xlu0.c.b16.end [8/8] %v3445, 128
    %v3718 = vpop.trf.xlu0
    %v3719 = vpop.trf.xlu0
    %v3720 = vpop.trf.xlu0
    %v3721 = vpop.trf.xlu0
    %v3722 = vpop.trf.xlu0
    %v3723 = vpop.trf.xlu0
    %v3724 = vpop.trf.xlu0
    %v3725 = vpop.trf.xlu0
    %3726 = vxpose.xlu0.c.b16.start [1/8] %v3446, 128
    %3727 = vxpose.xlu0.c.b16.cont [2/8] %v3447, 128
    %3728 = vxpose.xlu0.c.b16.cont [3/8] %v3448, 128
    %3729 = vxpose.xlu0.c.b16.cont [4/8] %v3449, 128
    %3730 = vxpose.xlu0.c.b16.cont [5/8] %v3450, 128
    %3731 = vxpose.xlu0.c.b16.cont [6/8] %v3451, 128
    %3732 = vxpose.xlu0.c.b16.cont [7/8] %v3452, 128
    %3733 = vxpose.xlu0.c.b16.end [8/8] %v3453, 128
    %v3734 = vpop.trf.xlu0
    %v3735 = vpop.trf.xlu0
    %v3736 = vpop.trf.xlu0
    %v3737 = vpop.trf.xlu0
    %v3738 = vpop.trf.xlu0
    %v3739 = vpop.trf.xlu0
    %v3740 = vpop.trf.xlu0
    %v3741 = vpop.trf.xlu0
    %3742 = vxpose.xlu0.c.b16.start [1/8] %v3454, 128
    %3743 = vxpose.xlu0.c.b16.cont [2/8] %v3455, 128
    %3744 = vxpose.xlu0.c.b16.cont [3/8] %v3456, 128
    %3745 = vxpose.xlu0.c.b16.cont [4/8] %v3457, 128
    %3746 = vxpose.xlu0.c.b16.cont [5/8] %v3458, 128
    %3747 = vxpose.xlu0.c.b16.cont [6/8] %v3459, 128
    %3748 = vxpose.xlu0.c.b16.cont [7/8] %v3460, 128
    %3749 = vxpose.xlu0.c.b16.end [8/8] %v3461, 128
    %v3750 = vpop.trf.xlu0
    %v3751 = vpop.trf.xlu0
    %v3752 = vpop.trf.xlu0
    %v3753 = vpop.trf.xlu0
    %v3754 = vpop.trf.xlu0
    %v3755 = vpop.trf.xlu0
    %v3756 = vpop.trf.xlu0
    %v3757 = vpop.trf.xlu0
    %3758 = vxpose.xlu0.c.b16.start [1/8] %v3462, 128
    %3759 = vxpose.xlu0.c.b16.cont [2/8] %v3463, 128
    %3760 = vxpose.xlu0.c.b16.cont [3/8] %v3464, 128
    %3761 = vxpose.xlu0.c.b16.cont [4/8] %v3465, 128
    %3762 = vxpose.xlu0.c.b16.cont [5/8] %v3466, 128
    %3763 = vxpose.xlu0.c.b16.cont [6/8] %v3467, 128
    %3764 = vxpose.xlu0.c.b16.cont [7/8] %v3468, 128
    %3765 = vxpose.xlu0.c.b16.end [8/8] %v3469, 128
    %v3766 = vpop.trf.xlu0
    %v3767 = vpop.trf.xlu0
    %v3768 = vpop.trf.xlu0
    %v3769 = vpop.trf.xlu0
    %v3770 = vpop.trf.xlu0
    %v3771 = vpop.trf.xlu0
    %v3772 = vpop.trf.xlu0
    %v3773 = vpop.trf.xlu0
    %3774 = vxpose.xlu0.c.b16.start [1/8] %v3470, 128
    %3775 = vxpose.xlu0.c.b16.cont [2/8] %v3471, 128
    %3776 = vxpose.xlu0.c.b16.cont [3/8] %v3472, 128
    %3777 = vxpose.xlu0.c.b16.cont [4/8] %v3473, 128
    %3778 = vxpose.xlu0.c.b16.cont [5/8] %v3474, 128
    %3779 = vxpose.xlu0.c.b16.cont [6/8] %v3475, 128
    %3780 = vxpose.xlu0.c.b16.cont [7/8] %v3476, 128
    %3781 = vxpose.xlu0.c.b16.end [8/8] %v3477, 128
    %v3782 = vpop.trf.xlu0
    %v3783 = vpop.trf.xlu0
    %v3784 = vpop.trf.xlu0
    %v3785 = vpop.trf.xlu0
    %v3786 = vpop.trf.xlu0
    %v3787 = vpop.trf.xlu0
    %v3788 = vpop.trf.xlu0
    %v3789 = vpop.trf.xlu0
    %3790 = vxpose.xlu0.c.b16.start [1/8] %v3478, 128
    %3791 = vxpose.xlu0.c.b16.cont [2/8] %v3479, 128
    %3792 = vxpose.xlu0.c.b16.cont [3/8] %v3480, 128
    %3793 = vxpose.xlu0.c.b16.cont [4/8] %v3481, 128
    %3794 = vxpose.xlu0.c.b16.cont [5/8] %v3482, 128
    %3795 = vxpose.xlu0.c.b16.cont [6/8] %v3483, 128
    %3796 = vxpose.xlu0.c.b16.cont [7/8] %v3484, 128
    %3797 = vxpose.xlu0.c.b16.end [8/8] %v3485, 128
    %v3798 = vpop.trf.xlu0
    %v3799 = vpop.trf.xlu0
    %v3800 = vpop.trf.xlu0
    %v3801 = vpop.trf.xlu0
    %v3802 = vpop.trf.xlu0
    %v3803 = vpop.trf.xlu0
    %v3804 = vpop.trf.xlu0
    %v3805 = vpop.trf.xlu0
    %3806 = vxpose.xlu0.c.b16.start [1/8] %v3486, 128
    %3807 = vxpose.xlu0.c.b16.cont [2/8] %v3487, 128
    %3808 = vxpose.xlu0.c.b16.cont [3/8] %v3488, 128
    %3809 = vxpose.xlu0.c.b16.cont [4/8] %v3489, 128
    %3810 = vxpose.xlu0.c.b16.cont [5/8] %v3490, 128
    %3811 = vxpose.xlu0.c.b16.cont [6/8] %v3491, 128
    %3812 = vxpose.xlu0.c.b16.cont [7/8] %v3492, 128
    %3813 = vxpose.xlu0.c.b16.end [8/8] %v3493, 128
    %v3814 = vpop.trf.xlu0
    %v3815 = vpop.trf.xlu0
    %v3816 = vpop.trf.xlu0
    %v3817 = vpop.trf.xlu0
    %v3818 = vpop.trf.xlu0
    %v3819 = vpop.trf.xlu0
    %v3820 = vpop.trf.xlu0
    %v3821 = vpop.trf.xlu0
    %3822 = vxpose.xlu0.c.b16.start [1/8] %v3494, 128
    %3823 = vxpose.xlu0.c.b16.cont [2/8] %v3495, 128
    %3824 = vxpose.xlu0.c.b16.cont [3/8] %v3496, 128
    %3825 = vxpose.xlu0.c.b16.cont [4/8] %v3497, 128
    %3826 = vxpose.xlu0.c.b16.cont [5/8] %v3498, 128
    %3827 = vxpose.xlu0.c.b16.cont [6/8] %v3499, 128
    %3828 = vxpose.xlu0.c.b16.cont [7/8] %v3500, 128
    %3829 = vxpose.xlu0.c.b16.end [8/8] %v3501, 128
    %v3830 = vpop.trf.xlu0
    %v3831 = vpop.trf.xlu0
    %v3832 = vpop.trf.xlu0
    %v3833 = vpop.trf.xlu0
    %v3834 = vpop.trf.xlu0
    %v3835 = vpop.trf.xlu0
    %v3836 = vpop.trf.xlu0
    %v3837 = vpop.trf.xlu0
    %3838 = vxpose.xlu0.c.b16.start [1/8] %v3502, 128
    %3839 = vxpose.xlu0.c.b16.cont [2/8] %v3503, 128
    %3840 = vxpose.xlu0.c.b16.cont [3/8] %v3504, 128
    %3841 = vxpose.xlu0.c.b16.cont [4/8] %v3505, 128
    %3842 = vxpose.xlu0.c.b16.cont [5/8] %v3506, 128
    %3843 = vxpose.xlu0.c.b16.cont [6/8] %v3507, 128
    %3844 = vxpose.xlu0.c.b16.cont [7/8] %v3508, 128
    %3845 = vxpose.xlu0.c.b16.end [8/8] %v3509, 128
    %v3846 = vpop.trf.xlu0
    %v3847 = vpop.trf.xlu0
    %v3848 = vpop.trf.xlu0
    %v3849 = vpop.trf.xlu0
    %v3850 = vpop.trf.xlu0
    %v3851 = vpop.trf.xlu0
    %v3852 = vpop.trf.xlu0
    %v3853 = vpop.trf.xlu0
    %3854 = vxpose.xlu0.c.b16.start [1/8] %v3510, 128
    %3855 = vxpose.xlu0.c.b16.cont [2/8] %v3511, 128
    %3856 = vxpose.xlu0.c.b16.cont [3/8] %v3512, 128
    %3857 = vxpose.xlu0.c.b16.cont [4/8] %v3513, 128
    %3858 = vxpose.xlu0.c.b16.cont [5/8] %v3514, 128
    %3859 = vxpose.xlu0.c.b16.cont [6/8] %v3515, 128
    %3860 = vxpose.xlu0.c.b16.cont [7/8] %v3516, 128
    %3861 = vxpose.xlu0.c.b16.end [8/8] %v3517, 128
    %v3862 = vpop.trf.xlu0
    %v3863 = vpop.trf.xlu0
    %v3864 = vpop.trf.xlu0
    %v3865 = vpop.trf.xlu0
    %v3866 = vpop.trf.xlu0
    %v3867 = vpop.trf.xlu0
    %v3868 = vpop.trf.xlu0
    %v3869 = vpop.trf.xlu0
    %3870 = vxpose.xlu0.c.b16.start [1/8] %v3518, 128
    %3871 = vxpose.xlu0.c.b16.cont [2/8] %v3519, 128
    %3872 = vxpose.xlu0.c.b16.cont [3/8] %v3520, 128
    %3873 = vxpose.xlu0.c.b16.cont [4/8] %v3521, 128
    %3874 = vxpose.xlu0.c.b16.cont [5/8] %v3522, 128
    %3875 = vxpose.xlu0.c.b16.cont [6/8] %v3523, 128
    %3876 = vxpose.xlu0.c.b16.cont [7/8] %v3524, 128
    %3877 = vxpose.xlu0.c.b16.end [8/8] %v3525, 128
    %v3878 = vpop.trf.xlu0
    %v3879 = vpop.trf.xlu0
    %v3880 = vpop.trf.xlu0
    %v3881 = vpop.trf.xlu0
    %v3882 = vpop.trf.xlu0
    %v3883 = vpop.trf.xlu0
    %v3884 = vpop.trf.xlu0
    %v3885 = vpop.trf.xlu0
    %3886 = vxpose.xlu0.c.b16.start [1/8] %v3526, 128
    %3887 = vxpose.xlu0.c.b16.cont [2/8] %v3527, 128
    %3888 = vxpose.xlu0.c.b16.cont [3/8] %v3528, 128
    %3889 = vxpose.xlu0.c.b16.cont [4/8] %v3529, 128
    %3890 = vxpose.xlu0.c.b16.cont [5/8] %v3530, 128
    %3891 = vxpose.xlu0.c.b16.cont [6/8] %v3531, 128
    %3892 = vxpose.xlu0.c.b16.cont [7/8] %v3532, 128
    %3893 = vxpose.xlu0.c.b16.end [8/8] %v3533, 128
    %v3894 = vpop.trf.xlu0
    %v3895 = vpop.trf.xlu0
    %v3896 = vpop.trf.xlu0
    %v3897 = vpop.trf.xlu0
    %v3898 = vpop.trf.xlu0
    %v3899 = vpop.trf.xlu0
    %v3900 = vpop.trf.xlu0
    %v3901 = vpop.trf.xlu0
    %3902 = vxpose.xlu0.c.b16.start [1/8] %v3534, 128
    %3903 = vxpose.xlu0.c.b16.cont [2/8] %v3535, 128
    %3904 = vxpose.xlu0.c.b16.cont [3/8] %v3536, 128
    %3905 = vxpose.xlu0.c.b16.cont [4/8] %v3537, 128
    %3906 = vxpose.xlu0.c.b16.cont [5/8] %v3538, 128
    %3907 = vxpose.xlu0.c.b16.cont [6/8] %v3539, 128
    %3908 = vxpose.xlu0.c.b16.cont [7/8] %v3540, 128
    %3909 = vxpose.xlu0.c.b16.end [8/8] %v3541, 128
    %v3910 = vpop.trf.xlu0
    %v3911 = vpop.trf.xlu0
    %v3912 = vpop.trf.xlu0
    %v3913 = vpop.trf.xlu0
    %v3914 = vpop.trf.xlu0
    %v3915 = vpop.trf.xlu0
    %v3916 = vpop.trf.xlu0
    %v3917 = vpop.trf.xlu0
    %3918 = vxpose.xlu0.c.b16.start [1/8] %v3542, 128
    %3919 = vxpose.xlu0.c.b16.cont [2/8] %v3543, 128
    %3920 = vxpose.xlu0.c.b16.cont [3/8] %v3544, 128
    %3921 = vxpose.xlu0.c.b16.cont [4/8] %v3545, 128
    %3922 = vxpose.xlu0.c.b16.cont [5/8] %v3546, 128
    %3923 = vxpose.xlu0.c.b16.cont [6/8] %v3547, 128
    %3924 = vxpose.xlu0.c.b16.cont [7/8] %v3548, 128
    %3925 = vxpose.xlu0.c.b16.end [8/8] %v3549, 128
    %v3926 = vpop.trf.xlu0
    %v3927 = vpop.trf.xlu0
    %v3928 = vpop.trf.xlu0
    %v3929 = vpop.trf.xlu0
    %v3930 = vpop.trf.xlu0
    %v3931 = vpop.trf.xlu0
    %v3932 = vpop.trf.xlu0
    %v3933 = vpop.trf.xlu0
    %3934 = vmatprep.subr.bf16.mxu0 0
    %3935 = vmatpush1.bf16.msra.mxu0 %v2073
    %3936 = vmatprep.subr.bf16.mxu0 0
    %3937 = vmatpush1.bf16.msra.mxu0 %v2072
    %3938 = vmatprep.subr.bf16.mxu0 0
    %3939 = vmatpush1.bf16.msra.mxu0 %v2071
    %3940 = vmatprep.subr.bf16.mxu0 0
    %3941 = vmatpush1.bf16.msra.mxu0 %v2070
    %3942 = vmatprep.subr.bf16.mxu0 0
    %3943 = vmatpush1.bf16.msra.mxu0 %v2069
    %3944 = vmatprep.subr.bf16.mxu0 0
    %3945 = vmatpush1.bf16.msra.mxu0 %v2068
    %3946 = vmatprep.subr.bf16.mxu0 0
    %3947 = vmatpush1.bf16.msra.mxu0 %v2067
    %3948 = vmatprep.subr.bf16.mxu0 0
    %3949 = vmatpush1.bf16.msra.mxu0 %v2066
    %3950 = vmatprep.subr.bf16.mxu0 0
    %3951 = vmatpush2.bf16.msra.mxu0 %v2081
    %3952 = vmatprep.subr.bf16.mxu0 0
    %3953 = vmatpush2.bf16.msra.mxu0 %v2080
    %3954 = vmatprep.subr.bf16.mxu0 0
    %3955 = vmatpush2.bf16.msra.mxu0 %v2079
    %3956 = vmatprep.subr.bf16.mxu0 0
    %3957 = vmatpush2.bf16.msra.mxu0 %v2078
    %3958 = vmatprep.subr.bf16.mxu0 0
    %3959 = vmatpush2.bf16.msra.mxu0 %v2077
    %3960 = vmatprep.subr.bf16.mxu0 0
    %3961 = vmatpush2.bf16.msra.mxu0 %v2076
    %3962 = vmatprep.subr.bf16.mxu0 0
    %3963 = vmatpush2.bf16.msra.mxu0 %v2075
    %3964 = vmatprep.subr.bf16.mxu0 0
    %3965 = vmatpush2.bf16.msra.mxu0 %v2074
    %3966 = vmatprep.mubr.bf16.mxu0 %v3702
    %3967 = vmatmul.mubr.bf16.gmra.mxu0 %v3686
    %v3968 = vpop.f32.mrf.mxu0
    %v3969 = vadd.f32 %v272, %v3968
    %v3970 = vpop.f32.mrf.mxu0
    %v3971 = vpop.f32.mrf.mxu0
    %v3972 = vadd.f32 %v273, %v3971
    %v3973 = vpop.f32.mrf.mxu0
    %3974 = vdwg.mxu0
    %3975 = vmatprep.subr.bf16.mxu0 0
    %3976 = vmatpush1.bf16.msra.mxu0 %v2089
    %3977 = vmatprep.subr.bf16.mxu0 0
    %3978 = vmatpush1.bf16.msra.mxu0 %v2088
    %3979 = vmatprep.subr.bf16.mxu0 0
    %3980 = vmatpush1.bf16.msra.mxu0 %v2087
    %3981 = vmatprep.subr.bf16.mxu0 0
    %3982 = vmatpush1.bf16.msra.mxu0 %v2086
    %3983 = vmatprep.subr.bf16.mxu0 0
    %3984 = vmatpush1.bf16.msra.mxu0 %v2085
    %3985 = vmatprep.subr.bf16.mxu0 0
    %3986 = vmatpush1.bf16.msra.mxu0 %v2084
    %3987 = vmatprep.subr.bf16.mxu0 0
    %3988 = vmatpush1.bf16.msra.mxu0 %v2083
    %3989 = vmatprep.subr.bf16.mxu0 0
    %3990 = vmatpush1.bf16.msra.mxu0 %v2082
    %3991 = vmatprep.subr.bf16.mxu0 0
    %3992 = vmatpush2.bf16.msra.mxu0 %v2097
    %3993 = vmatprep.subr.bf16.mxu0 0
    %3994 = vmatpush2.bf16.msra.mxu0 %v2096
    %3995 = vmatprep.subr.bf16.mxu0 0
    %3996 = vmatpush2.bf16.msra.mxu0 %v2095
    %3997 = vmatprep.subr.bf16.mxu0 0
    %3998 = vmatpush2.bf16.msra.mxu0 %v2094
    %3999 = vmatprep.subr.bf16.mxu0 0
    %4000 = vmatpush2.bf16.msra.mxu0 %v2093
    %4001 = vmatprep.subr.bf16.mxu0 0
    %4002 = vmatpush2.bf16.msra.mxu0 %v2092
    %4003 = vmatprep.subr.bf16.mxu0 0
    %4004 = vmatpush2.bf16.msra.mxu0 %v2091
    %4005 = vmatprep.subr.bf16.mxu0 0
    %4006 = vmatpush2.bf16.msra.mxu0 %v2090
    %4007 = vmatprep.mubr.bf16.mxu0 %v3734
    %4008 = vmatmul.mubr.bf16.gmra.mxu0 %v3718
    %v4009 = vpop.f32.mrf.mxu0
    %v4010 = vadd.f32 %v3969, %v4009
    %v4011 = vpop.f32.mrf.mxu0
    %v4012 = vpop.f32.mrf.mxu0
    %v4013 = vadd.f32 %v3972, %v4012
    %v4014 = vpop.f32.mrf.mxu0
    %4015 = vdwg.mxu0
    %4016 = vmatprep.subr.bf16.mxu0 0
    %4017 = vmatpush1.bf16.msra.mxu0 %v2105
    %4018 = vmatprep.subr.bf16.mxu0 0
    %4019 = vmatpush1.bf16.msra.mxu0 %v2104
    %4020 = vmatprep.subr.bf16.mxu0 0
    %4021 = vmatpush1.bf16.msra.mxu0 %v2103
    %4022 = vmatprep.subr.bf16.mxu0 0
    %4023 = vmatpush1.bf16.msra.mxu0 %v2102
    %4024 = vmatprep.subr.bf16.mxu0 0
    %4025 = vmatpush1.bf16.msra.mxu0 %v2101
    %4026 = vmatprep.subr.bf16.mxu0 0
    %4027 = vmatpush1.bf16.msra.mxu0 %v2100
    %4028 = vmatprep.subr.bf16.mxu0 0
    %4029 = vmatpush1.bf16.msra.mxu0 %v2099
    %4030 = vmatprep.subr.bf16.mxu0 0
    %4031 = vmatpush1.bf16.msra.mxu0 %v2098
    %4032 = vmatprep.subr.bf16.mxu0 0
    %4033 = vmatpush2.bf16.msra.mxu0 %v2113
    %4034 = vmatprep.subr.bf16.mxu0 0
    %4035 = vmatpush2.bf16.msra.mxu0 %v2112
    %4036 = vmatprep.subr.bf16.mxu0 0
    %4037 = vmatpush2.bf16.msra.mxu0 %v2111
    %4038 = vmatprep.subr.bf16.mxu0 0
    %4039 = vmatpush2.bf16.msra.mxu0 %v2110
    %4040 = vmatprep.subr.bf16.mxu0 0
    %4041 = vmatpush2.bf16.msra.mxu0 %v2109
    %4042 = vmatprep.subr.bf16.mxu0 0
    %4043 = vmatpush2.bf16.msra.mxu0 %v2108
    %4044 = vmatprep.subr.bf16.mxu0 0
    %4045 = vmatpush2.bf16.msra.mxu0 %v2107
    %4046 = vmatprep.subr.bf16.mxu0 0
    %4047 = vmatpush2.bf16.msra.mxu0 %v2106
    %4048 = vmatprep.mubr.bf16.mxu0 %v3766
    %4049 = vmatmul.mubr.bf16.gmra.mxu0 %v3750
    %v4050 = vpop.f32.mrf.mxu0
    %v4051 = vadd.f32 %v4010, %v4050
    %v4052 = vpop.f32.mrf.mxu0
    %v4053 = vpop.f32.mrf.mxu0
    %v4054 = vadd.f32 %v4013, %v4053
    %v4055 = vpop.f32.mrf.mxu0
    %4056 = vdwg.mxu0
    %4057 = vmatprep.subr.bf16.mxu0 0
    %4058 = vmatpush1.bf16.msra.mxu0 %v2121
    %4059 = vmatprep.subr.bf16.mxu0 0
    %4060 = vmatpush1.bf16.msra.mxu0 %v2120
    %4061 = vmatprep.subr.bf16.mxu0 0
    %4062 = vmatpush1.bf16.msra.mxu0 %v2119
    %4063 = vmatprep.subr.bf16.mxu0 0
    %4064 = vmatpush1.bf16.msra.mxu0 %v2118
    %4065 = vmatprep.subr.bf16.mxu0 0
    %4066 = vmatpush1.bf16.msra.mxu0 %v2117
    %4067 = vmatprep.subr.bf16.mxu0 0
    %4068 = vmatpush1.bf16.msra.mxu0 %v2116
    %4069 = vmatprep.subr.bf16.mxu0 0
    %4070 = vmatpush1.bf16.msra.mxu0 %v2115
    %4071 = vmatprep.subr.bf16.mxu0 0
    %4072 = vmatpush1.bf16.msra.mxu0 %v2114
    %4073 = vmatprep.subr.bf16.mxu0 0
    %4074 = vmatpush2.bf16.msra.mxu0 %v2129
    %4075 = vmatprep.subr.bf16.mxu0 0
    %4076 = vmatpush2.bf16.msra.mxu0 %v2128
    %4077 = vmatprep.subr.bf16.mxu0 0
    %4078 = vmatpush2.bf16.msra.mxu0 %v2127
    %4079 = vmatprep.subr.bf16.mxu0 0
    %4080 = vmatpush2.bf16.msra.mxu0 %v2126
    %4081 = vmatprep.subr.bf16.mxu0 0
    %4082 = vmatpush2.bf16.msra.mxu0 %v2125
    %4083 = vmatprep.subr.bf16.mxu0 0
    %4084 = vmatpush2.bf16.msra.mxu0 %v2124
    %4085 = vmatprep.subr.bf16.mxu0 0
    %4086 = vmatpush2.bf16.msra.mxu0 %v2123
    %4087 = vmatprep.subr.bf16.mxu0 0
    %4088 = vmatpush2.bf16.msra.mxu0 %v2122
    %4089 = vmatprep.mubr.bf16.mxu0 %v3798
    %4090 = vmatmul.mubr.bf16.gmra.mxu0 %v3782
    %v4091 = vpop.f32.mrf.mxu0
    %v4092 = vadd.f32 %v4051, %v4091
    %v4093 = vpop.f32.mrf.mxu0
    %v4094 = vpop.f32.mrf.mxu0
    %v4095 = vadd.f32 %v4054, %v4094
    %v4096 = vpop.f32.mrf.mxu0
    %4097 = vdwg.mxu0
    %4098 = vmatprep.subr.bf16.mxu0 0
    %4099 = vmatpush1.bf16.msra.mxu0 %v2137
    %4100 = vmatprep.subr.bf16.mxu0 0
    %4101 = vmatpush1.bf16.msra.mxu0 %v2136
    %4102 = vmatprep.subr.bf16.mxu0 0
    %4103 = vmatpush1.bf16.msra.mxu0 %v2135
    %4104 = vmatprep.subr.bf16.mxu0 0
    %4105 = vmatpush1.bf16.msra.mxu0 %v2134
    %4106 = vmatprep.subr.bf16.mxu0 0
    %4107 = vmatpush1.bf16.msra.mxu0 %v2133
    %4108 = vmatprep.subr.bf16.mxu0 0
    %4109 = vmatpush1.bf16.msra.mxu0 %v2132
    %4110 = vmatprep.subr.bf16.mxu0 0
    %4111 = vmatpush1.bf16.msra.mxu0 %v2131
    %4112 = vmatprep.subr.bf16.mxu0 0
    %4113 = vmatpush1.bf16.msra.mxu0 %v2130
    %4114 = vmatprep.subr.bf16.mxu0 0
    %4115 = vmatpush2.bf16.msra.mxu0 %v2145
    %4116 = vmatprep.subr.bf16.mxu0 0
    %4117 = vmatpush2.bf16.msra.mxu0 %v2144
    %4118 = vmatprep.subr.bf16.mxu0 0
    %4119 = vmatpush2.bf16.msra.mxu0 %v2143
    %4120 = vmatprep.subr.bf16.mxu0 0
    %4121 = vmatpush2.bf16.msra.mxu0 %v2142
    %4122 = vmatprep.subr.bf16.mxu0 0
    %4123 = vmatpush2.bf16.msra.mxu0 %v2141
    %4124 = vmatprep.subr.bf16.mxu0 0
    %4125 = vmatpush2.bf16.msra.mxu0 %v2140
    %4126 = vmatprep.subr.bf16.mxu0 0
    %4127 = vmatpush2.bf16.msra.mxu0 %v2139
    %4128 = vmatprep.subr.bf16.mxu0 0
    %4129 = vmatpush2.bf16.msra.mxu0 %v2138
    %4130 = vmatprep.mubr.bf16.mxu0 %v3830
    %4131 = vmatmul.mubr.bf16.gmra.mxu0 %v3814
    %v4132 = vpop.f32.mrf.mxu0
    %v4133 = vadd.f32 %v4092, %v4132
    %v4134 = vpop.f32.mrf.mxu0
    %v4135 = vpop.f32.mrf.mxu0
    %v4136 = vadd.f32 %v4095, %v4135
    %v4137 = vpop.f32.mrf.mxu0
    %4138 = vdwg.mxu0
    %4139 = vmatprep.subr.bf16.mxu0 0
    %4140 = vmatpush1.bf16.msra.mxu0 %v2153
    %4141 = vmatprep.subr.bf16.mxu0 0
    %4142 = vmatpush1.bf16.msra.mxu0 %v2152
    %4143 = vmatprep.subr.bf16.mxu0 0
    %4144 = vmatpush1.bf16.msra.mxu0 %v2151
    %4145 = vmatprep.subr.bf16.mxu0 0
    %4146 = vmatpush1.bf16.msra.mxu0 %v2150
    %4147 = vmatprep.subr.bf16.mxu0 0
    %4148 = vmatpush1.bf16.msra.mxu0 %v2149
    %4149 = vmatprep.subr.bf16.mxu0 0
    %4150 = vmatpush1.bf16.msra.mxu0 %v2148
    %4151 = vmatprep.subr.bf16.mxu0 0
    %4152 = vmatpush1.bf16.msra.mxu0 %v2147
    %4153 = vmatprep.subr.bf16.mxu0 0
    %4154 = vmatpush1.bf16.msra.mxu0 %v2146
    %4155 = vmatprep.subr.bf16.mxu0 0
    %4156 = vmatpush2.bf16.msra.mxu0 %v2161
    %4157 = vmatprep.subr.bf16.mxu0 0
    %4158 = vmatpush2.bf16.msra.mxu0 %v2160
    %4159 = vmatprep.subr.bf16.mxu0 0
    %4160 = vmatpush2.bf16.msra.mxu0 %v2159
    %4161 = vmatprep.subr.bf16.mxu0 0
    %4162 = vmatpush2.bf16.msra.mxu0 %v2158
    %4163 = vmatprep.subr.bf16.mxu0 0
    %4164 = vmatpush2.bf16.msra.mxu0 %v2157
    %4165 = vmatprep.subr.bf16.mxu0 0
    %4166 = vmatpush2.bf16.msra.mxu0 %v2156
    %4167 = vmatprep.subr.bf16.mxu0 0
    %4168 = vmatpush2.bf16.msra.mxu0 %v2155
    %4169 = vmatprep.subr.bf16.mxu0 0
    %4170 = vmatpush2.bf16.msra.mxu0 %v2154
    %4171 = vmatprep.mubr.bf16.mxu0 %v3862
    %4172 = vmatmul.mubr.bf16.gmra.mxu0 %v3846
    %v4173 = vpop.f32.mrf.mxu0
    %v4174 = vadd.f32 %v4133, %v4173
    %v4175 = vpop.f32.mrf.mxu0
    %v4176 = vpop.f32.mrf.mxu0
    %v4177 = vadd.f32 %v4136, %v4176
    %v4178 = vpop.f32.mrf.mxu0
    %4179 = vdwg.mxu0
    %4180 = vmatprep.subr.bf16.mxu0 0
    %4181 = vmatpush1.bf16.msra.mxu0 %v2169
    %4182 = vmatprep.subr.bf16.mxu0 0
    %4183 = vmatpush1.bf16.msra.mxu0 %v2168
    %4184 = vmatprep.subr.bf16.mxu0 0
    %4185 = vmatpush1.bf16.msra.mxu0 %v2167
    %4186 = vmatprep.subr.bf16.mxu0 0
    %4187 = vmatpush1.bf16.msra.mxu0 %v2166
    %4188 = vmatprep.subr.bf16.mxu0 0
    %4189 = vmatpush1.bf16.msra.mxu0 %v2165
    %4190 = vmatprep.subr.bf16.mxu0 0
    %4191 = vmatpush1.bf16.msra.mxu0 %v2164
    %4192 = vmatprep.subr.bf16.mxu0 0
    %4193 = vmatpush1.bf16.msra.mxu0 %v2163
    %4194 = vmatprep.subr.bf16.mxu0 0
    %4195 = vmatpush1.bf16.msra.mxu0 %v2162
    %4196 = vmatprep.subr.bf16.mxu0 0
    %4197 = vmatpush2.bf16.msra.mxu0 %v2177
    %4198 = vmatprep.subr.bf16.mxu0 0
    %4199 = vmatpush2.bf16.msra.mxu0 %v2176
    %4200 = vmatprep.subr.bf16.mxu0 0
    %4201 = vmatpush2.bf16.msra.mxu0 %v2175
    %4202 = vmatprep.subr.bf16.mxu0 0
    %4203 = vmatpush2.bf16.msra.mxu0 %v2174
    %4204 = vmatprep.subr.bf16.mxu0 0
    %4205 = vmatpush2.bf16.msra.mxu0 %v2173
    %4206 = vmatprep.subr.bf16.mxu0 0
    %4207 = vmatpush2.bf16.msra.mxu0 %v2172
    %4208 = vmatprep.subr.bf16.mxu0 0
    %4209 = vmatpush2.bf16.msra.mxu0 %v2171
    %4210 = vmatprep.subr.bf16.mxu0 0
    %4211 = vmatpush2.bf16.msra.mxu0 %v2170
    %4212 = vmatprep.mubr.bf16.mxu0 %v3894
    %4213 = vmatmul.mubr.bf16.gmra.mxu0 %v3878
    %v4214 = vpop.f32.mrf.mxu0
    %v4215 = vadd.f32 %v4174, %v4214
    %v4216 = vpop.f32.mrf.mxu0
    %v4217 = vpop.f32.mrf.mxu0
    %v4218 = vadd.f32 %v4177, %v4217
    %v4219 = vpop.f32.mrf.mxu0
    %4220 = vdwg.mxu0
    %4221 = vmatprep.subr.bf16.mxu0 0
    %4222 = vmatpush1.bf16.msra.mxu0 %v2185
    %4223 = vmatprep.subr.bf16.mxu0 0
    %4224 = vmatpush1.bf16.msra.mxu0 %v2184
    %4225 = vmatprep.subr.bf16.mxu0 0
    %4226 = vmatpush1.bf16.msra.mxu0 %v2183
    %4227 = vmatprep.subr.bf16.mxu0 0
    %4228 = vmatpush1.bf16.msra.mxu0 %v2182
    %4229 = vmatprep.subr.bf16.mxu0 0
    %4230 = vmatpush1.bf16.msra.mxu0 %v2181
    %4231 = vmatprep.subr.bf16.mxu0 0
    %4232 = vmatpush1.bf16.msra.mxu0 %v2180
    %4233 = vmatprep.subr.bf16.mxu0 0
    %4234 = vmatpush1.bf16.msra.mxu0 %v2179
    %4235 = vmatprep.subr.bf16.mxu0 0
    %4236 = vmatpush1.bf16.msra.mxu0 %v2178
    %4237 = vmatprep.subr.bf16.mxu0 0
    %4238 = vmatpush2.bf16.msra.mxu0 %v2193
    %4239 = vmatprep.subr.bf16.mxu0 0
    %4240 = vmatpush2.bf16.msra.mxu0 %v2192
    %4241 = vmatprep.subr.bf16.mxu0 0
    %4242 = vmatpush2.bf16.msra.mxu0 %v2191
    %4243 = vmatprep.subr.bf16.mxu0 0
    %4244 = vmatpush2.bf16.msra.mxu0 %v2190
    %4245 = vmatprep.subr.bf16.mxu0 0
    %4246 = vmatpush2.bf16.msra.mxu0 %v2189
    %4247 = vmatprep.subr.bf16.mxu0 0
    %4248 = vmatpush2.bf16.msra.mxu0 %v2188
    %4249 = vmatprep.subr.bf16.mxu0 0
    %4250 = vmatpush2.bf16.msra.mxu0 %v2187
    %4251 = vmatprep.subr.bf16.mxu0 0
    %4252 = vmatpush2.bf16.msra.mxu0 %v2186
    %4253 = vmatprep.mubr.bf16.mxu0 %v3926
    %4254 = vmatmul.mubr.bf16.gmra.mxu0 %v3910
    %v4255 = vpop.f32.mrf.mxu0
    %v4256 = vadd.f32 %v4215, %v4255
    %v4257 = vpop.f32.mrf.mxu0
    %v4258 = vpop.f32.mrf.mxu0
    %v4259 = vadd.f32 %v4218, %v4258
    %v4260 = vpop.f32.mrf.mxu0
    %4261 = vdwg.mxu0
    %s4262 = scalar_lea.vmem [#allocation2], 16
    %4263 = vst.msk [vmem:[%s4262] sm:$0xff] %vm2650, %v4256
    %4264 = vst.msk [vmem:[%s4262 + $0x8] sm:$0xff] %vm2650, %v4259
    // Predicated region
    $region14: #{tpu_custom_call.1} parent=1 // pred_check
      _
    $region15: #{tpu_custom_call.1} parent=1 // pred_check_branch
      %4266 = sbr.rel (0) target = $region17
    $region16: #{tpu_custom_call.1} parent=1 // pred_region
      %s4268 = ssub.s32 512, 512
      %4269 = vsyncadd [#allocation3], %s4268
      %s4270 = sshll.u32 [#allocation2], 4
      %s4271 = int_to_ptr.vmem [resolvable:$true] %s4270
      %4276 = dma.vmem_to_hbm [thread:$0]  %s4271, 512, %s3, [#allocation3], 128, 128, 8
    $region17: #{tpu_custom_call.1} parent=1 // pred_fallthru
      _
    // Predicated region
    $region18: #{tpu_custom_call.1} parent=1 // pred_check
      _
    $region19: #{tpu_custom_call.1} parent=1 // pred_check_branch
      %4278 = sbr.rel (0) target = $region21
    $region20: #{tpu_custom_call.1} parent=1 // pred_region
      %4279 = dma.done [#allocation3], 512
    $region21: #{tpu_custom_call.1} parent=1 // pred_fallthru
      _
    %4280 = vsyncpa [#allocation3], 1

</llo_original>
